<compile_context>
chip_gen: v7x
topology: tpu7x:2x2x1
jax: 0.10.0
libtpu: 0.0.40
codegen_flags: <defaults>
</compile_context>

<pallas_src>
import functools

import jax
import jax.numpy as jnp
from jax import lax
from jax.experimental import pallas as pl
from jax.experimental.pallas import tpu as pltpu


CFG = {
    "feat_dim": 4,
    "dim": 32,
    "n_layers": 2,
    "n_heads": 4,
    "mlp_ratio": 4,
    "head": {"n_layers": 3, "hidden_dim": 32, "bottleneck_dim": 16, "out_dim": 32},
}


# ------------------------------ fused kernel ----------------------------------

def _graphcl_branch_kernel(*refs, treedef, n_leaves, cfg):
    """One grid step = full encoder + projection head for one branch."""
    x_ref, edge_ref = refs[0], refs[1]
    param_refs = refs[2:2 + n_leaves]
    o_ref = refs[2 + n_leaves]
    p = jax.tree_util.tree_unflatten(treedef, list(param_refs))

    N, _ = x_ref.shape
    E = edge_ref.shape[1]
    D = cfg["dim"]
    H = cfg["n_heads"]
    Dh = D // H
    scale = 1.0 / float(Dh) ** 0.5
    f32 = jnp.float32
    dn_last = (((1,), (1,)), ((), ()))          # contract last dims of both operands

    def dense(h, wb, act=None):
        y = jnp.dot(h, wb["w"][...], preferred_element_type=f32) + wb["b"][...]
        if act == "gelu":
            y = jax.nn.gelu(y)                  # tanh approx -> EUP
        return y

    def layer_norm(h, ln, eps=1e-5):
        mu = jnp.mean(h, axis=-1, keepdims=True)
        xc = h - mu
        var = jnp.mean(xc * xc, axis=-1, keepdims=True)
        return xc * lax.rsqrt(var + eps) * ln["g"][...] + ln["b"][...]

    # ---- additive attention bias built in-kernel from the edge list (no XLA scatter) ----
    # Computed once per branch and reused by every layer / head.
    node_ids = lax.broadcasted_iota(jnp.int32, (N, E), 0)            # [N, E] node index
    oh_src = (edge_ref[0:1, :] == node_ids).astype(f32)              # [N, E]
    oh_dst = (edge_ref[1:2, :] == node_ids).astype(f32)              # [N, E]
    adj = lax.dot_general(oh_src, oh_dst, dn_last, preferred_element_type=f32)      # src->dst
    adj = adj + lax.dot_general(oh_dst, oh_src, dn_last, preferred_element_type=f32)  # dst->src
    row = lax.broadcasted_iota(jnp.int32, (N, N), 0)
    col = lax.broadcasted_iota(jnp.int32, (N, N), 1)
    # self-loops guarantee every softmax row has >=1 unmasked entry
    adj = adj + (row == col).astype(f32)
    bias = jnp.where(adj > 0.0, 0.0, -1e9)

    # ---- encoder ----
    h = dense(x_ref[...].astype(f32), p["embed"])                    # [N, D]
    for lp in p["layers"]:
        hn = layer_norm(h, lp["ln1"])
        qkv = dense(hn, lp["qkv"])                                   # fused QKV: [N, 3D]
        o_acc = jnp.zeros((N, D), f32) + lp["o"]["b"][...]
        for hh in range(H):                                          # all heads in one step
            q = qkv[:, hh * Dh:(hh + 1) * Dh]
            k = qkv[:, D + hh * Dh:D + (hh + 1) * Dh]
            v = qkv[:, 2 * D + hh * Dh:2 * D + (hh + 1) * Dh]
            s = lax.dot_general(q, k, dn_last, preferred_element_type=f32) * scale + bias
            m = jnp.max(s, axis=-1, keepdims=True)
            e = jnp.exp(s - m)
            attn = e * pl.reciprocal(jnp.sum(e, axis=-1, keepdims=True), approx=True)
            ctx = jnp.dot(attn, v, preferred_element_type=f32)       # [N, Dh]
            # O-projection folded into the head loop (row-slice of o_w) + residual below
            o_acc = o_acc + jnp.dot(ctx, lp["o"]["w"][hh * Dh:(hh + 1) * Dh, :],
                                    preferred_element_type=f32)
        h = h + o_acc
        hn2 = layer_norm(h, lp["ln2"])
        h = h + dense(dense(hn2, lp["m1"], act="gelu"), lp["m2"])
    h = layer_norm(h, p["final_ln"])
    pooled = jnp.mean(h, axis=0, keepdims=True)                      # mean pool -> [1, D]

    # ---- DINO-style projection head ----
    hd = p["head"]
    z = dense(pooled, hd["mlp"][0], act="gelu")
    z = dense(z, hd["mlp"][1], act="gelu")
    z = dense(z, hd["mlp"][2])
    nrm = jnp.maximum(jnp.sqrt(jnp.sum(z * z, axis=-1, keepdims=True)), 1e-12)
    z = z * pl.reciprocal(nrm, approx=True)                          # L2 normalize
    z = dense(z, hd["last"])                                         # weight-normed last linear
    o_ref[0] = z.astype(o_ref.dtype)


def _branch_param_spec(leaf):
    # leaf has a leading branch axis; squeeze it out of the kernel view.
    n_rest = leaf.ndim - 1
    return pl.BlockSpec(
        (pl.Squeezed(),) + tuple(leaf.shape[1:]),
        lambda b, _n=n_rest: (b,) + (0,) * _n,
    )


def fused_graphcl_forward(stacked_params, x, edge_index, cfg):
    """Full encoder+head for B stacked branches in ONE pallas_call. Returns [B, 1, out_dim]."""
    leaves, treedef = jax.tree_util.tree_flatten(stacked_params)
    num_branches = leaves[0].shape[0]
    N, F = x.shape
    out_dim = cfg["head"]["out_dim"]

    kernel = functools.partial(
        _graphcl_branch_kernel, treedef=treedef, n_leaves=len(leaves), cfg=cfg)

    in_specs = [
        pl.BlockSpec((N, F), lambda b: (0, 0)),                    # node features (shared)
        pl.BlockSpec(tuple(edge_index.shape), lambda b: (0, 0)),   # edge list (shared)
    ] + [_branch_param_spec(leaf) for leaf in leaves]

    return pl.pallas_call(
        kernel,
        out_shape=jax.ShapeDtypeStruct((num_branches, 1, out_dim), jnp.float32),
        grid=(num_branches,),
        in_specs=in_specs,
        out_specs=pl.BlockSpec((1, 1, out_dim), lambda b: (b, 0, 0)),
        compiler_params=pltpu.CompilerParams(
            dimension_semantics=("parallel",),   # v7x: one branch per TensorCore
        ),
    )(x, edge_index, *leaves)


# -------------------------- parameter construction ----------------------------

def init_branch_params(key, cfg):
    D = cfg["dim"]
    F = cfg["feat_dim"]
    mlp = D * cfg["mlp_ratio"]
    hd = cfg["head"]
    ks = iter(jax.random.split(key, 64))

    def w(shape, scale=0.02):
        return (scale * jax.random.normal(next(ks), shape)).astype(jnp.float32)

    zeros = lambda s: jnp.zeros(s, jnp.float32)
    ones = lambda s: jnp.ones(s, jnp.float32)

    params = {
        "embed": {"w": w((F, D)), "b": zeros((1, D))},
        "layers": [],
        "final_ln": {"g": ones((1, D)), "b": zeros((1, D))},
    }
    for _ in range(cfg["n_layers"]):
        params["layers"].append({
            "ln1": {"g": ones((1, D)), "b": zeros((1, D))},
            "qkv": {"w": w((D, 3 * D)), "b": zeros((1, 3 * D))},     # fused Q/K/V projection
            "o": {"w": w((D, D)), "b": zeros((1, D))},
            "ln2": {"g": ones((1, D)), "b": zeros((1, D))},
            "m1": {"w": w((D, mlp)), "b": zeros((1, mlp))},
            "m2": {"w": w((mlp, D)), "b": zeros((1, D))},
        })

    head_mlp = [
        {"w": w((D, hd["hidden_dim"])), "b": zeros((1, hd["hidden_dim"]))},
        {"w": w((hd["hidden_dim"], hd["hidden_dim"])), "b": zeros((1, hd["hidden_dim"]))},
        {"w": w((hd["hidden_dim"], hd["bottleneck_dim"])), "b": zeros((1, hd["bottleneck_dim"]))},
    ]
    w_last = w((hd["bottleneck_dim"], hd["out_dim"]))
    # weight_norm with norm_last_layer=True (g frozen to 1): normalize each output column
    w_last = w_last / jnp.maximum(
        jnp.sqrt(jnp.sum(w_last * w_last, axis=0, keepdims=True)), 1e-12)
    params["head"] = {"mlp": head_mlp, "last": {"w": w_last, "b": zeros((1, hd["out_dim"]))}}
    return params


# ------------------------------ forward wrappers -------------------------------

def graphcl_forward(branch1_params, branch2_params, data, cfg, mode=1):
    # TODO(synk): dropout (drop_rate / attn_drop_rate), optional head BatchNorm (use_bn) and
    #             edge_attr (reference passes None) are inference no-ops / unused here.
    if mode == 1:
        params = branch1_params
    elif mode == 2:
        params = branch2_params
    else:
        raise ValueError(f"mode must be 1 or 2, got {mode}")
    stacked = jax.tree_util.tree_map(lambda a: a[None], params)
    out = fused_graphcl_forward(stacked, data["x"], data["edge_index"], cfg)
    return out[0]                                                     # [1, out_dim]


def graphcl_forward_both(branch1_params, branch2_params, data, cfg):
    """Both contrastive branches in one fused call (grid=(2,) parallel -> 2 TCs on v7x)."""
    stacked = jax.tree_util.tree_map(lambda a, b: jnp.stack([a, b], axis=0),
                                     branch1_params, branch2_params)
    return fused_graphcl_forward(stacked, data["x"], data["edge_index"], cfg)


# ----------------------------------- main --------------------------------------

if __name__ == "__main__":
    key = jax.random.PRNGKey(0)
    k_x, k_e, k_b1, k_b2 = jax.random.split(key, 4)

    N, F, E = 8, CFG["feat_dim"], 16
    x = jax.random.normal(k_x, (N, F), dtype=jnp.float32)
    edge_index = jax.random.randint(k_e, (2, E), 0, N, dtype=jnp.int32)
    data = {"x": x, "edge_index": edge_index, "edge_attr": None}

    branch1_params = init_branch_params(k_b1, CFG)
    branch2_params = init_branch_params(k_b2, CFG)

    out1 = jax.block_until_ready(
        graphcl_forward(branch1_params, branch2_params, data, CFG, mode=1))
    out2 = jax.block_until_ready(
        graphcl_forward(branch1_params, branch2_params, data, CFG, mode=2))
    out_both = jax.block_until_ready(
        graphcl_forward_both(branch1_params, branch2_params, data, CFG))

    assert out1.shape == (1, CFG["head"]["out_dim"])
    assert out2.shape == (1, CFG["head"]["out_dim"])
    assert out_both.shape == (2, 1, CFG["head"]["out_dim"])
    assert bool(jnp.all(jnp.isfinite(out1))) and bool(jnp.all(jnp.isfinite(out2)))
    assert bool(jnp.allclose(out_both[0], out1, atol=1e-5))
    assert bool(jnp.allclose(out_both[1], out2, atol=1e-5))
    print("KERNEL_OK")
</pallas_src>

<mosaic_0001>
module attributes {stable_mosaic.version = 11 : i64} {
  func.func @_graphcl_branch_kernel(%arg0: i32, %arg1: memref<8x4xf32, #tpu.memory_space<vmem>>, %arg2: memref<2x16xi32, #tpu.memory_space<vmem>>, %arg3: memref<1x1x32xf32, #tpu.memory_space<vmem>>, %arg4: memref<1x4x32xf32, #tpu.memory_space<vmem>>, %arg5: memref<1x1x32xf32, #tpu.memory_space<vmem>>, %arg6: memref<1x1x32xf32, #tpu.memory_space<vmem>>, %arg7: memref<1x1x32xf32, #tpu.memory_space<vmem>>, %arg8: memref<1x16x32xf32, #tpu.memory_space<vmem>>, %arg9: memref<1x1x32xf32, #tpu.memory_space<vmem>>, %arg10: memref<1x32x32xf32, #tpu.memory_space<vmem>>, %arg11: memref<1x1x32xf32, #tpu.memory_space<vmem>>, %arg12: memref<1x32x32xf32, #tpu.memory_space<vmem>>, %arg13: memref<1x1x16xf32, #tpu.memory_space<vmem>>, %arg14: memref<1x32x16xf32, #tpu.memory_space<vmem>>, %arg15: memref<1x1x32xf32, #tpu.memory_space<vmem>>, %arg16: memref<1x1x32xf32, #tpu.memory_space<vmem>>, %arg17: memref<1x1x32xf32, #tpu.memory_space<vmem>>, %arg18: memref<1x1x32xf32, #tpu.memory_space<vmem>>, %arg19: memref<1x1x128xf32, #tpu.memory_space<vmem>>, %arg20: memref<1x32x128xf32, #tpu.memory_space<vmem>>, %arg21: memref<1x1x32xf32, #tpu.memory_space<vmem>>, %arg22: memref<1x128x32xf32, #tpu.memory_space<vmem>>, %arg23: memref<1x1x32xf32, #tpu.memory_space<vmem>>, %arg24: memref<1x32x32xf32, #tpu.memory_space<vmem>>, %arg25: memref<1x1x96xf32, #tpu.memory_space<vmem>>, %arg26: memref<1x32x96xf32, #tpu.memory_space<vmem>>, %arg27: memref<1x1x32xf32, #tpu.memory_space<vmem>>, %arg28: memref<1x1x32xf32, #tpu.memory_space<vmem>>, %arg29: memref<1x1x32xf32, #tpu.memory_space<vmem>>, %arg30: memref<1x1x32xf32, #tpu.memory_space<vmem>>, %arg31: memref<1x1x128xf32, #tpu.memory_space<vmem>>, %arg32: memref<1x32x128xf32, #tpu.memory_space<vmem>>, %arg33: memref<1x1x32xf32, #tpu.memory_space<vmem>>, %arg34: memref<1x128x32xf32, #tpu.memory_space<vmem>>, %arg35: memref<1x1x32xf32, #tpu.memory_space<vmem>>, %arg36: memref<1x32x32xf32, #tpu.memory_space<vmem>>, %arg37: memref<1x1x96xf32, #tpu.memory_space<vmem>>, %arg38: memref<1x32x96xf32, #tpu.memory_space<vmem>>, %arg39: memref<1x1x32xf32, #tpu.memory_space<vmem>>) attributes {dimension_semantics = [#tpu.dimension_semantics<parallel>], iteration_bounds = array<i64: 1>, scalar_prefetch = 0 : i64, scratch_operands = 0 : i64, tpu.core_type = #tpu.core_type<tc>, window_params = [{pipeline_mode = #tpu.pipeline_mode<synchronous>, transform_indices = @transform_0, window_bounds = array<i64: 8, 4>}, {pipeline_mode = #tpu.pipeline_mode<synchronous>, transform_indices = @transform_1, window_bounds = array<i64: 2, 16>}, {transform_indices = @transform_2, window_bounds = array<i64: 1, 1, 32>}, {transform_indices = @transform_3, window_bounds = array<i64: 1, 4, 32>}, {transform_indices = @transform_4, window_bounds = array<i64: 1, 1, 32>}, {transform_indices = @transform_5, window_bounds = array<i64: 1, 1, 32>}, {transform_indices = @transform_6, window_bounds = array<i64: 1, 1, 32>}, {transform_indices = @transform_7, window_bounds = array<i64: 1, 16, 32>}, {transform_indices = @transform_8, window_bounds = array<i64: 1, 1, 32>}, {transform_indices = @transform_9, window_bounds = array<i64: 1, 32, 32>}, {transform_indices = @transform_10, window_bounds = array<i64: 1, 1, 32>}, {transform_indices = @transform_11, window_bounds = array<i64: 1, 32, 32>}, {transform_indices = @transform_12, window_bounds = array<i64: 1, 1, 16>}, {transform_indices = @transform_13, window_bounds = array<i64: 1, 32, 16>}, {transform_indices = @transform_14, window_bounds = array<i64: 1, 1, 32>}, {transform_indices = @transform_15, window_bounds = array<i64: 1, 1, 32>}, {transform_indices = @transform_16, window_bounds = array<i64: 1, 1, 32>}, {transform_indices = @transform_17, window_bounds = array<i64: 1, 1, 32>}, {transform_indices = @transform_18, window_bounds = array<i64: 1, 1, 128>}, {transform_indices = @transform_19, window_bounds = array<i64: 1, 32, 128>}, {transform_indices = @transform_20, window_bounds = array<i64: 1, 1, 32>}, {transform_indices = @transform_21, window_bounds = array<i64: 1, 128, 32>}, {transform_indices = @transform_22, window_bounds = array<i64: 1, 1, 32>}, {transform_indices = @transform_23, window_bounds = array<i64: 1, 32, 32>}, {transform_indices = @transform_24, window_bounds = array<i64: 1, 1, 96>}, {transform_indices = @transform_25, window_bounds = array<i64: 1, 32, 96>}, {transform_indices = @transform_26, window_bounds = array<i64: 1, 1, 32>}, {transform_indices = @transform_27, window_bounds = array<i64: 1, 1, 32>}, {transform_indices = @transform_28, window_bounds = array<i64: 1, 1, 32>}, {transform_indices = @transform_29, window_bounds = array<i64: 1, 1, 32>}, {transform_indices = @transform_30, window_bounds = array<i64: 1, 1, 128>}, {transform_indices = @transform_31, window_bounds = array<i64: 1, 32, 128>}, {transform_indices = @transform_32, window_bounds = array<i64: 1, 1, 32>}, {transform_indices = @transform_33, window_bounds = array<i64: 1, 128, 32>}, {transform_indices = @transform_34, window_bounds = array<i64: 1, 1, 32>}, {transform_indices = @transform_35, window_bounds = array<i64: 1, 32, 32>}, {transform_indices = @transform_36, window_bounds = array<i64: 1, 1, 96>}, {transform_indices = @transform_37, window_bounds = array<i64: 1, 32, 96>}, {transform_indices = @transform_38, window_bounds = array<i64: 1, 1, 32>}]} {
    %0 = tpu.iota {dimensions = array<i32: 0>} : vector<8x16xi32>
    %c0 = arith.constant 0 : index
    %c0_0 = arith.constant 0 : index
    %1 = vector.load %arg2[%c0, %c0_0] : memref<2x16xi32, #tpu.memory_space<vmem>>, vector<1x16xi32>
    %2 = vector.broadcast %1 : vector<1x16xi32> to vector<8x16xi32>
    %3 = arith.cmpi eq, %2, %0 : vector<8x16xi32>
    %4 = arith.extui %3 : vector<8x16xi1> to vector<8x16xi32>
    %5 = arith.sitofp %4 : vector<8x16xi32> to vector<8x16xf32>
    %c1 = arith.constant 1 : index
    %c0_1 = arith.constant 0 : index
    %6 = vector.load %arg2[%c1, %c0_1] : memref<2x16xi32, #tpu.memory_space<vmem>>, vector<1x16xi32>
    %7 = vector.broadcast %6 : vector<1x16xi32> to vector<8x16xi32>
    %8 = arith.cmpi eq, %7, %0 : vector<8x16xi32>
    %9 = arith.extui %8 : vector<8x16xi1> to vector<8x16xi32>
    %10 = arith.sitofp %9 : vector<8x16xi32> to vector<8x16xf32>
    %cst = arith.constant dense<0.000000e+00> : vector<8x8xf32>
    %11 = tpu.matmul %5, %10, %cst {dimension_numbers = #tpu.dot_dimension_numbers<[1], [1], [0], [0], [0, 0, 1, 0], [], []>} : vector<8x16xf32>, vector<8x16xf32>, vector<8x8xf32> -> vector<8x8xf32>
    %cst_2 = arith.constant dense<0.000000e+00> : vector<8x8xf32>
    %12 = tpu.matmul %10, %5, %cst_2 {dimension_numbers = #tpu.dot_dimension_numbers<[1], [1], [0], [0], [0, 0, 1, 0], [], []>} : vector<8x16xf32>, vector<8x16xf32>, vector<8x8xf32> -> vector<8x8xf32>
    %13 = arith.addf %11, %12 : vector<8x8xf32>
    %14 = tpu.iota {dimensions = array<i32: 0>} : vector<8x8xi32>
    %15 = tpu.iota {dimensions = array<i32: 1>} : vector<8x8xi32>
    %16 = arith.cmpi eq, %14, %15 : vector<8x8xi32>
    %17 = arith.extui %16 : vector<8x8xi1> to vector<8x8xi32>
    %18 = arith.sitofp %17 : vector<8x8xi32> to vector<8x8xf32>
    %19 = arith.addf %13, %18 : vector<8x8xf32>
    %cst_3 = arith.constant 0.000000e+00 : f32
    %20 = vector.broadcast %cst_3 : f32 to vector<8x8xf32>
    %21 = arith.cmpf ogt, %19, %20 : vector<8x8xf32>
    %cst_4 = arith.constant 0.000000e+00 : f32
    %cst_5 = arith.constant -1.000000e+09 : f32
    %22 = vector.broadcast %cst_4 : f32 to vector<8x8xf32>
    %23 = vector.broadcast %cst_5 : f32 to vector<8x8xf32>
    %24 = arith.select %21, %22, %23 : vector<8x8xi1>, vector<8x8xf32>
    %c0_6 = arith.constant 0 : index
    %c0_7 = arith.constant 0 : index
    %25 = vector.load %arg1[%c0_6, %c0_7] : memref<8x4xf32, #tpu.memory_space<vmem>>, vector<8x4xf32>
    %c0_8 = arith.constant 0 : index
    %c0_9 = arith.constant 0 : index
    %c0_10 = arith.constant 0 : index
    %26 = vector.load %arg4[%c0_8, %c0_9, %c0_10] : memref<1x4x32xf32, #tpu.memory_space<vmem>>, vector<1x4x32xf32>
    %27 = vector.shape_cast %26 : vector<1x4x32xf32> to vector<4x32xf32>
    %cst_11 = arith.constant dense<0.000000e+00> : vector<8x32xf32>
    %28 = tpu.matmul %25, %27, %cst_11 {dimension_numbers = #tpu.dot_dimension_numbers<[1], [0], [0], [1], [0, 0, 1, 1], [], []>} : vector<8x4xf32>, vector<4x32xf32>, vector<8x32xf32> -> vector<8x32xf32>
    %c0_12 = arith.constant 0 : index
    %c0_13 = arith.constant 0 : index
    %c0_14 = arith.constant 0 : index
    %29 = vector.load %arg3[%c0_12, %c0_13, %c0_14] : memref<1x1x32xf32, #tpu.memory_space<vmem>>, vector<1x1x32xf32>
    %30 = vector.shape_cast %29 : vector<1x1x32xf32> to vector<1x32xf32>
    %31 = vector.broadcast %30 : vector<1x32xf32> to vector<8x32xf32>
    %32 = arith.addf %28, %31 : vector<8x32xf32>
    %cst_15 = arith.constant dense<0.000000e+00> : vector<8xf32>
    %33 = vector.multi_reduction <add>, %32, %cst_15 [1] : vector<8x32xf32> to vector<8xf32>
    %34 = vector.shape_cast %33 : vector<8xf32> to vector<8x1xf32>
    %cst_16 = arith.constant 3.200000e+01 : f32
    %35 = vector.broadcast %cst_16 : f32 to vector<8x1xf32>
    %36 = arith.divf %34, %35 : vector<8x1xf32>
    %37 = vector.broadcast %36 : vector<8x1xf32> to vector<8x32xf32>
    %38 = arith.subf %32, %37 : vector<8x32xf32>
    %39 = arith.mulf %38, %38 : vector<8x32xf32>
    %cst_17 = arith.constant dense<0.000000e+00> : vector<8xf32>
    %40 = vector.multi_reduction <add>, %39, %cst_17 [1] : vector<8x32xf32> to vector<8xf32>
    %41 = vector.shape_cast %40 : vector<8xf32> to vector<8x1xf32>
    %cst_18 = arith.constant 3.200000e+01 : f32
    %42 = vector.broadcast %cst_18 : f32 to vector<8x1xf32>
    %43 = arith.divf %41, %42 : vector<8x1xf32>
    %cst_19 = arith.constant 9.99999974E-6 : f32
    %44 = vector.broadcast %cst_19 : f32 to vector<8x1xf32>
    %45 = arith.addf %43, %44 : vector<8x1xf32>
    %46 = math.rsqrt %45 : vector<8x1xf32>
    %47 = vector.broadcast %46 : vector<8x1xf32> to vector<8x32xf32>
    %48 = arith.mulf %38, %47 : vector<8x32xf32>
    %c0_20 = arith.constant 0 : index
    %c0_21 = arith.constant 0 : index
    %c0_22 = arith.constant 0 : index
    %49 = vector.load %arg16[%c0_20, %c0_21, %c0_22] : memref<1x1x32xf32, #tpu.memory_space<vmem>>, vector<1x1x32xf32>
    %50 = vector.shape_cast %49 : vector<1x1x32xf32> to vector<1x32xf32>
    %51 = vector.broadcast %50 : vector<1x32xf32> to vector<8x32xf32>
    %52 = arith.mulf %48, %51 : vector<8x32xf32>
    %c0_23 = arith.constant 0 : index
    %c0_24 = arith.constant 0 : index
    %c0_25 = arith.constant 0 : index
    %53 = vector.load %arg15[%c0_23, %c0_24, %c0_25] : memref<1x1x32xf32, #tpu.memory_space<vmem>>, vector<1x1x32xf32>
    %54 = vector.shape_cast %53 : vector<1x1x32xf32> to vector<1x32xf32>
    %55 = vector.broadcast %54 : vector<1x32xf32> to vector<8x32xf32>
    %56 = arith.addf %52, %55 : vector<8x32xf32>
    %c0_26 = arith.constant 0 : index
    %c0_27 = arith.constant 0 : index
    %c0_28 = arith.constant 0 : index
    %57 = vector.load %arg26[%c0_26, %c0_27, %c0_28] : memref<1x32x96xf32, #tpu.memory_space<vmem>>, vector<1x32x96xf32>
    %58 = vector.shape_cast %57 : vector<1x32x96xf32> to vector<32x96xf32>
    %cst_29 = arith.constant dense<0.000000e+00> : vector<8x96xf32>
    %59 = tpu.matmul %56, %58, %cst_29 {dimension_numbers = #tpu.dot_dimension_numbers<[1], [0], [0], [1], [0, 0, 1, 1], [], []>} : vector<8x32xf32>, vector<32x96xf32>, vector<8x96xf32> -> vector<8x96xf32>
    %c0_30 = arith.constant 0 : index
    %c0_31 = arith.constant 0 : index
    %c0_32 = arith.constant 0 : index
    %60 = vector.load %arg25[%c0_30, %c0_31, %c0_32] : memref<1x1x96xf32, #tpu.memory_space<vmem>>, vector<1x1x96xf32>
    %61 = vector.shape_cast %60 : vector<1x1x96xf32> to vector<1x96xf32>
    %62 = vector.broadcast %61 : vector<1x96xf32> to vector<8x96xf32>
    %63 = arith.addf %59, %62 : vector<8x96xf32>
    %cst_33 = arith.constant 0.000000e+00 : f32
    %64 = vector.broadcast %cst_33 : f32 to vector<8x32xf32>
    %c0_34 = arith.constant 0 : index
    %c0_35 = arith.constant 0 : index
    %c0_36 = arith.constant 0 : index
    %65 = vector.load %arg23[%c0_34, %c0_35, %c0_36] : memref<1x1x32xf32, #tpu.memory_space<vmem>>, vector<1x1x32xf32>
    %66 = vector.shape_cast %65 : vector<1x1x32xf32> to vector<1x32xf32>
    %67 = vector.broadcast %66 : vector<1x32xf32> to vector<8x32xf32>
    %68 = arith.addf %64, %67 : vector<8x32xf32>
    %69 = vector.extract_strided_slice %63 {offsets = [0, 0], sizes = [8, 8], strides = [1, 1]} : vector<8x96xf32> to vector<8x8xf32>
    %70 = vector.extract_strided_slice %63 {offsets = [0, 32], sizes = [8, 8], strides = [1, 1]} : vector<8x96xf32> to vector<8x8xf32>
    %71 = vector.extract_strided_slice %63 {offsets = [0, 64], sizes = [8, 8], strides = [1, 1]} : vector<8x96xf32> to vector<8x8xf32>
    %cst_37 = arith.constant dense<0.000000e+00> : vector<8x8xf32>
    %72 = tpu.matmul %69, %70, %cst_37 {dimension_numbers = #tpu.dot_dimension_numbers<[1], [1], [0], [0], [0, 0, 1, 0], [], []>} : vector<8x8xf32>, vector<8x8xf32>, vector<8x8xf32> -> vector<8x8xf32>
    %cst_38 = arith.constant 0.353553385 : f32
    %73 = vector.broadcast %cst_38 : f32 to vector<8x8xf32>
    %74 = arith.mulf %72, %73 : vector<8x8xf32>
    %75 = arith.addf %74, %24 : vector<8x8xf32>
    %cst_39 = arith.constant dense<0xFF800000> : vector<8xf32>
    %76 = vector.multi_reduction <maximumf>, %75, %cst_39 [1] : vector<8x8xf32> to vector<8xf32>
    %77 = vector.shape_cast %76 : vector<8xf32> to vector<8x1xf32>
    %78 = vector.broadcast %77 : vector<8x1xf32> to vector<8x8xf32>
    %79 = arith.subf %75, %78 : vector<8x8xf32>
    %80 = math.exp %79 : vector<8x8xf32>
    %cst_40 = arith.constant dense<0.000000e+00> : vector<8xf32>
    %81 = vector.multi_reduction <add>, %80, %cst_40 [1] : vector<8x8xf32> to vector<8xf32>
    %82 = vector.shape_cast %81 : vector<8xf32> to vector<8x1xf32>
    %83 = tpu.reciprocal %82 {approx = true} : vector<8x1xf32> -> vector<8x1xf32>
    %84 = vector.broadcast %83 : vector<8x1xf32> to vector<8x8xf32>
    %85 = arith.mulf %80, %84 : vector<8x8xf32>
    %cst_41 = arith.constant dense<0.000000e+00> : vector<8x8xf32>
    %86 = tpu.matmul %85, %71, %cst_41 {dimension_numbers = #tpu.dot_dimension_numbers<[1], [0], [0], [1], [0, 0, 1, 1], [], []>} : vector<8x8xf32>, vector<8x8xf32>, vector<8x8xf32> -> vector<8x8xf32>
    %c0_42 = arith.constant 0 : index
    %c0_43 = arith.constant 0 : index
    %c0_44 = arith.constant 0 : index
    %87 = vector.load %arg24[%c0_42, %c0_43, %c0_44] : memref<1x32x32xf32, #tpu.memory_space<vmem>>, vector<1x8x32xf32>
    %88 = vector.shape_cast %87 : vector<1x8x32xf32> to vector<8x32xf32>
    %cst_45 = arith.constant dense<0.000000e+00> : vector<8x32xf32>
    %89 = tpu.matmul %86, %88, %cst_45 {dimension_numbers = #tpu.dot_dimension_numbers<[1], [0], [0], [1], [0, 0, 1, 1], [], []>} : vector<8x8xf32>, vector<8x32xf32>, vector<8x32xf32> -> vector<8x32xf32>
    %90 = arith.addf %68, %89 : vector<8x32xf32>
    %91 = vector.extract_strided_slice %63 {offsets = [0, 8], sizes = [8, 8], strides = [1, 1]} : vector<8x96xf32> to vector<8x8xf32>
    %92 = vector.extract_strided_slice %63 {offsets = [0, 40], sizes = [8, 8], strides = [1, 1]} : vector<8x96xf32> to vector<8x8xf32>
    %93 = vector.extract_strided_slice %63 {offsets = [0, 72], sizes = [8, 8], strides = [1, 1]} : vector<8x96xf32> to vector<8x8xf32>
    %cst_46 = arith.constant dense<0.000000e+00> : vector<8x8xf32>
    %94 = tpu.matmul %91, %92, %cst_46 {dimension_numbers = #tpu.dot_dimension_numbers<[1], [1], [0], [0], [0, 0, 1, 0], [], []>} : vector<8x8xf32>, vector<8x8xf32>, vector<8x8xf32> -> vector<8x8xf32>
    %cst_47 = arith.constant 0.353553385 : f32
    %95 = vector.broadcast %cst_47 : f32 to vector<8x8xf32>
    %96 = arith.mulf %94, %95 : vector<8x8xf32>
    %97 = arith.addf %96, %24 : vector<8x8xf32>
    %cst_48 = arith.constant dense<0xFF800000> : vector<8xf32>
    %98 = vector.multi_reduction <maximumf>, %97, %cst_48 [1] : vector<8x8xf32> to vector<8xf32>
    %99 = vector.shape_cast %98 : vector<8xf32> to vector<8x1xf32>
    %100 = vector.broadcast %99 : vector<8x1xf32> to vector<8x8xf32>
    %101 = arith.subf %97, %100 : vector<8x8xf32>
    %102 = math.exp %101 : vector<8x8xf32>
    %cst_49 = arith.constant dense<0.000000e+00> : vector<8xf32>
    %103 = vector.multi_reduction <add>, %102, %cst_49 [1] : vector<8x8xf32> to vector<8xf32>
    %104 = vector.shape_cast %103 : vector<8xf32> to vector<8x1xf32>
    %105 = tpu.reciprocal %104 {approx = true} : vector<8x1xf32> -> vector<8x1xf32>
    %106 = vector.broadcast %105 : vector<8x1xf32> to vector<8x8xf32>
    %107 = arith.mulf %102, %106 : vector<8x8xf32>
    %cst_50 = arith.constant dense<0.000000e+00> : vector<8x8xf32>
    %108 = tpu.matmul %107, %93, %cst_50 {dimension_numbers = #tpu.dot_dimension_numbers<[1], [0], [0], [1], [0, 0, 1, 1], [], []>} : vector<8x8xf32>, vector<8x8xf32>, vector<8x8xf32> -> vector<8x8xf32>
    %c0_51 = arith.constant 0 : index
    %c8 = arith.constant 8 : index
    %c0_52 = arith.constant 0 : index
    %109 = vector.load %arg24[%c0_51, %c8, %c0_52] : memref<1x32x32xf32, #tpu.memory_space<vmem>>, vector<1x8x32xf32>
    %110 = vector.shape_cast %109 : vector<1x8x32xf32> to vector<8x32xf32>
    %cst_53 = arith.constant dense<0.000000e+00> : vector<8x32xf32>
    %111 = tpu.matmul %108, %110, %cst_53 {dimension_numbers = #tpu.dot_dimension_numbers<[1], [0], [0], [1], [0, 0, 1, 1], [], []>} : vector<8x8xf32>, vector<8x32xf32>, vector<8x32xf32> -> vector<8x32xf32>
    %112 = arith.addf %90, %111 : vector<8x32xf32>
    %113 = vector.extract_strided_slice %63 {offsets = [0, 16], sizes = [8, 8], strides = [1, 1]} : vector<8x96xf32> to vector<8x8xf32>
    %114 = vector.extract_strided_slice %63 {offsets = [0, 48], sizes = [8, 8], strides = [1, 1]} : vector<8x96xf32> to vector<8x8xf32>
    %115 = vector.extract_strided_slice %63 {offsets = [0, 80], sizes = [8, 8], strides = [1, 1]} : vector<8x96xf32> to vector<8x8xf32>
    %cst_54 = arith.constant dense<0.000000e+00> : vector<8x8xf32>
    %116 = tpu.matmul %113, %114, %cst_54 {dimension_numbers = #tpu.dot_dimension_numbers<[1], [1], [0], [0], [0, 0, 1, 0], [], []>} : vector<8x8xf32>, vector<8x8xf32>, vector<8x8xf32> -> vector<8x8xf32>
    %cst_55 = arith.constant 0.353553385 : f32
    %117 = vector.broadcast %cst_55 : f32 to vector<8x8xf32>
    %118 = arith.mulf %116, %117 : vector<8x8xf32>
    %119 = arith.addf %118, %24 : vector<8x8xf32>
    %cst_56 = arith.constant dense<0xFF800000> : vector<8xf32>
    %120 = vector.multi_reduction <maximumf>, %119, %cst_56 [1] : vector<8x8xf32> to vector<8xf32>
    %121 = vector.shape_cast %120 : vector<8xf32> to vector<8x1xf32>
    %122 = vector.broadcast %121 : vector<8x1xf32> to vector<8x8xf32>
    %123 = arith.subf %119, %122 : vector<8x8xf32>
    %124 = math.exp %123 : vector<8x8xf32>
    %cst_57 = arith.constant dense<0.000000e+00> : vector<8xf32>
    %125 = vector.multi_reduction <add>, %124, %cst_57 [1] : vector<8x8xf32> to vector<8xf32>
    %126 = vector.shape_cast %125 : vector<8xf32> to vector<8x1xf32>
    %127 = tpu.reciprocal %126 {approx = true} : vector<8x1xf32> -> vector<8x1xf32>
    %128 = vector.broadcast %127 : vector<8x1xf32> to vector<8x8xf32>
    %129 = arith.mulf %124, %128 : vector<8x8xf32>
    %cst_58 = arith.constant dense<0.000000e+00> : vector<8x8xf32>
    %130 = tpu.matmul %129, %115, %cst_58 {dimension_numbers = #tpu.dot_dimension_numbers<[1], [0], [0], [1], [0, 0, 1, 1], [], []>} : vector<8x8xf32>, vector<8x8xf32>, vector<8x8xf32> -> vector<8x8xf32>
    %c0_59 = arith.constant 0 : index
    %c16 = arith.constant 16 : index
    %c0_60 = arith.constant 0 : index
    %131 = vector.load %arg24[%c0_59, %c16, %c0_60] : memref<1x32x32xf32, #tpu.memory_space<vmem>>, vector<1x8x32xf32>
    %132 = vector.shape_cast %131 : vector<1x8x32xf32> to vector<8x32xf32>
    %cst_61 = arith.constant dense<0.000000e+00> : vector<8x32xf32>
    %133 = tpu.matmul %130, %132, %cst_61 {dimension_numbers = #tpu.dot_dimension_numbers<[1], [0], [0], [1], [0, 0, 1, 1], [], []>} : vector<8x8xf32>, vector<8x32xf32>, vector<8x32xf32> -> vector<8x32xf32>
    %134 = arith.addf %112, %133 : vector<8x32xf32>
    %135 = vector.extract_strided_slice %63 {offsets = [0, 24], sizes = [8, 8], strides = [1, 1]} : vector<8x96xf32> to vector<8x8xf32>
    %136 = vector.extract_strided_slice %63 {offsets = [0, 56], sizes = [8, 8], strides = [1, 1]} : vector<8x96xf32> to vector<8x8xf32>
    %137 = vector.extract_strided_slice %63 {offsets = [0, 88], sizes = [8, 8], strides = [1, 1]} : vector<8x96xf32> to vector<8x8xf32>
    %cst_62 = arith.constant dense<0.000000e+00> : vector<8x8xf32>
    %138 = tpu.matmul %135, %136, %cst_62 {dimension_numbers = #tpu.dot_dimension_numbers<[1], [1], [0], [0], [0, 0, 1, 0], [], []>} : vector<8x8xf32>, vector<8x8xf32>, vector<8x8xf32> -> vector<8x8xf32>
    %cst_63 = arith.constant 0.353553385 : f32
    %139 = vector.broadcast %cst_63 : f32 to vector<8x8xf32>
    %140 = arith.mulf %138, %139 : vector<8x8xf32>
    %141 = arith.addf %140, %24 : vector<8x8xf32>
    %cst_64 = arith.constant dense<0xFF800000> : vector<8xf32>
    %142 = vector.multi_reduction <maximumf>, %141, %cst_64 [1] : vector<8x8xf32> to vector<8xf32>
    %143 = vector.shape_cast %142 : vector<8xf32> to vector<8x1xf32>
    %144 = vector.broadcast %143 : vector<8x1xf32> to vector<8x8xf32>
    %145 = arith.subf %141, %144 : vector<8x8xf32>
    %146 = math.exp %145 : vector<8x8xf32>
    %cst_65 = arith.constant dense<0.000000e+00> : vector<8xf32>
    %147 = vector.multi_reduction <add>, %146, %cst_65 [1] : vector<8x8xf32> to vector<8xf32>
    %148 = vector.shape_cast %147 : vector<8xf32> to vector<8x1xf32>
    %149 = tpu.reciprocal %148 {approx = true} : vector<8x1xf32> -> vector<8x1xf32>
    %150 = vector.broadcast %149 : vector<8x1xf32> to vector<8x8xf32>
    %151 = arith.mulf %146, %150 : vector<8x8xf32>
    %cst_66 = arith.constant dense<0.000000e+00> : vector<8x8xf32>
    %152 = tpu.matmul %151, %137, %cst_66 {dimension_numbers = #tpu.dot_dimension_numbers<[1], [0], [0], [1], [0, 0, 1, 1], [], []>} : vector<8x8xf32>, vector<8x8xf32>, vector<8x8xf32> -> vector<8x8xf32>
    %c0_67 = arith.constant 0 : index
    %c24 = arith.constant 24 : index
    %c0_68 = arith.constant 0 : index
    %153 = vector.load %arg24[%c0_67, %c24, %c0_68] : memref<1x32x32xf32, #tpu.memory_space<vmem>>, vector<1x8x32xf32>
    %154 = vector.shape_cast %153 : vector<1x8x32xf32> to vector<8x32xf32>
    %cst_69 = arith.constant dense<0.000000e+00> : vector<8x32xf32>
    %155 = tpu.matmul %152, %154, %cst_69 {dimension_numbers = #tpu.dot_dimension_numbers<[1], [0], [0], [1], [0, 0, 1, 1], [], []>} : vector<8x8xf32>, vector<8x32xf32>, vector<8x32xf32> -> vector<8x32xf32>
    %156 = arith.addf %134, %155 : vector<8x32xf32>
    %157 = arith.addf %32, %156 : vector<8x32xf32>
    %cst_70 = arith.constant dense<0.000000e+00> : vector<8xf32>
    %158 = vector.multi_reduction <add>, %157, %cst_70 [1] : vector<8x32xf32> to vector<8xf32>
    %159 = vector.shape_cast %158 : vector<8xf32> to vector<8x1xf32>
    %cst_71 = arith.constant 3.200000e+01 : f32
    %160 = vector.broadcast %cst_71 : f32 to vector<8x1xf32>
    %161 = arith.divf %159, %160 : vector<8x1xf32>
    %162 = vector.broadcast %161 : vector<8x1xf32> to vector<8x32xf32>
    %163 = arith.subf %157, %162 : vector<8x32xf32>
    %164 = arith.mulf %163, %163 : vector<8x32xf32>
    %cst_72 = arith.constant dense<0.000000e+00> : vector<8xf32>
    %165 = vector.multi_reduction <add>, %164, %cst_72 [1] : vector<8x32xf32> to vector<8xf32>
    %166 = vector.shape_cast %165 : vector<8xf32> to vector<8x1xf32>
    %cst_73 = arith.constant 3.200000e+01 : f32
    %167 = vector.broadcast %cst_73 : f32 to vector<8x1xf32>
    %168 = arith.divf %166, %167 : vector<8x1xf32>
    %cst_74 = arith.constant 9.99999974E-6 : f32
    %169 = vector.broadcast %cst_74 : f32 to vector<8x1xf32>
    %170 = arith.addf %168, %169 : vector<8x1xf32>
    %171 = math.rsqrt %170 : vector<8x1xf32>
    %172 = vector.broadcast %171 : vector<8x1xf32> to vector<8x32xf32>
    %173 = arith.mulf %163, %172 : vector<8x32xf32>
    %c0_75 = arith.constant 0 : index
    %c0_76 = arith.constant 0 : index
    %c0_77 = arith.constant 0 : index
    %174 = vector.load %arg18[%c0_75, %c0_76, %c0_77] : memref<1x1x32xf32, #tpu.memory_space<vmem>>, vector<1x1x32xf32>
    %175 = vector.shape_cast %174 : vector<1x1x32xf32> to vector<1x32xf32>
    %176 = vector.broadcast %175 : vector<1x32xf32> to vector<8x32xf32>
    %177 = arith.mulf %173, %176 : vector<8x32xf32>
    %c0_78 = arith.constant 0 : index
    %c0_79 = arith.constant 0 : index
    %c0_80 = arith.constant 0 : index
    %178 = vector.load %arg17[%c0_78, %c0_79, %c0_80] : memref<1x1x32xf32, #tpu.memory_space<vmem>>, vector<1x1x32xf32>
    %179 = vector.shape_cast %178 : vector<1x1x32xf32> to vector<1x32xf32>
    %180 = vector.broadcast %179 : vector<1x32xf32> to vector<8x32xf32>
    %181 = arith.addf %177, %180 : vector<8x32xf32>
    %c0_81 = arith.constant 0 : index
    %c0_82 = arith.constant 0 : index
    %c0_83 = arith.constant 0 : index
    %182 = vector.load %arg20[%c0_81, %c0_82, %c0_83] : memref<1x32x128xf32, #tpu.memory_space<vmem>>, vector<1x32x128xf32>
    %183 = vector.shape_cast %182 : vector<1x32x128xf32> to vector<32x128xf32>
    %cst_84 = arith.constant dense<0.000000e+00> : vector<8x128xf32>
    %184 = tpu.matmul %181, %183, %cst_84 {dimension_numbers = #tpu.dot_dimension_numbers<[1], [0], [0], [1], [0, 0, 1, 1], [], []>} : vector<8x32xf32>, vector<32x128xf32>, vector<8x128xf32> -> vector<8x128xf32>
    %c0_85 = arith.constant 0 : index
    %c0_86 = arith.constant 0 : index
    %c0_87 = arith.constant 0 : index
    %185 = vector.load %arg19[%c0_85, %c0_86, %c0_87] : memref<1x1x128xf32, #tpu.memory_space<vmem>>, vector<1x1x128xf32>
    %186 = vector.shape_cast %185 : vector<1x1x128xf32> to vector<1x128xf32>
    %187 = vector.broadcast %186 : vector<1x128xf32> to vector<8x128xf32>
    %188 = arith.addf %184, %187 : vector<8x128xf32>
    %189 = arith.mulf %188, %188 : vector<8x128xf32>
    %190 = arith.mulf %188, %189 : vector<8x128xf32>
    %cst_88 = arith.constant 4.471500e-02 : f32
    %191 = vector.broadcast %cst_88 : f32 to vector<8x128xf32>
    %192 = arith.mulf %191, %190 : vector<8x128xf32>
    %193 = arith.addf %188, %192 : vector<8x128xf32>
    %cst_89 = arith.constant 0.797884583 : f32
    %194 = vector.broadcast %cst_89 : f32 to vector<8x128xf32>
    %195 = arith.mulf %194, %193 : vector<8x128xf32>
    %196 = math.tanh %195 : vector<8x128xf32>
    %cst_90 = arith.constant 1.000000e+00 : f32
    %197 = vector.broadcast %cst_90 : f32 to vector<8x128xf32>
    %198 = arith.addf %197, %196 : vector<8x128xf32>
    %cst_91 = arith.constant 5.000000e-01 : f32
    %199 = vector.broadcast %cst_91 : f32 to vector<8x128xf32>
    %200 = arith.mulf %199, %198 : vector<8x128xf32>
    %201 = arith.mulf %188, %200 : vector<8x128xf32>
    %c0_92 = arith.constant 0 : index
    %c0_93 = arith.constant 0 : index
    %c0_94 = arith.constant 0 : index
    %202 = vector.load %arg22[%c0_92, %c0_93, %c0_94] : memref<1x128x32xf32, #tpu.memory_space<vmem>>, vector<1x128x32xf32>
    %203 = vector.shape_cast %202 : vector<1x128x32xf32> to vector<128x32xf32>
    %cst_95 = arith.constant dense<0.000000e+00> : vector<8x32xf32>
    %204 = tpu.matmul %201, %203, %cst_95 {dimension_numbers = #tpu.dot_dimension_numbers<[1], [0], [0], [1], [0, 0, 1, 1], [], []>} : vector<8x128xf32>, vector<128x32xf32>, vector<8x32xf32> -> vector<8x32xf32>
    %c0_96 = arith.constant 0 : index
    %c0_97 = arith.constant 0 : index
    %c0_98 = arith.constant 0 : index
    %205 = vector.load %arg21[%c0_96, %c0_97, %c0_98] : memref<1x1x32xf32, #tpu.memory_space<vmem>>, vector<1x1x32xf32>
    %206 = vector.shape_cast %205 : vector<1x1x32xf32> to vector<1x32xf32>
    %207 = vector.broadcast %206 : vector<1x32xf32> to vector<8x32xf32>
    %208 = arith.addf %204, %207 : vector<8x32xf32>
    %209 = arith.addf %157, %208 : vector<8x32xf32>
    %cst_99 = arith.constant dense<0.000000e+00> : vector<8xf32>
    %210 = vector.multi_reduction <add>, %209, %cst_99 [1] : vector<8x32xf32> to vector<8xf32>
    %211 = vector.shape_cast %210 : vector<8xf32> to vector<8x1xf32>
    %cst_100 = arith.constant 3.200000e+01 : f32
    %212 = vector.broadcast %cst_100 : f32 to vector<8x1xf32>
    %213 = arith.divf %211, %212 : vector<8x1xf32>
    %214 = vector.broadcast %213 : vector<8x1xf32> to vector<8x32xf32>
    %215 = arith.subf %209, %214 : vector<8x32xf32>
    %216 = arith.mulf %215, %215 : vector<8x32xf32>
    %cst_101 = arith.constant dense<0.000000e+00> : vector<8xf32>
    %217 = vector.multi_reduction <add>, %216, %cst_101 [1] : vector<8x32xf32> to vector<8xf32>
    %218 = vector.shape_cast %217 : vector<8xf32> to vector<8x1xf32>
    %cst_102 = arith.constant 3.200000e+01 : f32
    %219 = vector.broadcast %cst_102 : f32 to vector<8x1xf32>
    %220 = arith.divf %218, %219 : vector<8x1xf32>
    %cst_103 = arith.constant 9.99999974E-6 : f32
    %221 = vector.broadcast %cst_103 : f32 to vector<8x1xf32>
    %222 = arith.addf %220, %221 : vector<8x1xf32>
    %223 = math.rsqrt %222 : vector<8x1xf32>
    %224 = vector.broadcast %223 : vector<8x1xf32> to vector<8x32xf32>
    %225 = arith.mulf %215, %224 : vector<8x32xf32>
    %c0_104 = arith.constant 0 : index
    %c0_105 = arith.constant 0 : index
    %c0_106 = arith.constant 0 : index
    %226 = vector.load %arg28[%c0_104, %c0_105, %c0_106] : memref<1x1x32xf32, #tpu.memory_space<vmem>>, vector<1x1x32xf32>
    %227 = vector.shape_cast %226 : vector<1x1x32xf32> to vector<1x32xf32>
    %228 = vector.broadcast %227 : vector<1x32xf32> to vector<8x32xf32>
    %229 = arith.mulf %225, %228 : vector<8x32xf32>
    %c0_107 = arith.constant 0 : index
    %c0_108 = arith.constant 0 : index
    %c0_109 = arith.constant 0 : index
    %230 = vector.load %arg27[%c0_107, %c0_108, %c0_109] : memref<1x1x32xf32, #tpu.memory_space<vmem>>, vector<1x1x32xf32>
    %231 = vector.shape_cast %230 : vector<1x1x32xf32> to vector<1x32xf32>
    %232 = vector.broadcast %231 : vector<1x32xf32> to vector<8x32xf32>
    %233 = arith.addf %229, %232 : vector<8x32xf32>
    %c0_110 = arith.constant 0 : index
    %c0_111 = arith.constant 0 : index
    %c0_112 = arith.constant 0 : index
    %234 = vector.load %arg38[%c0_110, %c0_111, %c0_112] : memref<1x32x96xf32, #tpu.memory_space<vmem>>, vector<1x32x96xf32>
    %235 = vector.shape_cast %234 : vector<1x32x96xf32> to vector<32x96xf32>
    %cst_113 = arith.constant dense<0.000000e+00> : vector<8x96xf32>
    %236 = tpu.matmul %233, %235, %cst_113 {dimension_numbers = #tpu.dot_dimension_numbers<[1], [0], [0], [1], [0, 0, 1, 1], [], []>} : vector<8x32xf32>, vector<32x96xf32>, vector<8x96xf32> -> vector<8x96xf32>
    %c0_114 = arith.constant 0 : index
    %c0_115 = arith.constant 0 : index
    %c0_116 = arith.constant 0 : index
    %237 = vector.load %arg37[%c0_114, %c0_115, %c0_116] : memref<1x1x96xf32, #tpu.memory_space<vmem>>, vector<1x1x96xf32>
    %238 = vector.shape_cast %237 : vector<1x1x96xf32> to vector<1x96xf32>
    %239 = vector.broadcast %238 : vector<1x96xf32> to vector<8x96xf32>
    %240 = arith.addf %236, %239 : vector<8x96xf32>
    %cst_117 = arith.constant 0.000000e+00 : f32
    %241 = vector.broadcast %cst_117 : f32 to vector<8x32xf32>
    %c0_118 = arith.constant 0 : index
    %c0_119 = arith.constant 0 : index
    %c0_120 = arith.constant 0 : index
    %242 = vector.load %arg35[%c0_118, %c0_119, %c0_120] : memref<1x1x32xf32, #tpu.memory_space<vmem>>, vector<1x1x32xf32>
    %243 = vector.shape_cast %242 : vector<1x1x32xf32> to vector<1x32xf32>
    %244 = vector.broadcast %243 : vector<1x32xf32> to vector<8x32xf32>
    %245 = arith.addf %241, %244 : vector<8x32xf32>
    %246 = vector.extract_strided_slice %240 {offsets = [0, 0], sizes = [8, 8], strides = [1, 1]} : vector<8x96xf32> to vector<8x8xf32>
    %247 = vector.extract_strided_slice %240 {offsets = [0, 32], sizes = [8, 8], strides = [1, 1]} : vector<8x96xf32> to vector<8x8xf32>
    %248 = vector.extract_strided_slice %240 {offsets = [0, 64], sizes = [8, 8], strides = [1, 1]} : vector<8x96xf32> to vector<8x8xf32>
    %cst_121 = arith.constant dense<0.000000e+00> : vector<8x8xf32>
    %249 = tpu.matmul %246, %247, %cst_121 {dimension_numbers = #tpu.dot_dimension_numbers<[1], [1], [0], [0], [0, 0, 1, 0], [], []>} : vector<8x8xf32>, vector<8x8xf32>, vector<8x8xf32> -> vector<8x8xf32>
    %cst_122 = arith.constant 0.353553385 : f32
    %250 = vector.broadcast %cst_122 : f32 to vector<8x8xf32>
    %251 = arith.mulf %249, %250 : vector<8x8xf32>
    %252 = arith.addf %251, %24 : vector<8x8xf32>
    %cst_123 = arith.constant dense<0xFF800000> : vector<8xf32>
    %253 = vector.multi_reduction <maximumf>, %252, %cst_123 [1] : vector<8x8xf32> to vector<8xf32>
    %254 = vector.shape_cast %253 : vector<8xf32> to vector<8x1xf32>
    %255 = vector.broadcast %254 : vector<8x1xf32> to vector<8x8xf32>
    %256 = arith.subf %252, %255 : vector<8x8xf32>
    %257 = math.exp %256 : vector<8x8xf32>
    %cst_124 = arith.constant dense<0.000000e+00> : vector<8xf32>
    %258 = vector.multi_reduction <add>, %257, %cst_124 [1] : vector<8x8xf32> to vector<8xf32>
    %259 = vector.shape_cast %258 : vector<8xf32> to vector<8x1xf32>
    %260 = tpu.reciprocal %259 {approx = true} : vector<8x1xf32> -> vector<8x1xf32>
    %261 = vector.broadcast %260 : vector<8x1xf32> to vector<8x8xf32>
    %262 = arith.mulf %257, %261 : vector<8x8xf32>
    %cst_125 = arith.constant dense<0.000000e+00> : vector<8x8xf32>
    %263 = tpu.matmul %262, %248, %cst_125 {dimension_numbers = #tpu.dot_dimension_numbers<[1], [0], [0], [1], [0, 0, 1, 1], [], []>} : vector<8x8xf32>, vector<8x8xf32>, vector<8x8xf32> -> vector<8x8xf32>
    %c0_126 = arith.constant 0 : index
    %c0_127 = arith.constant 0 : index
    %c0_128 = arith.constant 0 : index
    %264 = vector.load %arg36[%c0_126, %c0_127, %c0_128] : memref<1x32x32xf32, #tpu.memory_space<vmem>>, vector<1x8x32xf32>
    %265 = vector.shape_cast %264 : vector<1x8x32xf32> to vector<8x32xf32>
    %cst_129 = arith.constant dense<0.000000e+00> : vector<8x32xf32>
    %266 = tpu.matmul %263, %265, %cst_129 {dimension_numbers = #tpu.dot_dimension_numbers<[1], [0], [0], [1], [0, 0, 1, 1], [], []>} : vector<8x8xf32>, vector<8x32xf32>, vector<8x32xf32> -> vector<8x32xf32>
    %267 = arith.addf %245, %266 : vector<8x32xf32>
    %268 = vector.extract_strided_slice %240 {offsets = [0, 8], sizes = [8, 8], strides = [1, 1]} : vector<8x96xf32> to vector<8x8xf32>
    %269 = vector.extract_strided_slice %240 {offsets = [0, 40], sizes = [8, 8], strides = [1, 1]} : vector<8x96xf32> to vector<8x8xf32>
    %270 = vector.extract_strided_slice %240 {offsets = [0, 72], sizes = [8, 8], strides = [1, 1]} : vector<8x96xf32> to vector<8x8xf32>
    %cst_130 = arith.constant dense<0.000000e+00> : vector<8x8xf32>
    %271 = tpu.matmul %268, %269, %cst_130 {dimension_numbers = #tpu.dot_dimension_numbers<[1], [1], [0], [0], [0, 0, 1, 0], [], []>} : vector<8x8xf32>, vector<8x8xf32>, vector<8x8xf32> -> vector<8x8xf32>
    %cst_131 = arith.constant 0.353553385 : f32
    %272 = vector.broadcast %cst_131 : f32 to vector<8x8xf32>
    %273 = arith.mulf %271, %272 : vector<8x8xf32>
    %274 = arith.addf %273, %24 : vector<8x8xf32>
    %cst_132 = arith.constant dense<0xFF800000> : vector<8xf32>
    %275 = vector.multi_reduction <maximumf>, %274, %cst_132 [1] : vector<8x8xf32> to vector<8xf32>
    %276 = vector.shape_cast %275 : vector<8xf32> to vector<8x1xf32>
    %277 = vector.broadcast %276 : vector<8x1xf32> to vector<8x8xf32>
    %278 = arith.subf %274, %277 : vector<8x8xf32>
    %279 = math.exp %278 : vector<8x8xf32>
    %cst_133 = arith.constant dense<0.000000e+00> : vector<8xf32>
    %280 = vector.multi_reduction <add>, %279, %cst_133 [1] : vector<8x8xf32> to vector<8xf32>
    %281 = vector.shape_cast %280 : vector<8xf32> to vector<8x1xf32>
    %282 = tpu.reciprocal %281 {approx = true} : vector<8x1xf32> -> vector<8x1xf32>
    %283 = vector.broadcast %282 : vector<8x1xf32> to vector<8x8xf32>
    %284 = arith.mulf %279, %283 : vector<8x8xf32>
    %cst_134 = arith.constant dense<0.000000e+00> : vector<8x8xf32>
    %285 = tpu.matmul %284, %270, %cst_134 {dimension_numbers = #tpu.dot_dimension_numbers<[1], [0], [0], [1], [0, 0, 1, 1], [], []>} : vector<8x8xf32>, vector<8x8xf32>, vector<8x8xf32> -> vector<8x8xf32>
    %c0_135 = arith.constant 0 : index
    %c8_136 = arith.constant 8 : index
    %c0_137 = arith.constant 0 : index
    %286 = vector.load %arg36[%c0_135, %c8_136, %c0_137] : memref<1x32x32xf32, #tpu.memory_space<vmem>>, vector<1x8x32xf32>
    %287 = vector.shape_cast %286 : vector<1x8x32xf32> to vector<8x32xf32>
    %cst_138 = arith.constant dense<0.000000e+00> : vector<8x32xf32>
    %288 = tpu.matmul %285, %287, %cst_138 {dimension_numbers = #tpu.dot_dimension_numbers<[1], [0], [0], [1], [0, 0, 1, 1], [], []>} : vector<8x8xf32>, vector<8x32xf32>, vector<8x32xf32> -> vector<8x32xf32>
    %289 = arith.addf %267, %288 : vector<8x32xf32>
    %290 = vector.extract_strided_slice %240 {offsets = [0, 16], sizes = [8, 8], strides = [1, 1]} : vector<8x96xf32> to vector<8x8xf32>
    %291 = vector.extract_strided_slice %240 {offsets = [0, 48], sizes = [8, 8], strides = [1, 1]} : vector<8x96xf32> to vector<8x8xf32>
    %292 = vector.extract_strided_slice %240 {offsets = [0, 80], sizes = [8, 8], strides = [1, 1]} : vector<8x96xf32> to vector<8x8xf32>
    %cst_139 = arith.constant dense<0.000000e+00> : vector<8x8xf32>
    %293 = tpu.matmul %290, %291, %cst_139 {dimension_numbers = #tpu.dot_dimension_numbers<[1], [1], [0], [0], [0, 0, 1, 0], [], []>} : vector<8x8xf32>, vector<8x8xf32>, vector<8x8xf32> -> vector<8x8xf32>
    %cst_140 = arith.constant 0.353553385 : f32
    %294 = vector.broadcast %cst_140 : f32 to vector<8x8xf32>
    %295 = arith.mulf %293, %294 : vector<8x8xf32>
    %296 = arith.addf %295, %24 : vector<8x8xf32>
    %cst_141 = arith.constant dense<0xFF800000> : vector<8xf32>
    %297 = vector.multi_reduction <maximumf>, %296, %cst_141 [1] : vector<8x8xf32> to vector<8xf32>
    %298 = vector.shape_cast %297 : vector<8xf32> to vector<8x1xf32>
    %299 = vector.broadcast %298 : vector<8x1xf32> to vector<8x8xf32>
    %300 = arith.subf %296, %299 : vector<8x8xf32>
    %301 = math.exp %300 : vector<8x8xf32>
    %cst_142 = arith.constant dense<0.000000e+00> : vector<8xf32>
    %302 = vector.multi_reduction <add>, %301, %cst_142 [1] : vector<8x8xf32> to vector<8xf32>
    %303 = vector.shape_cast %302 : vector<8xf32> to vector<8x1xf32>
    %304 = tpu.reciprocal %303 {approx = true} : vector<8x1xf32> -> vector<8x1xf32>
    %305 = vector.broadcast %304 : vector<8x1xf32> to vector<8x8xf32>
    %306 = arith.mulf %301, %305 : vector<8x8xf32>
    %cst_143 = arith.constant dense<0.000000e+00> : vector<8x8xf32>
    %307 = tpu.matmul %306, %292, %cst_143 {dimension_numbers = #tpu.dot_dimension_numbers<[1], [0], [0], [1], [0, 0, 1, 1], [], []>} : vector<8x8xf32>, vector<8x8xf32>, vector<8x8xf32> -> vector<8x8xf32>
    %c0_144 = arith.constant 0 : index
    %c16_145 = arith.constant 16 : index
    %c0_146 = arith.constant 0 : index
    %308 = vector.load %arg36[%c0_144, %c16_145, %c0_146] : memref<1x32x32xf32, #tpu.memory_space<vmem>>, vector<1x8x32xf32>
    %309 = vector.shape_cast %308 : vector<1x8x32xf32> to vector<8x32xf32>
    %cst_147 = arith.constant dense<0.000000e+00> : vector<8x32xf32>
    %310 = tpu.matmul %307, %309, %cst_147 {dimension_numbers = #tpu.dot_dimension_numbers<[1], [0], [0], [1], [0, 0, 1, 1], [], []>} : vector<8x8xf32>, vector<8x32xf32>, vector<8x32xf32> -> vector<8x32xf32>
    %311 = arith.addf %289, %310 : vector<8x32xf32>
    %312 = vector.extract_strided_slice %240 {offsets = [0, 24], sizes = [8, 8], strides = [1, 1]} : vector<8x96xf32> to vector<8x8xf32>
    %313 = vector.extract_strided_slice %240 {offsets = [0, 56], sizes = [8, 8], strides = [1, 1]} : vector<8x96xf32> to vector<8x8xf32>
    %314 = vector.extract_strided_slice %240 {offsets = [0, 88], sizes = [8, 8], strides = [1, 1]} : vector<8x96xf32> to vector<8x8xf32>
    %cst_148 = arith.constant dense<0.000000e+00> : vector<8x8xf32>
    %315 = tpu.matmul %312, %313, %cst_148 {dimension_numbers = #tpu.dot_dimension_numbers<[1], [1], [0], [0], [0, 0, 1, 0], [], []>} : vector<8x8xf32>, vector<8x8xf32>, vector<8x8xf32> -> vector<8x8xf32>
    %cst_149 = arith.constant 0.353553385 : f32
    %316 = vector.broadcast %cst_149 : f32 to vector<8x8xf32>
    %317 = arith.mulf %315, %316 : vector<8x8xf32>
    %318 = arith.addf %317, %24 : vector<8x8xf32>
    %cst_150 = arith.constant dense<0xFF800000> : vector<8xf32>
    %319 = vector.multi_reduction <maximumf>, %318, %cst_150 [1] : vector<8x8xf32> to vector<8xf32>
    %320 = vector.shape_cast %319 : vector<8xf32> to vector<8x1xf32>
    %321 = vector.broadcast %320 : vector<8x1xf32> to vector<8x8xf32>
    %322 = arith.subf %318, %321 : vector<8x8xf32>
    %323 = math.exp %322 : vector<8x8xf32>
    %cst_151 = arith.constant dense<0.000000e+00> : vector<8xf32>
    %324 = vector.multi_reduction <add>, %323, %cst_151 [1] : vector<8x8xf32> to vector<8xf32>
    %325 = vector.shape_cast %324 : vector<8xf32> to vector<8x1xf32>
    %326 = tpu.reciprocal %325 {approx = true} : vector<8x1xf32> -> vector<8x1xf32>
    %327 = vector.broadcast %326 : vector<8x1xf32> to vector<8x8xf32>
    %328 = arith.mulf %323, %327 : vector<8x8xf32>
    %cst_152 = arith.constant dense<0.000000e+00> : vector<8x8xf32>
    %329 = tpu.matmul %328, %314, %cst_152 {dimension_numbers = #tpu.dot_dimension_numbers<[1], [0], [0], [1], [0, 0, 1, 1], [], []>} : vector<8x8xf32>, vector<8x8xf32>, vector<8x8xf32> -> vector<8x8xf32>
    %c0_153 = arith.constant 0 : index
    %c24_154 = arith.constant 24 : index
    %c0_155 = arith.constant 0 : index
    %330 = vector.load %arg36[%c0_153, %c24_154, %c0_155] : memref<1x32x32xf32, #tpu.memory_space<vmem>>, vector<1x8x32xf32>
    %331 = vector.shape_cast %330 : vector<1x8x32xf32> to vector<8x32xf32>
    %cst_156 = arith.constant dense<0.000000e+00> : vector<8x32xf32>
    %332 = tpu.matmul %329, %331, %cst_156 {dimension_numbers = #tpu.dot_dimension_numbers<[1], [0], [0], [1], [0, 0, 1, 1], [], []>} : vector<8x8xf32>, vector<8x32xf32>, vector<8x32xf32> -> vector<8x32xf32>
    %333 = arith.addf %311, %332 : vector<8x32xf32>
    %334 = arith.addf %209, %333 : vector<8x32xf32>
    %cst_157 = arith.constant dense<0.000000e+00> : vector<8xf32>
    %335 = vector.multi_reduction <add>, %334, %cst_157 [1] : vector<8x32xf32> to vector<8xf32>
    %336 = vector.shape_cast %335 : vector<8xf32> to vector<8x1xf32>
    %cst_158 = arith.constant 3.200000e+01 : f32
    %337 = vector.broadcast %cst_158 : f32 to vector<8x1xf32>
    %338 = arith.divf %336, %337 : vector<8x1xf32>
    %339 = vector.broadcast %338 : vector<8x1xf32> to vector<8x32xf32>
    %340 = arith.subf %334, %339 : vector<8x32xf32>
    %341 = arith.mulf %340, %340 : vector<8x32xf32>
    %cst_159 = arith.constant dense<0.000000e+00> : vector<8xf32>
    %342 = vector.multi_reduction <add>, %341, %cst_159 [1] : vector<8x32xf32> to vector<8xf32>
    %343 = vector.shape_cast %342 : vector<8xf32> to vector<8x1xf32>
    %cst_160 = arith.constant 3.200000e+01 : f32
    %344 = vector.broadcast %cst_160 : f32 to vector<8x1xf32>
    %345 = arith.divf %343, %344 : vector<8x1xf32>
    %cst_161 = arith.constant 9.99999974E-6 : f32
    %346 = vector.broadcast %cst_161 : f32 to vector<8x1xf32>
    %347 = arith.addf %345, %346 : vector<8x1xf32>
    %348 = math.rsqrt %347 : vector<8x1xf32>
    %349 = vector.broadcast %348 : vector<8x1xf32> to vector<8x32xf32>
    %350 = arith.mulf %340, %349 : vector<8x32xf32>
    %c0_162 = arith.constant 0 : index
    %c0_163 = arith.constant 0 : index
    %c0_164 = arith.constant 0 : index
    %351 = vector.load %arg30[%c0_162, %c0_163, %c0_164] : memref<1x1x32xf32, #tpu.memory_space<vmem>>, vector<1x1x32xf32>
    %352 = vector.shape_cast %351 : vector<1x1x32xf32> to vector<1x32xf32>
    %353 = vector.broadcast %352 : vector<1x32xf32> to vector<8x32xf32>
    %354 = arith.mulf %350, %353 : vector<8x32xf32>
    %c0_165 = arith.constant 0 : index
    %c0_166 = arith.constant 0 : index
    %c0_167 = arith.constant 0 : index
    %355 = vector.load %arg29[%c0_165, %c0_166, %c0_167] : memref<1x1x32xf32, #tpu.memory_space<vmem>>, vector<1x1x32xf32>
    %356 = vector.shape_cast %355 : vector<1x1x32xf32> to vector<1x32xf32>
    %357 = vector.broadcast %356 : vector<1x32xf32> to vector<8x32xf32>
    %358 = arith.addf %354, %357 : vector<8x32xf32>
    %c0_168 = arith.constant 0 : index
    %c0_169 = arith.constant 0 : index
    %c0_170 = arith.constant 0 : index
    %359 = vector.load %arg32[%c0_168, %c0_169, %c0_170] : memref<1x32x128xf32, #tpu.memory_space<vmem>>, vector<1x32x128xf32>
    %360 = vector.shape_cast %359 : vector<1x32x128xf32> to vector<32x128xf32>
    %cst_171 = arith.constant dense<0.000000e+00> : vector<8x128xf32>
    %361 = tpu.matmul %358, %360, %cst_171 {dimension_numbers = #tpu.dot_dimension_numbers<[1], [0], [0], [1], [0, 0, 1, 1], [], []>} : vector<8x32xf32>, vector<32x128xf32>, vector<8x128xf32> -> vector<8x128xf32>
    %c0_172 = arith.constant 0 : index
    %c0_173 = arith.constant 0 : index
    %c0_174 = arith.constant 0 : index
    %362 = vector.load %arg31[%c0_172, %c0_173, %c0_174] : memref<1x1x128xf32, #tpu.memory_space<vmem>>, vector<1x1x128xf32>
    %363 = vector.shape_cast %362 : vector<1x1x128xf32> to vector<1x128xf32>
    %364 = vector.broadcast %363 : vector<1x128xf32> to vector<8x128xf32>
    %365 = arith.addf %361, %364 : vector<8x128xf32>
    %366 = arith.mulf %365, %365 : vector<8x128xf32>
    %367 = arith.mulf %365, %366 : vector<8x128xf32>
    %cst_175 = arith.constant 4.471500e-02 : f32
    %368 = vector.broadcast %cst_175 : f32 to vector<8x128xf32>
    %369 = arith.mulf %368, %367 : vector<8x128xf32>
    %370 = arith.addf %365, %369 : vector<8x128xf32>
    %cst_176 = arith.constant 0.797884583 : f32
    %371 = vector.broadcast %cst_176 : f32 to vector<8x128xf32>
    %372 = arith.mulf %371, %370 : vector<8x128xf32>
    %373 = math.tanh %372 : vector<8x128xf32>
    %cst_177 = arith.constant 1.000000e+00 : f32
    %374 = vector.broadcast %cst_177 : f32 to vector<8x128xf32>
    %375 = arith.addf %374, %373 : vector<8x128xf32>
    %cst_178 = arith.constant 5.000000e-01 : f32
    %376 = vector.broadcast %cst_178 : f32 to vector<8x128xf32>
    %377 = arith.mulf %376, %375 : vector<8x128xf32>
    %378 = arith.mulf %365, %377 : vector<8x128xf32>
    %c0_179 = arith.constant 0 : index
    %c0_180 = arith.constant 0 : index
    %c0_181 = arith.constant 0 : index
    %379 = vector.load %arg34[%c0_179, %c0_180, %c0_181] : memref<1x128x32xf32, #tpu.memory_space<vmem>>, vector<1x128x32xf32>
    %380 = vector.shape_cast %379 : vector<1x128x32xf32> to vector<128x32xf32>
    %cst_182 = arith.constant dense<0.000000e+00> : vector<8x32xf32>
    %381 = tpu.matmul %378, %380, %cst_182 {dimension_numbers = #tpu.dot_dimension_numbers<[1], [0], [0], [1], [0, 0, 1, 1], [], []>} : vector<8x128xf32>, vector<128x32xf32>, vector<8x32xf32> -> vector<8x32xf32>
    %c0_183 = arith.constant 0 : index
    %c0_184 = arith.constant 0 : index
    %c0_185 = arith.constant 0 : index
    %382 = vector.load %arg33[%c0_183, %c0_184, %c0_185] : memref<1x1x32xf32, #tpu.memory_space<vmem>>, vector<1x1x32xf32>
    %383 = vector.shape_cast %382 : vector<1x1x32xf32> to vector<1x32xf32>
    %384 = vector.broadcast %383 : vector<1x32xf32> to vector<8x32xf32>
    %385 = arith.addf %381, %384 : vector<8x32xf32>
    %386 = arith.addf %334, %385 : vector<8x32xf32>
    %cst_186 = arith.constant dense<0.000000e+00> : vector<8xf32>
    %387 = vector.multi_reduction <add>, %386, %cst_186 [1] : vector<8x32xf32> to vector<8xf32>
    %388 = vector.shape_cast %387 : vector<8xf32> to vector<8x1xf32>
    %cst_187 = arith.constant 3.200000e+01 : f32
    %389 = vector.broadcast %cst_187 : f32 to vector<8x1xf32>
    %390 = arith.divf %388, %389 : vector<8x1xf32>
    %391 = vector.broadcast %390 : vector<8x1xf32> to vector<8x32xf32>
    %392 = arith.subf %386, %391 : vector<8x32xf32>
    %393 = arith.mulf %392, %392 : vector<8x32xf32>
    %cst_188 = arith.constant dense<0.000000e+00> : vector<8xf32>
    %394 = vector.multi_reduction <add>, %393, %cst_188 [1] : vector<8x32xf32> to vector<8xf32>
    %395 = vector.shape_cast %394 : vector<8xf32> to vector<8x1xf32>
    %cst_189 = arith.constant 3.200000e+01 : f32
    %396 = vector.broadcast %cst_189 : f32 to vector<8x1xf32>
    %397 = arith.divf %395, %396 : vector<8x1xf32>
    %cst_190 = arith.constant 9.99999974E-6 : f32
    %398 = vector.broadcast %cst_190 : f32 to vector<8x1xf32>
    %399 = arith.addf %397, %398 : vector<8x1xf32>
    %400 = math.rsqrt %399 : vector<8x1xf32>
    %401 = vector.broadcast %400 : vector<8x1xf32> to vector<8x32xf32>
    %402 = arith.mulf %392, %401 : vector<8x32xf32>
    %c0_191 = arith.constant 0 : index
    %c0_192 = arith.constant 0 : index
    %c0_193 = arith.constant 0 : index
    %403 = vector.load %arg6[%c0_191, %c0_192, %c0_193] : memref<1x1x32xf32, #tpu.memory_space<vmem>>, vector<1x1x32xf32>
    %404 = vector.shape_cast %403 : vector<1x1x32xf32> to vector<1x32xf32>
    %405 = vector.broadcast %404 : vector<1x32xf32> to vector<8x32xf32>
    %406 = arith.mulf %402, %405 : vector<8x32xf32>
    %c0_194 = arith.constant 0 : index
    %c0_195 = arith.constant 0 : index
    %c0_196 = arith.constant 0 : index
    %407 = vector.load %arg5[%c0_194, %c0_195, %c0_196] : memref<1x1x32xf32, #tpu.memory_space<vmem>>, vector<1x1x32xf32>
    %408 = vector.shape_cast %407 : vector<1x1x32xf32> to vector<1x32xf32>
    %409 = vector.broadcast %408 : vector<1x32xf32> to vector<8x32xf32>
    %410 = arith.addf %406, %409 : vector<8x32xf32>
    %cst_197 = arith.constant dense<0.000000e+00> : vector<32xf32>
    %411 = vector.multi_reduction <add>, %410, %cst_197 [0] : vector<8x32xf32> to vector<32xf32>
    %412 = vector.shape_cast %411 : vector<32xf32> to vector<1x32xf32>
    %cst_198 = arith.constant 8.000000e+00 : f32
    %413 = vector.broadcast %cst_198 : f32 to vector<1x32xf32>
    %414 = arith.divf %412, %413 : vector<1x32xf32>
    %c0_199 = arith.constant 0 : index
    %c0_200 = arith.constant 0 : index
    %c0_201 = arith.constant 0 : index
    %415 = vector.load %arg10[%c0_199, %c0_200, %c0_201] : memref<1x32x32xf32, #tpu.memory_space<vmem>>, vector<1x32x32xf32>
    %416 = vector.shape_cast %415 : vector<1x32x32xf32> to vector<32x32xf32>
    %cst_202 = arith.constant dense<0.000000e+00> : vector<1x32xf32>
    %417 = tpu.matmul %414, %416, %cst_202 {dimension_numbers = #tpu.dot_dimension_numbers<[1], [0], [0], [1], [0, 0, 1, 1], [], []>} : vector<1x32xf32>, vector<32x32xf32>, vector<1x32xf32> -> vector<1x32xf32>
    %c0_203 = arith.constant 0 : index
    %c0_204 = arith.constant 0 : index
    %c0_205 = arith.constant 0 : index
    %418 = vector.load %arg9[%c0_203, %c0_204, %c0_205] : memref<1x1x32xf32, #tpu.memory_space<vmem>>, vector<1x1x32xf32>
    %419 = vector.shape_cast %418 : vector<1x1x32xf32> to vector<1x32xf32>
    %420 = arith.addf %417, %419 : vector<1x32xf32>
    %421 = arith.mulf %420, %420 : vector<1x32xf32>
    %422 = arith.mulf %420, %421 : vector<1x32xf32>
    %cst_206 = arith.constant 4.471500e-02 : f32
    %423 = vector.broadcast %cst_206 : f32 to vector<1x32xf32>
    %424 = arith.mulf %423, %422 : vector<1x32xf32>
    %425 = arith.addf %420, %424 : vector<1x32xf32>
    %cst_207 = arith.constant 0.797884583 : f32
    %426 = vector.broadcast %cst_207 : f32 to vector<1x32xf32>
    %427 = arith.mulf %426, %425 : vector<1x32xf32>
    %428 = math.tanh %427 : vector<1x32xf32>
    %cst_208 = arith.constant 1.000000e+00 : f32
    %429 = vector.broadcast %cst_208 : f32 to vector<1x32xf32>
    %430 = arith.addf %429, %428 : vector<1x32xf32>
    %cst_209 = arith.constant 5.000000e-01 : f32
    %431 = vector.broadcast %cst_209 : f32 to vector<1x32xf32>
    %432 = arith.mulf %431, %430 : vector<1x32xf32>
    %433 = arith.mulf %420, %432 : vector<1x32xf32>
    %c0_210 = arith.constant 0 : index
    %c0_211 = arith.constant 0 : index
    %c0_212 = arith.constant 0 : index
    %434 = vector.load %arg12[%c0_210, %c0_211, %c0_212] : memref<1x32x32xf32, #tpu.memory_space<vmem>>, vector<1x32x32xf32>
    %435 = vector.shape_cast %434 : vector<1x32x32xf32> to vector<32x32xf32>
    %cst_213 = arith.constant dense<0.000000e+00> : vector<1x32xf32>
    %436 = tpu.matmul %433, %435, %cst_213 {dimension_numbers = #tpu.dot_dimension_numbers<[1], [0], [0], [1], [0, 0, 1, 1], [], []>} : vector<1x32xf32>, vector<32x32xf32>, vector<1x32xf32> -> vector<1x32xf32>
    %c0_214 = arith.constant 0 : index
    %c0_215 = arith.constant 0 : index
    %c0_216 = arith.constant 0 : index
    %437 = vector.load %arg11[%c0_214, %c0_215, %c0_216] : memref<1x1x32xf32, #tpu.memory_space<vmem>>, vector<1x1x32xf32>
    %438 = vector.shape_cast %437 : vector<1x1x32xf32> to vector<1x32xf32>
    %439 = arith.addf %436, %438 : vector<1x32xf32>
    %440 = arith.mulf %439, %439 : vector<1x32xf32>
    %441 = arith.mulf %439, %440 : vector<1x32xf32>
    %cst_217 = arith.constant 4.471500e-02 : f32
    %442 = vector.broadcast %cst_217 : f32 to vector<1x32xf32>
    %443 = arith.mulf %442, %441 : vector<1x32xf32>
    %444 = arith.addf %439, %443 : vector<1x32xf32>
    %cst_218 = arith.constant 0.797884583 : f32
    %445 = vector.broadcast %cst_218 : f32 to vector<1x32xf32>
    %446 = arith.mulf %445, %444 : vector<1x32xf32>
    %447 = math.tanh %446 : vector<1x32xf32>
    %cst_219 = arith.constant 1.000000e+00 : f32
    %448 = vector.broadcast %cst_219 : f32 to vector<1x32xf32>
    %449 = arith.addf %448, %447 : vector<1x32xf32>
    %cst_220 = arith.constant 5.000000e-01 : f32
    %450 = vector.broadcast %cst_220 : f32 to vector<1x32xf32>
    %451 = arith.mulf %450, %449 : vector<1x32xf32>
    %452 = arith.mulf %439, %451 : vector<1x32xf32>
    %c0_221 = arith.constant 0 : index
    %c0_222 = arith.constant 0 : index
    %c0_223 = arith.constant 0 : index
    %453 = vector.load %arg14[%c0_221, %c0_222, %c0_223] : memref<1x32x16xf32, #tpu.memory_space<vmem>>, vector<1x32x16xf32>
    %454 = vector.shape_cast %453 : vector<1x32x16xf32> to vector<32x16xf32>
    %cst_224 = arith.constant dense<0.000000e+00> : vector<1x16xf32>
    %455 = tpu.matmul %452, %454, %cst_224 {dimension_numbers = #tpu.dot_dimension_numbers<[1], [0], [0], [1], [0, 0, 1, 1], [], []>} : vector<1x32xf32>, vector<32x16xf32>, vector<1x16xf32> -> vector<1x16xf32>
    %c0_225 = arith.constant 0 : index
    %c0_226 = arith.constant 0 : index
    %c0_227 = arith.constant 0 : index
    %456 = vector.load %arg13[%c0_225, %c0_226, %c0_227] : memref<1x1x16xf32, #tpu.memory_space<vmem>>, vector<1x1x16xf32>
    %457 = vector.shape_cast %456 : vector<1x1x16xf32> to vector<1x16xf32>
    %458 = arith.addf %455, %457 : vector<1x16xf32>
    %459 = arith.mulf %458, %458 : vector<1x16xf32>
    %cst_228 = arith.constant dense<0.000000e+00> : vector<1xf32>
    %460 = vector.multi_reduction <add>, %459, %cst_228 [1] : vector<1x16xf32> to vector<1xf32>
    %461 = vector.shape_cast %460 : vector<1xf32> to vector<1x1xf32>
    %462 = math.sqrt %461 : vector<1x1xf32>
    %cst_229 = arith.constant 9.99999996E-13 : f32
    %463 = vector.broadcast %cst_229 : f32 to vector<1x1xf32>
    %464 = arith.maximumf %462, %463 : vector<1x1xf32>
    %465 = tpu.reciprocal %464 {approx = true} : vector<1x1xf32> -> vector<1x1xf32>
    %466 = vector.broadcast %465 : vector<1x1xf32> to vector<1x16xf32>
    %467 = arith.mulf %458, %466 : vector<1x16xf32>
    %c0_230 = arith.constant 0 : index
    %c0_231 = arith.constant 0 : index
    %c0_232 = arith.constant 0 : index
    %468 = vector.load %arg8[%c0_230, %c0_231, %c0_232] : memref<1x16x32xf32, #tpu.memory_space<vmem>>, vector<1x16x32xf32>
    %469 = vector.shape_cast %468 : vector<1x16x32xf32> to vector<16x32xf32>
    %cst_233 = arith.constant dense<0.000000e+00> : vector<1x32xf32>
    %470 = tpu.matmul %467, %469, %cst_233 {dimension_numbers = #tpu.dot_dimension_numbers<[1], [0], [0], [1], [0, 0, 1, 1], [], []>} : vector<1x16xf32>, vector<16x32xf32>, vector<1x32xf32> -> vector<1x32xf32>
    %c0_234 = arith.constant 0 : index
    %c0_235 = arith.constant 0 : index
    %c0_236 = arith.constant 0 : index
    %471 = vector.load %arg7[%c0_234, %c0_235, %c0_236] : memref<1x1x32xf32, #tpu.memory_space<vmem>>, vector<1x1x32xf32>
    %472 = vector.shape_cast %471 : vector<1x1x32xf32> to vector<1x32xf32>
    %473 = arith.addf %470, %472 : vector<1x32xf32>
    %c0_237 = arith.constant 0 : index
    %c0_238 = arith.constant 0 : index
    %c0_239 = arith.constant 0 : index
    %474 = vector.load %arg39[%c0_237, %c0_238, %c0_239] : memref<1x1x32xf32, #tpu.memory_space<vmem>>, vector<1x1x32xf32>
    %475 = vector.shape_cast %474 : vector<1x1x32xf32> to vector<1x32xf32>
    %476 = vector.shape_cast %473 : vector<1x32xf32> to vector<1x1x32xf32>
    tpu.vector_store %arg39[%c0_237, %c0_238, %c0_239], %476 {strides = array<i32>} : memref<1x1x32xf32, #tpu.memory_space<vmem>>, vector<1x1x32xf32>,
    return
  }
  func.func @transform_0(%arg0: i32) -> (i32, i32) {
    %c0_i32 = arith.constant 0 : i32
    %c0_i32_0 = arith.constant 0 : i32
    %c0_i32_1 = arith.constant 0 : i32
    return %c0_i32, %c0_i32_0 : i32, i32
  }
  func.func @transform_1(%arg0: i32) -> (i32, i32) {
    %c0_i32 = arith.constant 0 : i32
    %c0_i32_0 = arith.constant 0 : i32
    %c0_i32_1 = arith.constant 0 : i32
    return %c0_i32, %c0_i32_0 : i32, i32
  }
  func.func @transform_2(%arg0: i32) -> (i32, i32, i32) {
    %c0_i32 = arith.constant 0 : i32
    %c0_i32_0 = arith.constant 0 : i32
    %c0_i32_1 = arith.constant 0 : i32
    return %arg0, %c0_i32, %c0_i32_0 : i32, i32, i32
  }
  func.func @transform_3(%arg0: i32) -> (i32, i32, i32) {
    %c0_i32 = arith.constant 0 : i32
    %c0_i32_0 = arith.constant 0 : i32
    %c0_i32_1 = arith.constant 0 : i32
    return %arg0, %c0_i32, %c0_i32_0 : i32, i32, i32
  }
  func.func @transform_4(%arg0: i32) -> (i32, i32, i32) {
    %c0_i32 = arith.constant 0 : i32
    %c0_i32_0 = arith.constant 0 : i32
    %c0_i32_1 = arith.constant 0 : i32
    return %arg0, %c0_i32, %c0_i32_0 : i32, i32, i32
  }
  func.func @transform_5(%arg0: i32) -> (i32, i32, i32) {
    %c0_i32 = arith.constant 0 : i32
    %c0_i32_0 = arith.constant 0 : i32
    %c0_i32_1 = arith.constant 0 : i32
    return %arg0, %c0_i32, %c0_i32_0 : i32, i32, i32
  }
  func.func @transform_6(%arg0: i32) -> (i32, i32, i32) {
    %c0_i32 = arith.constant 0 : i32
    %c0_i32_0 = arith.constant 0 : i32
    %c0_i32_1 = arith.constant 0 : i32
    return %arg0, %c0_i32, %c0_i32_0 : i32, i32, i32
  }
  func.func @transform_7(%arg0: i32) -> (i32, i32, i32) {
    %c0_i32 = arith.constant 0 : i32
    %c0_i32_0 = arith.constant 0 : i32
    %c0_i32_1 = arith.constant 0 : i32
    return %arg0, %c0_i32, %c0_i32_0 : i32, i32, i32
  }
  func.func @transform_8(%arg0: i32) -> (i32, i32, i32) {
    %c0_i32 = arith.constant 0 : i32
    %c0_i32_0 = arith.constant 0 : i32
    %c0_i32_1 = arith.constant 0 : i32
    return %arg0, %c0_i32, %c0_i32_0 : i32, i32, i32
  }
  func.func @transform_9(%arg0: i32) -> (i32, i32, i32) {
    %c0_i32 = arith.constant 0 : i32
    %c0_i32_0 = arith.constant 0 : i32
    %c0_i32_1 = arith.constant 0 : i32
    return %arg0, %c0_i32, %c0_i32_0 : i32, i32, i32
  }
  func.func @transform_10(%arg0: i32) -> (i32, i32, i32) {
    %c0_i32 = arith.constant 0 : i32
    %c0_i32_0 = arith.constant 0 : i32
    %c0_i32_1 = arith.constant 0 : i32
    return %arg0, %c0_i32, %c0_i32_0 : i32, i32, i32
  }
  func.func @transform_11(%arg0: i32) -> (i32, i32, i32) {
    %c0_i32 = arith.constant 0 : i32
    %c0_i32_0 = arith.constant 0 : i32
    %c0_i32_1 = arith.constant 0 : i32
    return %arg0, %c0_i32, %c0_i32_0 : i32, i32, i32
  }
  func.func @transform_12(%arg0: i32) -> (i32, i32, i32) {
    %c0_i32 = arith.constant 0 : i32
    %c0_i32_0 = arith.constant 0 : i32
    %c0_i32_1 = arith.constant 0 : i32
    return %arg0, %c0_i32, %c0_i32_0 : i32, i32, i32
  }
  func.func @transform_13(%arg0: i32) -> (i32, i32, i32) {
    %c0_i32 = arith.constant 0 : i32
    %c0_i32_0 = arith.constant 0 : i32
    %c0_i32_1 = arith.constant 0 : i32
    return %arg0, %c0_i32, %c0_i32_0 : i32, i32, i32
  }
  func.func @transform_14(%arg0: i32) -> (i32, i32, i32) {
    %c0_i32 = arith.constant 0 : i32
    %c0_i32_0 = arith.constant 0 : i32
    %c0_i32_1 = arith.constant 0 : i32
    return %arg0, %c0_i32, %c0_i32_0 : i32, i32, i32
  }
  func.func @transform_15(%arg0: i32) -> (i32, i32, i32) {
    %c0_i32 = arith.constant 0 : i32
    %c0_i32_0 = arith.constant 0 : i32
    %c0_i32_1 = arith.constant 0 : i32
    return %arg0, %c0_i32, %c0_i32_0 : i32, i32, i32
  }
  func.func @transform_16(%arg0: i32) -> (i32, i32, i32) {
    %c0_i32 = arith.constant 0 : i32
    %c0_i32_0 = arith.constant 0 : i32
    %c0_i32_1 = arith.constant 0 : i32
    return %arg0, %c0_i32, %c0_i32_0 : i32, i32, i32
  }
  func.func @transform_17(%arg0: i32) -> (i32, i32, i32) {
    %c0_i32 = arith.constant 0 : i32
    %c0_i32_0 = arith.constant 0 : i32
    %c0_i32_1 = arith.constant 0 : i32
    return %arg0, %c0_i32, %c0_i32_0 : i32, i32, i32
  }
  func.func @transform_18(%arg0: i32) -> (i32, i32, i32) {
    %c0_i32 = arith.constant 0 : i32
    %c0_i32_0 = arith.constant 0 : i32
    %c0_i32_1 = arith.constant 0 : i32
    return %arg0, %c0_i32, %c0_i32_0 : i32, i32, i32
  }
  func.func @transform_19(%arg0: i32) -> (i32, i32, i32) {
    %c0_i32 = arith.constant 0 : i32
    %c0_i32_0 = arith.constant 0 : i32
    %c0_i32_1 = arith.constant 0 : i32
    return %arg0, %c0_i32, %c0_i32_0 : i32, i32, i32
  }
  func.func @transform_20(%arg0: i32) -> (i32, i32, i32) {
    %c0_i32 = arith.constant 0 : i32
    %c0_i32_0 = arith.constant 0 : i32
    %c0_i32_1 = arith.constant 0 : i32
    return %arg0, %c0_i32, %c0_i32_0 : i32, i32, i32
  }
  func.func @transform_21(%arg0: i32) -> (i32, i32, i32) {
    %c0_i32 = arith.constant 0 : i32
    %c0_i32_0 = arith.constant 0 : i32
    %c0_i32_1 = arith.constant 0 : i32
    return %arg0, %c0_i32, %c0_i32_0 : i32, i32, i32
  }
  func.func @transform_22(%arg0: i32) -> (i32, i32, i32) {
    %c0_i32 = arith.constant 0 : i32
    %c0_i32_0 = arith.constant 0 : i32
    %c0_i32_1 = arith.constant 0 : i32
    return %arg0, %c0_i32, %c0_i32_0 : i32, i32, i32
  }
  func.func @transform_23(%arg0: i32) -> (i32, i32, i32) {
    %c0_i32 = arith.constant 0 : i32
    %c0_i32_0 = arith.constant 0 : i32
    %c0_i32_1 = arith.constant 0 : i32
    return %arg0, %c0_i32, %c0_i32_0 : i32, i32, i32
  }
  func.func @transform_24(%arg0: i32) -> (i32, i32, i32) {
    %c0_i32 = arith.constant 0 : i32
    %c0_i32_0 = arith.constant 0 : i32
    %c0_i32_1 = arith.constant 0 : i32
    return %arg0, %c0_i32, %c0_i32_0 : i32, i32, i32
  }
  func.func @transform_25(%arg0: i32) -> (i32, i32, i32) {
    %c0_i32 = arith.constant 0 : i32
    %c0_i32_0 = arith.constant 0 : i32
    %c0_i32_1 = arith.constant 0 : i32
    return %arg0, %c0_i32, %c0_i32_0 : i32, i32, i32
  }
  func.func @transform_26(%arg0: i32) -> (i32, i32, i32) {
    %c0_i32 = arith.constant 0 : i32
    %c0_i32_0 = arith.constant 0 : i32
    %c0_i32_1 = arith.constant 0 : i32
    return %arg0, %c0_i32, %c0_i32_0 : i32, i32, i32
  }
  func.func @transform_27(%arg0: i32) -> (i32, i32, i32) {
    %c0_i32 = arith.constant 0 : i32
    %c0_i32_0 = arith.constant 0 : i32
    %c0_i32_1 = arith.constant 0 : i32
    return %arg0, %c0_i32, %c0_i32_0 : i32, i32, i32
  }
  func.func @transform_28(%arg0: i32) -> (i32, i32, i32) {
    %c0_i32 = arith.constant 0 : i32
    %c0_i32_0 = arith.constant 0 : i32
    %c0_i32_1 = arith.constant 0 : i32
    return %arg0, %c0_i32, %c0_i32_0 : i32, i32, i32
  }
  func.func @transform_29(%arg0: i32) -> (i32, i32, i32) {
    %c0_i32 = arith.constant 0 : i32
    %c0_i32_0 = arith.constant 0 : i32
    %c0_i32_1 = arith.constant 0 : i32
    return %arg0, %c0_i32, %c0_i32_0 : i32, i32, i32
  }
  func.func @transform_30(%arg0: i32) -> (i32, i32, i32) {
    %c0_i32 = arith.constant 0 : i32
    %c0_i32_0 = arith.constant 0 : i32
    %c0_i32_1 = arith.constant 0 : i32
    return %arg0, %c0_i32, %c0_i32_0 : i32, i32, i32
  }
  func.func @transform_31(%arg0: i32) -> (i32, i32, i32) {
    %c0_i32 = arith.constant 0 : i32
    %c0_i32_0 = arith.constant 0 : i32
    %c0_i32_1 = arith.constant 0 : i32
    return %arg0, %c0_i32, %c0_i32_0 : i32, i32, i32
  }
  func.func @transform_32(%arg0: i32) -> (i32, i32, i32) {
    %c0_i32 = arith.constant 0 : i32
    %c0_i32_0 = arith.constant 0 : i32
    %c0_i32_1 = arith.constant 0 : i32
    return %arg0, %c0_i32, %c0_i32_0 : i32, i32, i32
  }
  func.func @transform_33(%arg0: i32) -> (i32, i32, i32) {
    %c0_i32 = arith.constant 0 : i32
    %c0_i32_0 = arith.constant 0 : i32
    %c0_i32_1 = arith.constant 0 : i32
    return %arg0, %c0_i32, %c0_i32_0 : i32, i32, i32
  }
  func.func @transform_34(%arg0: i32) -> (i32, i32, i32) {
    %c0_i32 = arith.constant 0 : i32
    %c0_i32_0 = arith.constant 0 : i32
    %c0_i32_1 = arith.constant 0 : i32
    return %arg0, %c0_i32, %c0_i32_0 : i32, i32, i32
  }
  func.func @transform_35(%arg0: i32) -> (i32, i32, i32) {
    %c0_i32 = arith.constant 0 : i32
    %c0_i32_0 = arith.constant 0 : i32
    %c0_i32_1 = arith.constant 0 : i32
    return %arg0, %c0_i32, %c0_i32_0 : i32, i32, i32
  }
  func.func @transform_36(%arg0: i32) -> (i32, i32, i32) {
    %c0_i32 = arith.constant 0 : i32
    %c0_i32_0 = arith.constant 0 : i32
    %c0_i32_1 = arith.constant 0 : i32
    return %arg0, %c0_i32, %c0_i32_0 : i32, i32, i32
  }
  func.func @transform_37(%arg0: i32) -> (i32, i32, i32) {
    %c0_i32 = arith.constant 0 : i32
    %c0_i32_0 = arith.constant 0 : i32
    %c0_i32_1 = arith.constant 0 : i32
    return %arg0, %c0_i32, %c0_i32_0 : i32, i32, i32
  }
  func.func @transform_38(%arg0: i32) -> (i32, i32, i32) {
    %c0_i32 = arith.constant 0 : i32
    %c0_i32_0 = arith.constant 0 : i32
    %c0_i32_1 = arith.constant 0 : i32
    return %arg0, %c0_i32, %c0_i32_0 : i32, i32, i32
  }
}

</mosaic_0001>

<llo_original>
// kernel: tpu_custom_call.1
$region0: #{tpu_custom_call.1}
  #allocation0 [shape = 'u32[]', space=smem, size = 0x4, offset = 0x4, fixed_abs, tag = 'smem constant byte address 0x4 - core index']
  #allocation1 [shape = 'u32[144,128]{1,0:T(1,128)}', space=vmem, size = 0x12000, scoped, tag = 'internal scratch']
  %s0 = inlined_call_operand.smem [shape: u32[39], index: -1, kind: input, shape index: {}]
  %s1 = sld [smem:[%s0]]
  %s2 = scalar_lea.smem %s0, 1
  %s3 = sld [smem:[%s2]]
  %s4 = scalar_lea.smem %s0, 2
  %s5 = sld [smem:[%s4]]
  %s6 = scalar_lea.smem %s0, 3
  %s7 = sld [smem:[%s6]]
  %s8 = scalar_lea.smem %s0, 4
  %s9 = sld [smem:[%s8]]
  %s10 = scalar_lea.smem %s0, 5
  %s11 = sld [smem:[%s10]]
  %s12 = scalar_lea.smem %s0, 6
  %s13 = sld [smem:[%s12]]
  %s14 = scalar_lea.smem %s0, 7
  %s15 = sld [smem:[%s14]]
  %s16 = scalar_lea.smem %s0, 8
  %s17 = sld [smem:[%s16]]
  %s18 = scalar_lea.smem %s0, 9
  %s19 = sld [smem:[%s18]]
  %s20 = scalar_lea.smem %s0, 10
  %s21 = sld [smem:[%s20]]
  %s22 = scalar_lea.smem %s0, 11
  %s23 = sld [smem:[%s22]]
  %s24 = scalar_lea.smem %s0, 12
  %s25 = sld [smem:[%s24]]
  %s26 = scalar_lea.smem %s0, 13
  %s27 = sld [smem:[%s26]]
  %s28 = scalar_lea.smem %s0, 14
  %s29 = sld [smem:[%s28]]
  %s30 = scalar_lea.smem %s0, 15
  %s31 = sld [smem:[%s30]]
  %s32 = scalar_lea.smem %s0, 16
  %s33 = sld [smem:[%s32]]
  %s34 = scalar_lea.smem %s0, 17
  %s35 = sld [smem:[%s34]]
  %s36 = scalar_lea.smem %s0, 18
  %s37 = sld [smem:[%s36]]
  %s38 = scalar_lea.smem %s0, 19
  %s39 = sld [smem:[%s38]]
  %s40 = scalar_lea.smem %s0, 20
  %s41 = sld [smem:[%s40]]
  %s42 = scalar_lea.smem %s0, 21
  %s43 = sld [smem:[%s42]]
  %s44 = scalar_lea.smem %s0, 22
  %s45 = sld [smem:[%s44]]
  %s46 = scalar_lea.smem %s0, 23
  %s47 = sld [smem:[%s46]]
  %s48 = scalar_lea.smem %s0, 24
  %s49 = sld [smem:[%s48]]
  %s50 = scalar_lea.smem %s0, 25
  %s51 = sld [smem:[%s50]]
  %s52 = scalar_lea.smem %s0, 26
  %s53 = sld [smem:[%s52]]
  %s54 = scalar_lea.smem %s0, 27
  %s55 = sld [smem:[%s54]]
  %s56 = scalar_lea.smem %s0, 28
  %s57 = sld [smem:[%s56]]
  %s58 = scalar_lea.smem %s0, 29
  %s59 = sld [smem:[%s58]]
  %s60 = scalar_lea.smem %s0, 30
  %s61 = sld [smem:[%s60]]
  %s62 = scalar_lea.smem %s0, 31
  %s63 = sld [smem:[%s62]]
  %s64 = scalar_lea.smem %s0, 32
  %s65 = sld [smem:[%s64]]
  %s66 = scalar_lea.smem %s0, 33
  %s67 = sld [smem:[%s66]]
  %s68 = scalar_lea.smem %s0, 34
  %s69 = sld [smem:[%s68]]
  %s70 = scalar_lea.smem %s0, 35
  %s71 = sld [smem:[%s70]]
  %s72 = scalar_lea.smem %s0, 36
  %s73 = sld [smem:[%s72]]
  %s74 = scalar_lea.smem %s0, 37
  %s75 = sld [smem:[%s74]]
  %s76 = scalar_lea.smem %s0, 38
  %s77 = sld [smem:[%s76]]
  %s78 = sld [smem:[#allocation0]]
  $region162: #{tpu_custom_call.1} parent=0
    _
  %s80 = ssub.s32 1, %s78
  %s81 = scalar_select 0, %s80, %s78
  $region1: #{tpu_custom_call.1} parent=0
    #allocation2 [shape = 'u8[512]{0}', space=vmem, size = 0x400, scoped, tag = 'output window, operand 0, single buffered']
    #allocation3 [shape = 's32[1]{0}', space=sflag, size = 0x4, scoped, tag = 'scoped memory for tpu_custom_call.1']
    %82 = vsyncpa [#allocation3], 0
    // Predicated region
    $region2: #{tpu_custom_call.1} parent=1 // pred_check
      _
    $region3: #{tpu_custom_call.1} parent=1 // pred_check_branch
      %84 = sbr.rel (0) target = $region5
    $region4: #{tpu_custom_call.1} parent=1 // pred_region
      _
    $region5: #{tpu_custom_call.1} parent=1 // pred_fallthru
      _
    // Predicated region
    $region6: #{tpu_custom_call.1} parent=1 // pred_check
      _
    $region7: #{tpu_custom_call.1} parent=1 // pred_check_branch
      %86 = sbr.rel (0) target = $region9
    $region8: #{tpu_custom_call.1} parent=1 // pred_region
      _
    $region9: #{tpu_custom_call.1} parent=1 // pred_fallthru
      _
    // Predicated region
    $region10: #{tpu_custom_call.1} parent=1 // pred_check
      _
    $region11: #{tpu_custom_call.1} parent=1 // pred_check_branch
      %88 = sbr.rel (0) target = $region13
    $region12: #{tpu_custom_call.1} parent=1 // pred_region
      _
    $region13: #{tpu_custom_call.1} parent=1 // pred_fallthru
      _
    // Predicated region
    $region14: #{tpu_custom_call.1} parent=1 // pred_check
      _
    $region15: #{tpu_custom_call.1} parent=1 // pred_check_branch
      %90 = sbr.rel (0) target = $region17
    $region16: #{tpu_custom_call.1} parent=1 // pred_region
      _
    $region17: #{tpu_custom_call.1} parent=1 // pred_fallthru
      _
    // Predicated region
    $region18: #{tpu_custom_call.1} parent=1 // pred_check
      _
    $region19: #{tpu_custom_call.1} parent=1 // pred_check_branch
      %92 = sbr.rel (0) target = $region21
    $region20: #{tpu_custom_call.1} parent=1 // pred_region
      _
    $region21: #{tpu_custom_call.1} parent=1 // pred_fallthru
      _
    // Predicated region
    $region22: #{tpu_custom_call.1} parent=1 // pred_check
      _
    $region23: #{tpu_custom_call.1} parent=1 // pred_check_branch
      %94 = sbr.rel (0) target = $region25
    $region24: #{tpu_custom_call.1} parent=1 // pred_region
      _
    $region25: #{tpu_custom_call.1} parent=1 // pred_fallthru
      _
    // Predicated region
    $region26: #{tpu_custom_call.1} parent=1 // pred_check
      _
    $region27: #{tpu_custom_call.1} parent=1 // pred_check_branch
      %96 = sbr.rel (0) target = $region29
    $region28: #{tpu_custom_call.1} parent=1 // pred_region
      _
    $region29: #{tpu_custom_call.1} parent=1 // pred_fallthru
      _
    // Predicated region
    $region30: #{tpu_custom_call.1} parent=1 // pred_check
      _
    $region31: #{tpu_custom_call.1} parent=1 // pred_check_branch
      %98 = sbr.rel (0) target = $region33
    $region32: #{tpu_custom_call.1} parent=1 // pred_region
      _
    $region33: #{tpu_custom_call.1} parent=1 // pred_fallthru
      _
    // Predicated region
    $region34: #{tpu_custom_call.1} parent=1 // pred_check
      _
    $region35: #{tpu_custom_call.1} parent=1 // pred_check_branch
      %100 = sbr.rel (0) target = $region37
    $region36: #{tpu_custom_call.1} parent=1 // pred_region
      _
    $region37: #{tpu_custom_call.1} parent=1 // pred_fallthru
      _
    // Predicated region
    $region38: #{tpu_custom_call.1} parent=1 // pred_check
      _
    $region39: #{tpu_custom_call.1} parent=1 // pred_check_branch
      %102 = sbr.rel (0) target = $region41
    $region40: #{tpu_custom_call.1} parent=1 // pred_region
      _
    $region41: #{tpu_custom_call.1} parent=1 // pred_fallthru
      _
    // Predicated region
    $region42: #{tpu_custom_call.1} parent=1 // pred_check
      _
    $region43: #{tpu_custom_call.1} parent=1 // pred_check_branch
      %104 = sbr.rel (0) target = $region45
    $region44: #{tpu_custom_call.1} parent=1 // pred_region
      _
    $region45: #{tpu_custom_call.1} parent=1 // pred_fallthru
      _
    // Predicated region
    $region46: #{tpu_custom_call.1} parent=1 // pred_check
      _
    $region47: #{tpu_custom_call.1} parent=1 // pred_check_branch
      %106 = sbr.rel (0) target = $region49
    $region48: #{tpu_custom_call.1} parent=1 // pred_region
      _
    $region49: #{tpu_custom_call.1} parent=1 // pred_fallthru
      _
    // Predicated region
    $region50: #{tpu_custom_call.1} parent=1 // pred_check
      _
    $region51: #{tpu_custom_call.1} parent=1 // pred_check_branch
      %108 = sbr.rel (0) target = $region53
    $region52: #{tpu_custom_call.1} parent=1 // pred_region
      _
    $region53: #{tpu_custom_call.1} parent=1 // pred_fallthru
      _
    // Predicated region
    $region54: #{tpu_custom_call.1} parent=1 // pred_check
      _
    $region55: #{tpu_custom_call.1} parent=1 // pred_check_branch
      %110 = sbr.rel (0) target = $region57
    $region56: #{tpu_custom_call.1} parent=1 // pred_region
      _
    $region57: #{tpu_custom_call.1} parent=1 // pred_fallthru
      _
    // Predicated region
    $region58: #{tpu_custom_call.1} parent=1 // pred_check
      _
    $region59: #{tpu_custom_call.1} parent=1 // pred_check_branch
      %112 = sbr.rel (0) target = $region61
    $region60: #{tpu_custom_call.1} parent=1 // pred_region
      _
    $region61: #{tpu_custom_call.1} parent=1 // pred_fallthru
      _
    // Predicated region
    $region62: #{tpu_custom_call.1} parent=1 // pred_check
      _
    $region63: #{tpu_custom_call.1} parent=1 // pred_check_branch
      %114 = sbr.rel (0) target = $region65
    $region64: #{tpu_custom_call.1} parent=1 // pred_region
      _
    $region65: #{tpu_custom_call.1} parent=1 // pred_fallthru
      _
    // Predicated region
    $region66: #{tpu_custom_call.1} parent=1 // pred_check
      _
    $region67: #{tpu_custom_call.1} parent=1 // pred_check_branch
      %116 = sbr.rel (0) target = $region69
    $region68: #{tpu_custom_call.1} parent=1 // pred_region
      _
    $region69: #{tpu_custom_call.1} parent=1 // pred_fallthru
      _
    // Predicated region
    $region70: #{tpu_custom_call.1} parent=1 // pred_check
      _
    $region71: #{tpu_custom_call.1} parent=1 // pred_check_branch
      %118 = sbr.rel (0) target = $region73
    $region72: #{tpu_custom_call.1} parent=1 // pred_region
      _
    $region73: #{tpu_custom_call.1} parent=1 // pred_fallthru
      _
    // Predicated region
    $region74: #{tpu_custom_call.1} parent=1 // pred_check
      _
    $region75: #{tpu_custom_call.1} parent=1 // pred_check_branch
      %120 = sbr.rel (0) target = $region77
    $region76: #{tpu_custom_call.1} parent=1 // pred_region
      _
    $region77: #{tpu_custom_call.1} parent=1 // pred_fallthru
      _
    // Predicated region
    $region78: #{tpu_custom_call.1} parent=1 // pred_check
      _
    $region79: #{tpu_custom_call.1} parent=1 // pred_check_branch
      %122 = sbr.rel (0) target = $region81
    $region80: #{tpu_custom_call.1} parent=1 // pred_region
      _
    $region81: #{tpu_custom_call.1} parent=1 // pred_fallthru
      _
    // Predicated region
    $region82: #{tpu_custom_call.1} parent=1 // pred_check
      _
    $region83: #{tpu_custom_call.1} parent=1 // pred_check_branch
      %124 = sbr.rel (0) target = $region85
    $region84: #{tpu_custom_call.1} parent=1 // pred_region
      _
    $region85: #{tpu_custom_call.1} parent=1 // pred_fallthru
      _
    // Predicated region
    $region86: #{tpu_custom_call.1} parent=1 // pred_check
      _
    $region87: #{tpu_custom_call.1} parent=1 // pred_check_branch
      %126 = sbr.rel (0) target = $region89
    $region88: #{tpu_custom_call.1} parent=1 // pred_region
      _
    $region89: #{tpu_custom_call.1} parent=1 // pred_fallthru
      _
    // Predicated region
    $region90: #{tpu_custom_call.1} parent=1 // pred_check
      _
    $region91: #{tpu_custom_call.1} parent=1 // pred_check_branch
      %128 = sbr.rel (0) target = $region93
    $region92: #{tpu_custom_call.1} parent=1 // pred_region
      _
    $region93: #{tpu_custom_call.1} parent=1 // pred_fallthru
      _
    // Predicated region
    $region94: #{tpu_custom_call.1} parent=1 // pred_check
      _
    $region95: #{tpu_custom_call.1} parent=1 // pred_check_branch
      %130 = sbr.rel (0) target = $region97
    $region96: #{tpu_custom_call.1} parent=1 // pred_region
      _
    $region97: #{tpu_custom_call.1} parent=1 // pred_fallthru
      _
    // Predicated region
    $region98: #{tpu_custom_call.1} parent=1 // pred_check
      _
    $region99: #{tpu_custom_call.1} parent=1 // pred_check_branch
      %132 = sbr.rel (0) target = $region101
    $region100: #{tpu_custom_call.1} parent=1 // pred_region
      _
    $region101: #{tpu_custom_call.1} parent=1 // pred_fallthru
      _
    // Predicated region
    $region102: #{tpu_custom_call.1} parent=1 // pred_check
      _
    $region103: #{tpu_custom_call.1} parent=1 // pred_check_branch
      %134 = sbr.rel (0) target = $region105
    $region104: #{tpu_custom_call.1} parent=1 // pred_region
      _
    $region105: #{tpu_custom_call.1} parent=1 // pred_fallthru
      _
    // Predicated region
    $region106: #{tpu_custom_call.1} parent=1 // pred_check
      _
    $region107: #{tpu_custom_call.1} parent=1 // pred_check_branch
      %136 = sbr.rel (0) target = $region109
    $region108: #{tpu_custom_call.1} parent=1 // pred_region
      _
    $region109: #{tpu_custom_call.1} parent=1 // pred_fallthru
      _
    // Predicated region
    $region110: #{tpu_custom_call.1} parent=1 // pred_check
      _
    $region111: #{tpu_custom_call.1} parent=1 // pred_check_branch
      %138 = sbr.rel (0) target = $region113
    $region112: #{tpu_custom_call.1} parent=1 // pred_region
      _
    $region113: #{tpu_custom_call.1} parent=1 // pred_fallthru
      _
    // Predicated region
    $region114: #{tpu_custom_call.1} parent=1 // pred_check
      _
    $region115: #{tpu_custom_call.1} parent=1 // pred_check_branch
      %140 = sbr.rel (0) target = $region117
    $region116: #{tpu_custom_call.1} parent=1 // pred_region
      _
    $region117: #{tpu_custom_call.1} parent=1 // pred_fallthru
      _
    // Predicated region
    $region118: #{tpu_custom_call.1} parent=1 // pred_check
      _
    $region119: #{tpu_custom_call.1} parent=1 // pred_check_branch
      %142 = sbr.rel (0) target = $region121
    $region120: #{tpu_custom_call.1} parent=1 // pred_region
      _
    $region121: #{tpu_custom_call.1} parent=1 // pred_fallthru
      _
    // Predicated region
    $region122: #{tpu_custom_call.1} parent=1 // pred_check
      _
    $region123: #{tpu_custom_call.1} parent=1 // pred_check_branch
      %144 = sbr.rel (0) target = $region125
    $region124: #{tpu_custom_call.1} parent=1 // pred_region
      _
    $region125: #{tpu_custom_call.1} parent=1 // pred_fallthru
      _
    // Predicated region
    $region126: #{tpu_custom_call.1} parent=1 // pred_check
      _
    $region127: #{tpu_custom_call.1} parent=1 // pred_check_branch
      %146 = sbr.rel (0) target = $region129
    $region128: #{tpu_custom_call.1} parent=1 // pred_region
      _
    $region129: #{tpu_custom_call.1} parent=1 // pred_fallthru
      _
    // Predicated region
    $region130: #{tpu_custom_call.1} parent=1 // pred_check
      _
    $region131: #{tpu_custom_call.1} parent=1 // pred_check_branch
      %148 = sbr.rel (0) target = $region133
    $region132: #{tpu_custom_call.1} parent=1 // pred_region
      _
    $region133: #{tpu_custom_call.1} parent=1 // pred_fallthru
      _
    // Predicated region
    $region134: #{tpu_custom_call.1} parent=1 // pred_check
      _
    $region135: #{tpu_custom_call.1} parent=1 // pred_check_branch
      %150 = sbr.rel (0) target = $region137
    $region136: #{tpu_custom_call.1} parent=1 // pred_region
      _
    $region137: #{tpu_custom_call.1} parent=1 // pred_fallthru
      _
    // Predicated region
    $region138: #{tpu_custom_call.1} parent=1 // pred_check
      _
    $region139: #{tpu_custom_call.1} parent=1 // pred_check_branch
      %152 = sbr.rel (0) target = $region141
    $region140: #{tpu_custom_call.1} parent=1 // pred_region
      _
    $region141: #{tpu_custom_call.1} parent=1 // pred_fallthru
      _
    // Predicated region
    $region142: #{tpu_custom_call.1} parent=1 // pred_check
      _
    $region143: #{tpu_custom_call.1} parent=1 // pred_check_branch
      %154 = sbr.rel (0) target = $region145
    $region144: #{tpu_custom_call.1} parent=1 // pred_region
      _
    $region145: #{tpu_custom_call.1} parent=1 // pred_fallthru
      _
    // Predicated region
    $region146: #{tpu_custom_call.1} parent=1 // pred_check
      _
    $region147: #{tpu_custom_call.1} parent=1 // pred_check_branch
      %156 = sbr.rel (0) target = $region149
    $region148: #{tpu_custom_call.1} parent=1 // pred_region
      _
    $region149: #{tpu_custom_call.1} parent=1 // pred_fallthru
      _
    // Predicated region
    $region150: #{tpu_custom_call.1} parent=1 // pred_check
      _
    $region151: #{tpu_custom_call.1} parent=1 // pred_check_branch
      %158 = sbr.rel (0) target = $region153
    $region152: #{tpu_custom_call.1} parent=1 // pred_region
      _
    $region153: #{tpu_custom_call.1} parent=1 // pred_fallthru
      _
    %v159 = vlaneseq
    %v160 = vshrl.u32 %v159, 7
    %v161 = vld [vmem:[%s3] sm:$0x1]
    %v162 = vlaneseq
    %v163 = vshrl.u32 %v162, 7
    %v164 = vsub.s32 0, %v163
    %v165 = vrot.slane %v161, %v164
    %vm166 = vcmp.eq.s32.totalorder %v165, %v160
    %v167 = vsel %vm166, 1, 0
    %v168 = vcvt.s32.f32 %v167
    %v169 = vld [vmem:[%s3 + $0x1] sm:$0x1]
    %v170 = vlaneseq
    %v171 = vshrl.u32 %v170, 7
    %v172 = vsub.s32 0, %v171
    %v173 = vrot.slane %v169, %v172
    %vm174 = vcmp.eq.s32.totalorder %v173, %v160
    %v175 = vsel %vm174, 1, 0
    %v176 = vcvt.s32.f32 %v175
    %vm177 = vcmask 130048
    %v179 = vsel %vm177, %v176, 0
    %v182 = vsel %vm177, %v168, 0
    %184 = vmatprep.subr.mxu0 0.0
    %185 = vmatpush1.xpose.msra.mxu0 %v182
    %186 = vmatprep.subr.mxu0 0.0
    %187 = vmatpush1.xpose.msra.mxu0 0.0
    %188 = vmatprep.subr.mxu0 0.0
    %189 = vmatpush1.xpose.msra.mxu0 0.0
    %190 = vmatprep.subr.mxu0 0.0
    %191 = vmatpush1.xpose.msra.mxu0 0.0
    %192 = vmatprep.subr.mxu0 0.0
    %193 = vmatpush1.xpose.msra.mxu0 0.0
    %194 = vmatprep.subr.mxu0 0.0
    %195 = vmatpush1.xpose.msra.mxu0 0.0
    %196 = vmatprep.subr.mxu0 0.0
    %197 = vmatpush1.xpose.msra.mxu0 0.0
    %198 = vmatprep.subr.mxu0 0.0
    %199 = vmatpush1.xpose.msra.mxu0 0.0
    %200 = vmatprep.subr.mxu0 0.0
    %201 = vmatpush1.xpose.msra.mxu0 0.0
    %202 = vmatprep.subr.mxu0 0.0
    %203 = vmatpush1.xpose.msra.mxu0 0.0
    %204 = vmatprep.subr.mxu0 0.0
    %205 = vmatpush1.xpose.msra.mxu0 0.0
    %206 = vmatprep.subr.mxu0 0.0
    %207 = vmatpush1.xpose.msra.mxu0 0.0
    %208 = vmatprep.subr.mxu0 0.0
    %209 = vmatpush1.xpose.msra.mxu0 0.0
    %210 = vmatprep.subr.mxu0 0.0
    %211 = vmatpush1.xpose.msra.mxu0 0.0
    %212 = vmatprep.subr.mxu0 0.0
    %213 = vmatpush1.xpose.msra.mxu0 0.0
    %214 = vmatprep.subr.mxu0 0.0
    %215 = vmatpush1.xpose.msra.mxu0 0.0
    %216 = vmatprep.subr.mxu0 0.0
    %217 = vmatpush1.xpose.msra.mxu0 0.0
    %218 = vmatprep.subr.mxu0 0.0
    %219 = vmatpush1.xpose.msra.mxu0 0.0
    %220 = vmatprep.subr.mxu0 0.0
    %221 = vmatpush1.xpose.msra.mxu0 0.0
    %222 = vmatprep.subr.mxu0 0.0
    %223 = vmatpush1.xpose.msra.mxu0 0.0
    %224 = vmatprep.subr.mxu0 0.0
    %225 = vmatpush1.xpose.msra.mxu0 0.0
    %226 = vmatprep.subr.mxu0 0.0
    %227 = vmatpush1.xpose.msra.mxu0 0.0
    %228 = vmatprep.subr.mxu0 0.0
    %229 = vmatpush1.xpose.msra.mxu0 0.0
    %230 = vmatprep.subr.mxu0 0.0
    %231 = vmatpush1.xpose.msra.mxu0 0.0
    %232 = vmatprep.subr.mxu0 0.0
    %233 = vmatpush1.xpose.msra.mxu0 0.0
    %234 = vmatprep.subr.mxu0 0.0
    %235 = vmatpush1.xpose.msra.mxu0 0.0
    %236 = vmatprep.subr.mxu0 0.0
    %237 = vmatpush1.xpose.msra.mxu0 0.0
    %238 = vmatprep.subr.mxu0 0.0
    %239 = vmatpush1.xpose.msra.mxu0 0.0
    %240 = vmatprep.subr.mxu0 0.0
    %241 = vmatpush1.xpose.msra.mxu0 0.0
    %242 = vmatprep.subr.mxu0 0.0
    %243 = vmatpush1.xpose.msra.mxu0 0.0
    %244 = vmatprep.subr.mxu0 0.0
    %245 = vmatpush1.xpose.msra.mxu0 0.0
    %246 = vmatprep.subr.mxu0 0.0
    %247 = vmatpush1.xpose.msra.mxu0 0.0
    %248 = vmatprep.mubr.f32.mxu0 0.0
    %249 = vmatmul.mubr.f32.gmra.mrb[0].mxu0 %v179
    %v250 = vpop.f32.mrb[0].mxu0
    %v251 = vadd.f32 0.0, %v250
    %v252 = vpop.f32.mrb[0].mxu0
    %253 = vdwg.mxu0
    %254 = vmatprep.subr.mxu0 0.0
    %255 = vmatpush1.xpose.msra.mxu0 %v179
    %256 = vmatprep.subr.mxu0 0.0
    %257 = vmatpush1.xpose.msra.mxu0 0.0
    %258 = vmatprep.subr.mxu0 0.0
    %259 = vmatpush1.xpose.msra.mxu0 0.0
    %260 = vmatprep.subr.mxu0 0.0
    %261 = vmatpush1.xpose.msra.mxu0 0.0
    %262 = vmatprep.subr.mxu0 0.0
    %263 = vmatpush1.xpose.msra.mxu0 0.0
    %264 = vmatprep.subr.mxu0 0.0
    %265 = vmatpush1.xpose.msra.mxu0 0.0
    %266 = vmatprep.subr.mxu0 0.0
    %267 = vmatpush1.xpose.msra.mxu0 0.0
    %268 = vmatprep.subr.mxu0 0.0
    %269 = vmatpush1.xpose.msra.mxu0 0.0
    %270 = vmatprep.subr.mxu0 0.0
    %271 = vmatpush1.xpose.msra.mxu0 0.0
    %272 = vmatprep.subr.mxu0 0.0
    %273 = vmatpush1.xpose.msra.mxu0 0.0
    %274 = vmatprep.subr.mxu0 0.0
    %275 = vmatpush1.xpose.msra.mxu0 0.0
    %276 = vmatprep.subr.mxu0 0.0
    %277 = vmatpush1.xpose.msra.mxu0 0.0
    %278 = vmatprep.subr.mxu0 0.0
    %279 = vmatpush1.xpose.msra.mxu0 0.0
    %280 = vmatprep.subr.mxu0 0.0
    %281 = vmatpush1.xpose.msra.mxu0 0.0
    %282 = vmatprep.subr.mxu0 0.0
    %283 = vmatpush1.xpose.msra.mxu0 0.0
    %284 = vmatprep.subr.mxu0 0.0
    %285 = vmatpush1.xpose.msra.mxu0 0.0
    %286 = vmatprep.subr.mxu0 0.0
    %287 = vmatpush1.xpose.msra.mxu0 0.0
    %288 = vmatprep.subr.mxu0 0.0
    %289 = vmatpush1.xpose.msra.mxu0 0.0
    %290 = vmatprep.subr.mxu0 0.0
    %291 = vmatpush1.xpose.msra.mxu0 0.0
    %292 = vmatprep.subr.mxu0 0.0
    %293 = vmatpush1.xpose.msra.mxu0 0.0
    %294 = vmatprep.subr.mxu0 0.0
    %295 = vmatpush1.xpose.msra.mxu0 0.0
    %296 = vmatprep.subr.mxu0 0.0
    %297 = vmatpush1.xpose.msra.mxu0 0.0
    %298 = vmatprep.subr.mxu0 0.0
    %299 = vmatpush1.xpose.msra.mxu0 0.0
    %300 = vmatprep.subr.mxu0 0.0
    %301 = vmatpush1.xpose.msra.mxu0 0.0
    %302 = vmatprep.subr.mxu0 0.0
    %303 = vmatpush1.xpose.msra.mxu0 0.0
    %304 = vmatprep.subr.mxu0 0.0
    %305 = vmatpush1.xpose.msra.mxu0 0.0
    %306 = vmatprep.subr.mxu0 0.0
    %307 = vmatpush1.xpose.msra.mxu0 0.0
    %308 = vmatprep.subr.mxu0 0.0
    %309 = vmatpush1.xpose.msra.mxu0 0.0
    %310 = vmatprep.subr.mxu0 0.0
    %311 = vmatpush1.xpose.msra.mxu0 0.0
    %312 = vmatprep.subr.mxu0 0.0
    %313 = vmatpush1.xpose.msra.mxu0 0.0
    %314 = vmatprep.subr.mxu0 0.0
    %315 = vmatpush1.xpose.msra.mxu0 0.0
    %316 = vmatprep.subr.mxu0 0.0
    %317 = vmatpush1.xpose.msra.mxu0 0.0
    %318 = vmatprep.mubr.f32.mxu0 0.0
    %319 = vmatmul.mubr.f32.gmra.mrb[0].mxu0 %v182
    %v320 = vpop.f32.mrb[0].mxu0
    %v321 = vadd.f32 %v251, %v320
    %v322 = vpop.f32.mrb[0].mxu0
    %323 = vdwg.mxu0
    %v324 = vlaneseq
    %v325 = vand.u32 %v324, 127
    %vm326 = vcmp.eq.s32.totalorder %v160, %v325
    %v327 = vsel %vm326, 1, 0
    %v328 = vcvt.s32.f32 %v327
    %v329 = vadd.f32 %v321, %v328
    %vm330 = vcmp.gt.f32.partialorder %v329, 0.0
    %v331 = vsel %vm330, 0.0, -1e+09
    %v332 = vld [vmem:[%s1] sm:$0xff]
    %v333 = vld [vmem:[%s7] sm:$0xf]
    %v334 = vld [vmem:[%s5] sm:$0x1]
    %v336 = vlaneseq
    %v337 = vshrl.u32 %v336, 7
    %v338 = vsub.s32 0, %v337
    %v339 = vrot.slane %v334, %v338
    %vm341 = vcmask 31744
    %v343 = vsel %vm341, %v332, 0
    %vm345 = vcmask 1043456
    %v347 = vsel %vm345, %v333, 0
    %349 = vmatprep.subr.mxu0 0.0
    %350 = vmatpush1.msra.mxu0 %v347
    %351 = vmatprep.subr.mxu0 0.0
    %352 = vmatpush1.msra.mxu0 0.0
    %353 = vmatprep.subr.mxu0 0.0
    %354 = vmatpush1.msra.mxu0 0.0
    %355 = vmatprep.subr.mxu0 0.0
    %356 = vmatpush1.msra.mxu0 0.0
    %357 = vmatprep.subr.mxu0 0.0
    %358 = vmatpush1.msra.mxu0 0.0
    %359 = vmatprep.subr.mxu0 0.0
    %360 = vmatpush1.msra.mxu0 0.0
    %361 = vmatprep.subr.mxu0 0.0
    %362 = vmatpush1.msra.mxu0 0.0
    %363 = vmatprep.subr.mxu0 0.0
    %364 = vmatpush1.msra.mxu0 0.0
    %365 = vmatprep.subr.mxu0 0.0
    %366 = vmatpush1.msra.mxu0 0.0
    %367 = vmatprep.subr.mxu0 0.0
    %368 = vmatpush1.msra.mxu0 0.0
    %369 = vmatprep.subr.mxu0 0.0
    %370 = vmatpush1.msra.mxu0 0.0
    %371 = vmatprep.subr.mxu0 0.0
    %372 = vmatpush1.msra.mxu0 0.0
    %373 = vmatprep.subr.mxu0 0.0
    %374 = vmatpush1.msra.mxu0 0.0
    %375 = vmatprep.subr.mxu0 0.0
    %376 = vmatpush1.msra.mxu0 0.0
    %377 = vmatprep.subr.mxu0 0.0
    %378 = vmatpush1.msra.mxu0 0.0
    %379 = vmatprep.subr.mxu0 0.0
    %380 = vmatpush1.msra.mxu0 0.0
    %381 = vmatprep.subr.mxu0 0.0
    %382 = vmatpush1.msra.mxu0 0.0
    %383 = vmatprep.subr.mxu0 0.0
    %384 = vmatpush1.msra.mxu0 0.0
    %385 = vmatprep.subr.mxu0 0.0
    %386 = vmatpush1.msra.mxu0 0.0
    %387 = vmatprep.subr.mxu0 0.0
    %388 = vmatpush1.msra.mxu0 0.0
    %389 = vmatprep.subr.mxu0 0.0
    %390 = vmatpush1.msra.mxu0 0.0
    %391 = vmatprep.subr.mxu0 0.0
    %392 = vmatpush1.msra.mxu0 0.0
    %393 = vmatprep.subr.mxu0 0.0
    %394 = vmatpush1.msra.mxu0 0.0
    %395 = vmatprep.subr.mxu0 0.0
    %396 = vmatpush1.msra.mxu0 0.0
    %397 = vmatprep.subr.mxu0 0.0
    %398 = vmatpush1.msra.mxu0 0.0
    %399 = vmatprep.subr.mxu0 0.0
    %400 = vmatpush1.msra.mxu0 0.0
    %401 = vmatprep.subr.mxu0 0.0
    %402 = vmatpush1.msra.mxu0 0.0
    %403 = vmatprep.subr.mxu0 0.0
    %404 = vmatpush1.msra.mxu0 0.0
    %405 = vmatprep.subr.mxu0 0.0
    %406 = vmatpush1.msra.mxu0 0.0
    %407 = vmatprep.subr.mxu0 0.0
    %408 = vmatpush1.msra.mxu0 0.0
    %409 = vmatprep.subr.mxu0 0.0
    %410 = vmatpush1.msra.mxu0 0.0
    %411 = vmatprep.subr.mxu0 0.0
    %412 = vmatpush1.msra.mxu0 0.0
    %413 = vmatprep.mubr.f32.mxu0 0.0
    %414 = vmatmul.mubr.f32.gmra.mrb[0].mxu0 %v343
    %v415 = vpop.f32.mrb[0].mxu0
    %v416 = vadd.f32 %v339, %v415
    %v417 = vpop.f32.mrb[0].mxu0
    %418 = vdwg.mxu0
    %vm419 = vcmask 261120
    %v420 = vsel %vm419, %v416, 0.0
    %421 = vadd.xlane.f32.xlu0 %v420
    %v422 = vpop.xlane.xlu0 %421
    %v423 = vrcp.pop 32.0
    %v424 = vmul.f32 %v422, %v423
    %v425 = vsub.f32 %v416, %v424
    %v426 = vmul.f32 %v425, %v425
    %v427 = vsel %vm419, %v426, 0.0
    %428 = vadd.xlane.f32.xlu0 %v427
    %v429 = vpop.xlane.xlu0 %428
    %v430 = vmul.f32 %v429, %v423
    %v431 = vadd.f32 %v430, 1e-05
    %v432 = vrsqrt.pop %v431
    %v433 = vmul.f32 %v425, %v432
    %v434 = vld [vmem:[%s31] sm:$0x1]
    %v436 = vlaneseq
    %v437 = vshrl.u32 %v436, 7
    %v438 = vsub.s32 0, %v437
    %v439 = vrot.slane %v434, %v438
    %v441 = vmul.f32 %v433, %v439
    %v442 = vld [vmem:[%s29] sm:$0x1]
    %v444 = vlaneseq
    %v445 = vshrl.u32 %v444, 7
    %v446 = vsub.s32 0, %v445
    %v447 = vrot.slane %v442, %v446
    %v449 = vadd.f32 %v441, %v447
    %v450 = vld [vmem:[%s51] sm:$0xff]
    %v451 = vld [vmem:[%s51 + $0x8] sm:$0xff]
    %v452 = vld [vmem:[%s51 + $0x10] sm:$0xff]
    %v453 = vld [vmem:[%s51 + $0x18] sm:$0xff]
    %v454 = vld [vmem:[%s49] sm:$0x1]
    %v456 = vlaneseq
    %v457 = vshrl.u32 %v456, 7
    %v458 = vsub.s32 0, %v457
    %v459 = vrot.slane %v454, %v458
    %v462 = vsel %vm419, %v449, 0
    %464 = vmatprep.subr.mxu0 0.0
    %465 = vmatpush1.msra.mxu0 %v450
    %466 = vmatprep.subr.mxu0 0.0
    %467 = vmatpush1.msra.mxu0 %v451
    %468 = vmatprep.subr.mxu0 0.0
    %469 = vmatpush1.msra.mxu0 %v452
    %470 = vmatprep.subr.mxu0 0.0
    %471 = vmatpush1.msra.mxu0 %v453
    %472 = vmatprep.subr.mxu0 0.0
    %473 = vmatpush1.msra.mxu0 0.0
    %474 = vmatprep.subr.mxu0 0.0
    %475 = vmatpush1.msra.mxu0 0.0
    %476 = vmatprep.subr.mxu0 0.0
    %477 = vmatpush1.msra.mxu0 0.0
    %478 = vmatprep.subr.mxu0 0.0
    %479 = vmatpush1.msra.mxu0 0.0
    %480 = vmatprep.subr.mxu0 0.0
    %481 = vmatpush1.msra.mxu0 0.0
    %482 = vmatprep.subr.mxu0 0.0
    %483 = vmatpush1.msra.mxu0 0.0
    %484 = vmatprep.subr.mxu0 0.0
    %485 = vmatpush1.msra.mxu0 0.0
    %486 = vmatprep.subr.mxu0 0.0
    %487 = vmatpush1.msra.mxu0 0.0
    %488 = vmatprep.subr.mxu0 0.0
    %489 = vmatpush1.msra.mxu0 0.0
    %490 = vmatprep.subr.mxu0 0.0
    %491 = vmatpush1.msra.mxu0 0.0
    %492 = vmatprep.subr.mxu0 0.0
    %493 = vmatpush1.msra.mxu0 0.0
    %494 = vmatprep.subr.mxu0 0.0
    %495 = vmatpush1.msra.mxu0 0.0
    %496 = vmatprep.subr.mxu0 0.0
    %497 = vmatpush1.msra.mxu0 0.0
    %498 = vmatprep.subr.mxu0 0.0
    %499 = vmatpush1.msra.mxu0 0.0
    %500 = vmatprep.subr.mxu0 0.0
    %501 = vmatpush1.msra.mxu0 0.0
    %502 = vmatprep.subr.mxu0 0.0
    %503 = vmatpush1.msra.mxu0 0.0
    %504 = vmatprep.subr.mxu0 0.0
    %505 = vmatpush1.msra.mxu0 0.0
    %506 = vmatprep.subr.mxu0 0.0
    %507 = vmatpush1.msra.mxu0 0.0
    %508 = vmatprep.subr.mxu0 0.0
    %509 = vmatpush1.msra.mxu0 0.0
    %510 = vmatprep.subr.mxu0 0.0
    %511 = vmatpush1.msra.mxu0 0.0
    %512 = vmatprep.subr.mxu0 0.0
    %513 = vmatpush1.msra.mxu0 0.0
    %514 = vmatprep.subr.mxu0 0.0
    %515 = vmatpush1.msra.mxu0 0.0
    %516 = vmatprep.subr.mxu0 0.0
    %517 = vmatpush1.msra.mxu0 0.0
    %518 = vmatprep.subr.mxu0 0.0
    %519 = vmatpush1.msra.mxu0 0.0
    %520 = vmatprep.subr.mxu0 0.0
    %521 = vmatpush1.msra.mxu0 0.0
    %522 = vmatprep.subr.mxu0 0.0
    %523 = vmatpush1.msra.mxu0 0.0
    %524 = vmatprep.subr.mxu0 0.0
    %525 = vmatpush1.msra.mxu0 0.0
    %526 = vmatprep.subr.mxu0 0.0
    %527 = vmatpush1.msra.mxu0 0.0
    %528 = vmatprep.mubr.f32.mxu0 0.0
    %529 = vmatmul.mubr.f32.gmra.mrb[0].mxu0 %v462
    %v530 = vpop.f32.mrb[0].mxu0
    %v531 = vadd.f32 %v459, %v530
    %v532 = vpop.f32.mrb[0].mxu0
    %533 = vdwg.mxu0
    %v534 = vld [vmem:[%s45] sm:$0x1]
    %v536 = vlaneseq
    %v537 = vshrl.u32 %v536, 7
    %v538 = vsub.s32 0, %v537
    %v539 = vrot.slane %v534, %v538
    %v541 = vadd.f32 %v539, 0.0
    %543 = vrot.lane.b32.xlu0 %v531, 96
    %v544 = vpop.permute.xlu0 %543
    %vm545 = vcmask 64512
    %v546 = vsel %vm545, %v531, 0
    %v548 = vsel %vm545, %v544, 0
    %550 = vmatprep.subr.mxu0 0.0
    %551 = vmatpush1.xpose.msra.mxu0 %v548
    %552 = vmatprep.subr.mxu0 0.0
    %553 = vmatpush1.xpose.msra.mxu0 0.0
    %554 = vmatprep.subr.mxu0 0.0
    %555 = vmatpush1.xpose.msra.mxu0 0.0
    %556 = vmatprep.subr.mxu0 0.0
    %557 = vmatpush1.xpose.msra.mxu0 0.0
    %558 = vmatprep.subr.mxu0 0.0
    %559 = vmatpush1.xpose.msra.mxu0 0.0
    %560 = vmatprep.subr.mxu0 0.0
    %561 = vmatpush1.xpose.msra.mxu0 0.0
    %562 = vmatprep.subr.mxu0 0.0
    %563 = vmatpush1.xpose.msra.mxu0 0.0
    %564 = vmatprep.subr.mxu0 0.0
    %565 = vmatpush1.xpose.msra.mxu0 0.0
    %566 = vmatprep.subr.mxu0 0.0
    %567 = vmatpush1.xpose.msra.mxu0 0.0
    %568 = vmatprep.subr.mxu0 0.0
    %569 = vmatpush1.xpose.msra.mxu0 0.0
    %570 = vmatprep.subr.mxu0 0.0
    %571 = vmatpush1.xpose.msra.mxu0 0.0
    %572 = vmatprep.subr.mxu0 0.0
    %573 = vmatpush1.xpose.msra.mxu0 0.0
    %574 = vmatprep.subr.mxu0 0.0
    %575 = vmatpush1.xpose.msra.mxu0 0.0
    %576 = vmatprep.subr.mxu0 0.0
    %577 = vmatpush1.xpose.msra.mxu0 0.0
    %578 = vmatprep.subr.mxu0 0.0
    %579 = vmatpush1.xpose.msra.mxu0 0.0
    %580 = vmatprep.subr.mxu0 0.0
    %581 = vmatpush1.xpose.msra.mxu0 0.0
    %582 = vmatprep.subr.mxu0 0.0
    %583 = vmatpush1.xpose.msra.mxu0 0.0
    %584 = vmatprep.subr.mxu0 0.0
    %585 = vmatpush1.xpose.msra.mxu0 0.0
    %586 = vmatprep.subr.mxu0 0.0
    %587 = vmatpush1.xpose.msra.mxu0 0.0
    %588 = vmatprep.subr.mxu0 0.0
    %589 = vmatpush1.xpose.msra.mxu0 0.0
    %590 = vmatprep.subr.mxu0 0.0
    %591 = vmatpush1.xpose.msra.mxu0 0.0
    %592 = vmatprep.subr.mxu0 0.0
    %593 = vmatpush1.xpose.msra.mxu0 0.0
    %594 = vmatprep.subr.mxu0 0.0
    %595 = vmatpush1.xpose.msra.mxu0 0.0
    %596 = vmatprep.subr.mxu0 0.0
    %597 = vmatpush1.xpose.msra.mxu0 0.0
    %598 = vmatprep.subr.mxu0 0.0
    %599 = vmatpush1.xpose.msra.mxu0 0.0
    %600 = vmatprep.subr.mxu0 0.0
    %601 = vmatpush1.xpose.msra.mxu0 0.0
    %602 = vmatprep.subr.mxu0 0.0
    %603 = vmatpush1.xpose.msra.mxu0 0.0
    %604 = vmatprep.subr.mxu0 0.0
    %605 = vmatpush1.xpose.msra.mxu0 0.0
    %606 = vmatprep.subr.mxu0 0.0
    %607 = vmatpush1.xpose.msra.mxu0 0.0
    %608 = vmatprep.subr.mxu0 0.0
    %609 = vmatpush1.xpose.msra.mxu0 0.0
    %610 = vmatprep.subr.mxu0 0.0
    %611 = vmatpush1.xpose.msra.mxu0 0.0
    %612 = vmatprep.subr.mxu0 0.0
    %613 = vmatpush1.xpose.msra.mxu0 0.0
    %614 = vmatprep.mubr.f32.mxu0 0.0
    %615 = vmatmul.mubr.f32.gmra.mrb[0].mxu0 %v546
    %v616 = vpop.f32.mrb[0].mxu0
    %v617 = vadd.f32 0.0, %v616
    %v618 = vpop.f32.mrb[0].mxu0
    %619 = vdwg.mxu0
    %v620 = vmul.f32 %v617, 0.35355338
    %v621 = vadd.f32 %v620, %v331
    %v622 = vsel %vm545, %v621, -inf
    %623 = vmax.xlane.f32.xlu0 %v622
    %v624 = vpop.xlane.xlu0 %623
    %v625 = vsub.f32 %v621, %v624
    %v626 = vmul.f32 %v625, 1.442695
    %v627 = vpow.pop %v626
    %v628 = vsel %vm545, %v627, 0.0
    %629 = vadd.xlane.f32.xlu0 %v628
    %v630 = vpop.xlane.xlu0 %629
    %v631 = vrcp.pop %v630
    %v632 = vmul.f32 %v627, %v631
    %633 = vrot.lane.b32.xlu0 %v531, 64
    %v634 = vpop.permute.xlu0 %633
    %v637 = vsel %vm545, %v632, 0
    %639 = vmatprep.subr.mxu0 0.0
    %640 = vmatpush1.msra.mxu0 %v634
    %641 = vmatprep.subr.mxu0 0.0
    %642 = vmatpush1.msra.mxu0 0.0
    %643 = vmatprep.subr.mxu0 0.0
    %644 = vmatpush1.msra.mxu0 0.0
    %645 = vmatprep.subr.mxu0 0.0
    %646 = vmatpush1.msra.mxu0 0.0
    %647 = vmatprep.subr.mxu0 0.0
    %648 = vmatpush1.msra.mxu0 0.0
    %649 = vmatprep.subr.mxu0 0.0
    %650 = vmatpush1.msra.mxu0 0.0
    %651 = vmatprep.subr.mxu0 0.0
    %652 = vmatpush1.msra.mxu0 0.0
    %653 = vmatprep.subr.mxu0 0.0
    %654 = vmatpush1.msra.mxu0 0.0
    %655 = vmatprep.subr.mxu0 0.0
    %656 = vmatpush1.msra.mxu0 0.0
    %657 = vmatprep.subr.mxu0 0.0
    %658 = vmatpush1.msra.mxu0 0.0
    %659 = vmatprep.subr.mxu0 0.0
    %660 = vmatpush1.msra.mxu0 0.0
    %661 = vmatprep.subr.mxu0 0.0
    %662 = vmatpush1.msra.mxu0 0.0
    %663 = vmatprep.subr.mxu0 0.0
    %664 = vmatpush1.msra.mxu0 0.0
    %665 = vmatprep.subr.mxu0 0.0
    %666 = vmatpush1.msra.mxu0 0.0
    %667 = vmatprep.subr.mxu0 0.0
    %668 = vmatpush1.msra.mxu0 0.0
    %669 = vmatprep.subr.mxu0 0.0
    %670 = vmatpush1.msra.mxu0 0.0
    %671 = vmatprep.subr.mxu0 0.0
    %672 = vmatpush1.msra.mxu0 0.0
    %673 = vmatprep.subr.mxu0 0.0
    %674 = vmatpush1.msra.mxu0 0.0
    %675 = vmatprep.subr.mxu0 0.0
    %676 = vmatpush1.msra.mxu0 0.0
    %677 = vmatprep.subr.mxu0 0.0
    %678 = vmatpush1.msra.mxu0 0.0
    %679 = vmatprep.subr.mxu0 0.0
    %680 = vmatpush1.msra.mxu0 0.0
    %681 = vmatprep.subr.mxu0 0.0
    %682 = vmatpush1.msra.mxu0 0.0
    %683 = vmatprep.subr.mxu0 0.0
    %684 = vmatpush1.msra.mxu0 0.0
    %685 = vmatprep.subr.mxu0 0.0
    %686 = vmatpush1.msra.mxu0 0.0
    %687 = vmatprep.subr.mxu0 0.0
    %688 = vmatpush1.msra.mxu0 0.0
    %689 = vmatprep.subr.mxu0 0.0
    %690 = vmatpush1.msra.mxu0 0.0
    %691 = vmatprep.subr.mxu0 0.0
    %692 = vmatpush1.msra.mxu0 0.0
    %693 = vmatprep.subr.mxu0 0.0
    %694 = vmatpush1.msra.mxu0 0.0
    %695 = vmatprep.subr.mxu0 0.0
    %696 = vmatpush1.msra.mxu0 0.0
    %697 = vmatprep.subr.mxu0 0.0
    %698 = vmatpush1.msra.mxu0 0.0
    %699 = vmatprep.subr.mxu0 0.0
    %700 = vmatpush1.msra.mxu0 0.0
    %701 = vmatprep.subr.mxu0 0.0
    %702 = vmatpush1.msra.mxu0 0.0
    %703 = vmatprep.mubr.f32.mxu0 0.0
    %704 = vmatmul.mubr.f32.gmra.mrb[0].mxu0 %v637
    %v705 = vpop.f32.mrb[0].mxu0
    %v706 = vadd.f32 0.0, %v705
    %v707 = vpop.f32.mrb[0].mxu0
    %708 = vdwg.mxu0
    %v709 = vld [vmem:[%s47] sm:$0xff]
    %v711 = vsel %vm545, %v706, 0
    %713 = vmatprep.subr.mxu0 0.0
    %714 = vmatpush1.msra.mxu0 %v709
    %715 = vmatprep.subr.mxu0 0.0
    %716 = vmatpush1.msra.mxu0 0.0
    %717 = vmatprep.subr.mxu0 0.0
    %718 = vmatpush1.msra.mxu0 0.0
    %719 = vmatprep.subr.mxu0 0.0
    %720 = vmatpush1.msra.mxu0 0.0
    %721 = vmatprep.subr.mxu0 0.0
    %722 = vmatpush1.msra.mxu0 0.0
    %723 = vmatprep.subr.mxu0 0.0
    %724 = vmatpush1.msra.mxu0 0.0
    %725 = vmatprep.subr.mxu0 0.0
    %726 = vmatpush1.msra.mxu0 0.0
    %727 = vmatprep.subr.mxu0 0.0
    %728 = vmatpush1.msra.mxu0 0.0
    %729 = vmatprep.subr.mxu0 0.0
    %730 = vmatpush1.msra.mxu0 0.0
    %731 = vmatprep.subr.mxu0 0.0
    %732 = vmatpush1.msra.mxu0 0.0
    %733 = vmatprep.subr.mxu0 0.0
    %734 = vmatpush1.msra.mxu0 0.0
    %735 = vmatprep.subr.mxu0 0.0
    %736 = vmatpush1.msra.mxu0 0.0
    %737 = vmatprep.subr.mxu0 0.0
    %738 = vmatpush1.msra.mxu0 0.0
    %739 = vmatprep.subr.mxu0 0.0
    %740 = vmatpush1.msra.mxu0 0.0
    %741 = vmatprep.subr.mxu0 0.0
    %742 = vmatpush1.msra.mxu0 0.0
    %743 = vmatprep.subr.mxu0 0.0
    %744 = vmatpush1.msra.mxu0 0.0
    %745 = vmatprep.subr.mxu0 0.0
    %746 = vmatpush1.msra.mxu0 0.0
    %747 = vmatprep.subr.mxu0 0.0
    %748 = vmatpush1.msra.mxu0 0.0
    %749 = vmatprep.subr.mxu0 0.0
    %750 = vmatpush1.msra.mxu0 0.0
    %751 = vmatprep.subr.mxu0 0.0
    %752 = vmatpush1.msra.mxu0 0.0
    %753 = vmatprep.subr.mxu0 0.0
    %754 = vmatpush1.msra.mxu0 0.0
    %755 = vmatprep.subr.mxu0 0.0
    %756 = vmatpush1.msra.mxu0 0.0
    %757 = vmatprep.subr.mxu0 0.0
    %758 = vmatpush1.msra.mxu0 0.0
    %759 = vmatprep.subr.mxu0 0.0
    %760 = vmatpush1.msra.mxu0 0.0
    %761 = vmatprep.subr.mxu0 0.0
    %762 = vmatpush1.msra.mxu0 0.0
    %763 = vmatprep.subr.mxu0 0.0
    %764 = vmatpush1.msra.mxu0 0.0
    %765 = vmatprep.subr.mxu0 0.0
    %766 = vmatpush1.msra.mxu0 0.0
    %767 = vmatprep.subr.mxu0 0.0
    %768 = vmatpush1.msra.mxu0 0.0
    %769 = vmatprep.subr.mxu0 0.0
    %770 = vmatpush1.msra.mxu0 0.0
    %771 = vmatprep.subr.mxu0 0.0
    %772 = vmatpush1.msra.mxu0 0.0
    %773 = vmatprep.subr.mxu0 0.0
    %774 = vmatpush1.msra.mxu0 0.0
    %775 = vmatprep.subr.mxu0 0.0
    %776 = vmatpush1.msra.mxu0 0.0
    %777 = vmatprep.mubr.f32.mxu0 0.0
    %778 = vmatmul.mubr.f32.gmra.mrb[0].mxu0 %v711
    %v779 = vpop.f32.mrb[0].mxu0
    %v780 = vadd.f32 0.0, %v779
    %v781 = vpop.f32.mrb[0].mxu0
    %782 = vdwg.mxu0
    %v783 = vadd.f32 %v541, %v780
    %784 = vrot.lane.b32.xlu0 %v531, 120
    %v785 = vpop.permute.xlu0 %784
    %786 = vrot.lane.b32.xlu0 %v531, 88
    %v787 = vpop.permute.xlu0 %786
    %v788 = vsel %vm545, %v785, 0
    %v790 = vsel %vm545, %v787, 0
    %792 = vmatprep.subr.mxu0 0.0
    %793 = vmatpush1.xpose.msra.mxu0 %v790
    %794 = vmatprep.subr.mxu0 0.0
    %795 = vmatpush1.xpose.msra.mxu0 0.0
    %796 = vmatprep.subr.mxu0 0.0
    %797 = vmatpush1.xpose.msra.mxu0 0.0
    %798 = vmatprep.subr.mxu0 0.0
    %799 = vmatpush1.xpose.msra.mxu0 0.0
    %800 = vmatprep.subr.mxu0 0.0
    %801 = vmatpush1.xpose.msra.mxu0 0.0
    %802 = vmatprep.subr.mxu0 0.0
    %803 = vmatpush1.xpose.msra.mxu0 0.0
    %804 = vmatprep.subr.mxu0 0.0
    %805 = vmatpush1.xpose.msra.mxu0 0.0
    %806 = vmatprep.subr.mxu0 0.0
    %807 = vmatpush1.xpose.msra.mxu0 0.0
    %808 = vmatprep.subr.mxu0 0.0
    %809 = vmatpush1.xpose.msra.mxu0 0.0
    %810 = vmatprep.subr.mxu0 0.0
    %811 = vmatpush1.xpose.msra.mxu0 0.0
    %812 = vmatprep.subr.mxu0 0.0
    %813 = vmatpush1.xpose.msra.mxu0 0.0
    %814 = vmatprep.subr.mxu0 0.0
    %815 = vmatpush1.xpose.msra.mxu0 0.0
    %816 = vmatprep.subr.mxu0 0.0
    %817 = vmatpush1.xpose.msra.mxu0 0.0
    %818 = vmatprep.subr.mxu0 0.0
    %819 = vmatpush1.xpose.msra.mxu0 0.0
    %820 = vmatprep.subr.mxu0 0.0
    %821 = vmatpush1.xpose.msra.mxu0 0.0
    %822 = vmatprep.subr.mxu0 0.0
    %823 = vmatpush1.xpose.msra.mxu0 0.0
    %824 = vmatprep.subr.mxu0 0.0
    %825 = vmatpush1.xpose.msra.mxu0 0.0
    %826 = vmatprep.subr.mxu0 0.0
    %827 = vmatpush1.xpose.msra.mxu0 0.0
    %828 = vmatprep.subr.mxu0 0.0
    %829 = vmatpush1.xpose.msra.mxu0 0.0
    %830 = vmatprep.subr.mxu0 0.0
    %831 = vmatpush1.xpose.msra.mxu0 0.0
    %832 = vmatprep.subr.mxu0 0.0
    %833 = vmatpush1.xpose.msra.mxu0 0.0
    %834 = vmatprep.subr.mxu0 0.0
    %835 = vmatpush1.xpose.msra.mxu0 0.0
    %836 = vmatprep.subr.mxu0 0.0
    %837 = vmatpush1.xpose.msra.mxu0 0.0
    %838 = vmatprep.subr.mxu0 0.0
    %839 = vmatpush1.xpose.msra.mxu0 0.0
    %840 = vmatprep.subr.mxu0 0.0
    %841 = vmatpush1.xpose.msra.mxu0 0.0
    %842 = vmatprep.subr.mxu0 0.0
    %843 = vmatpush1.xpose.msra.mxu0 0.0
    %844 = vmatprep.subr.mxu0 0.0
    %845 = vmatpush1.xpose.msra.mxu0 0.0
    %846 = vmatprep.subr.mxu0 0.0
    %847 = vmatpush1.xpose.msra.mxu0 0.0
    %848 = vmatprep.subr.mxu0 0.0
    %849 = vmatpush1.xpose.msra.mxu0 0.0
    %850 = vmatprep.subr.mxu0 0.0
    %851 = vmatpush1.xpose.msra.mxu0 0.0
    %852 = vmatprep.subr.mxu0 0.0
    %853 = vmatpush1.xpose.msra.mxu0 0.0
    %854 = vmatprep.subr.mxu0 0.0
    %855 = vmatpush1.xpose.msra.mxu0 0.0
    %856 = vmatprep.mubr.f32.mxu0 0.0
    %857 = vmatmul.mubr.f32.gmra.mrb[0].mxu0 %v788
    %v858 = vpop.f32.mrb[0].mxu0
    %v859 = vadd.f32 0.0, %v858
    %v860 = vpop.f32.mrb[0].mxu0
    %861 = vdwg.mxu0
    %v862 = vmul.f32 %v859, 0.35355338
    %v863 = vadd.f32 %v862, %v331
    %v864 = vsel %vm545, %v863, -inf
    %865 = vmax.xlane.f32.xlu0 %v864
    %v866 = vpop.xlane.xlu0 %865
    %v867 = vsub.f32 %v863, %v866
    %v868 = vmul.f32 %v867, 1.442695
    %v869 = vpow.pop %v868
    %v870 = vsel %vm545, %v869, 0.0
    %871 = vadd.xlane.f32.xlu0 %v870
    %v872 = vpop.xlane.xlu0 %871
    %v873 = vrcp.pop %v872
    %v874 = vmul.f32 %v869, %v873
    %875 = vrot.lane.b32.xlu0 %v531, 56
    %v876 = vpop.permute.xlu0 %875
    %v879 = vsel %vm545, %v874, 0
    %881 = vmatprep.subr.mxu0 0.0
    %882 = vmatpush1.msra.mxu0 %v876
    %883 = vmatprep.subr.mxu0 0.0
    %884 = vmatpush1.msra.mxu0 0.0
    %885 = vmatprep.subr.mxu0 0.0
    %886 = vmatpush1.msra.mxu0 0.0
    %887 = vmatprep.subr.mxu0 0.0
    %888 = vmatpush1.msra.mxu0 0.0
    %889 = vmatprep.subr.mxu0 0.0
    %890 = vmatpush1.msra.mxu0 0.0
    %891 = vmatprep.subr.mxu0 0.0
    %892 = vmatpush1.msra.mxu0 0.0
    %893 = vmatprep.subr.mxu0 0.0
    %894 = vmatpush1.msra.mxu0 0.0
    %895 = vmatprep.subr.mxu0 0.0
    %896 = vmatpush1.msra.mxu0 0.0
    %897 = vmatprep.subr.mxu0 0.0
    %898 = vmatpush1.msra.mxu0 0.0
    %899 = vmatprep.subr.mxu0 0.0
    %900 = vmatpush1.msra.mxu0 0.0
    %901 = vmatprep.subr.mxu0 0.0
    %902 = vmatpush1.msra.mxu0 0.0
    %903 = vmatprep.subr.mxu0 0.0
    %904 = vmatpush1.msra.mxu0 0.0
    %905 = vmatprep.subr.mxu0 0.0
    %906 = vmatpush1.msra.mxu0 0.0
    %907 = vmatprep.subr.mxu0 0.0
    %908 = vmatpush1.msra.mxu0 0.0
    %909 = vmatprep.subr.mxu0 0.0
    %910 = vmatpush1.msra.mxu0 0.0
    %911 = vmatprep.subr.mxu0 0.0
    %912 = vmatpush1.msra.mxu0 0.0
    %913 = vmatprep.subr.mxu0 0.0
    %914 = vmatpush1.msra.mxu0 0.0
    %915 = vmatprep.subr.mxu0 0.0
    %916 = vmatpush1.msra.mxu0 0.0
    %917 = vmatprep.subr.mxu0 0.0
    %918 = vmatpush1.msra.mxu0 0.0
    %919 = vmatprep.subr.mxu0 0.0
    %920 = vmatpush1.msra.mxu0 0.0
    %921 = vmatprep.subr.mxu0 0.0
    %922 = vmatpush1.msra.mxu0 0.0
    %923 = vmatprep.subr.mxu0 0.0
    %924 = vmatpush1.msra.mxu0 0.0
    %925 = vmatprep.subr.mxu0 0.0
    %926 = vmatpush1.msra.mxu0 0.0
    %927 = vmatprep.subr.mxu0 0.0
    %928 = vmatpush1.msra.mxu0 0.0
    %929 = vmatprep.subr.mxu0 0.0
    %930 = vmatpush1.msra.mxu0 0.0
    %931 = vmatprep.subr.mxu0 0.0
    %932 = vmatpush1.msra.mxu0 0.0
    %933 = vmatprep.subr.mxu0 0.0
    %934 = vmatpush1.msra.mxu0 0.0
    %935 = vmatprep.subr.mxu0 0.0
    %936 = vmatpush1.msra.mxu0 0.0
    %937 = vmatprep.subr.mxu0 0.0
    %938 = vmatpush1.msra.mxu0 0.0
    %939 = vmatprep.subr.mxu0 0.0
    %940 = vmatpush1.msra.mxu0 0.0
    %941 = vmatprep.subr.mxu0 0.0
    %942 = vmatpush1.msra.mxu0 0.0
    %943 = vmatprep.subr.mxu0 0.0
    %944 = vmatpush1.msra.mxu0 0.0
    %945 = vmatprep.mubr.f32.mxu0 0.0
    %946 = vmatmul.mubr.f32.gmra.mrb[0].mxu0 %v879
    %v947 = vpop.f32.mrb[0].mxu0
    %v948 = vadd.f32 0.0, %v947
    %v949 = vpop.f32.mrb[0].mxu0
    %950 = vdwg.mxu0
    %v951 = vld [vmem:[%s47 + $0x8] sm:$0xff]
    %v953 = vsel %vm545, %v948, 0
    %955 = vmatprep.subr.mxu0 0.0
    %956 = vmatpush1.msra.mxu0 %v951
    %957 = vmatprep.subr.mxu0 0.0
    %958 = vmatpush1.msra.mxu0 0.0
    %959 = vmatprep.subr.mxu0 0.0
    %960 = vmatpush1.msra.mxu0 0.0
    %961 = vmatprep.subr.mxu0 0.0
    %962 = vmatpush1.msra.mxu0 0.0
    %963 = vmatprep.subr.mxu0 0.0
    %964 = vmatpush1.msra.mxu0 0.0
    %965 = vmatprep.subr.mxu0 0.0
    %966 = vmatpush1.msra.mxu0 0.0
    %967 = vmatprep.subr.mxu0 0.0
    %968 = vmatpush1.msra.mxu0 0.0
    %969 = vmatprep.subr.mxu0 0.0
    %970 = vmatpush1.msra.mxu0 0.0
    %971 = vmatprep.subr.mxu0 0.0
    %972 = vmatpush1.msra.mxu0 0.0
    %973 = vmatprep.subr.mxu0 0.0
    %974 = vmatpush1.msra.mxu0 0.0
    %975 = vmatprep.subr.mxu0 0.0
    %976 = vmatpush1.msra.mxu0 0.0
    %977 = vmatprep.subr.mxu0 0.0
    %978 = vmatpush1.msra.mxu0 0.0
    %979 = vmatprep.subr.mxu0 0.0
    %980 = vmatpush1.msra.mxu0 0.0
    %981 = vmatprep.subr.mxu0 0.0
    %982 = vmatpush1.msra.mxu0 0.0
    %983 = vmatprep.subr.mxu0 0.0
    %984 = vmatpush1.msra.mxu0 0.0
    %985 = vmatprep.subr.mxu0 0.0
    %986 = vmatpush1.msra.mxu0 0.0
    %987 = vmatprep.subr.mxu0 0.0
    %988 = vmatpush1.msra.mxu0 0.0
    %989 = vmatprep.subr.mxu0 0.0
    %990 = vmatpush1.msra.mxu0 0.0
    %991 = vmatprep.subr.mxu0 0.0
    %992 = vmatpush1.msra.mxu0 0.0
    %993 = vmatprep.subr.mxu0 0.0
    %994 = vmatpush1.msra.mxu0 0.0
    %995 = vmatprep.subr.mxu0 0.0
    %996 = vmatpush1.msra.mxu0 0.0
    %997 = vmatprep.subr.mxu0 0.0
    %998 = vmatpush1.msra.mxu0 0.0
    %999 = vmatprep.subr.mxu0 0.0
    %1000 = vmatpush1.msra.mxu0 0.0
    %1001 = vmatprep.subr.mxu0 0.0
    %1002 = vmatpush1.msra.mxu0 0.0
    %1003 = vmatprep.subr.mxu0 0.0
    %1004 = vmatpush1.msra.mxu0 0.0
    %1005 = vmatprep.subr.mxu0 0.0
    %1006 = vmatpush1.msra.mxu0 0.0
    %1007 = vmatprep.subr.mxu0 0.0
    %1008 = vmatpush1.msra.mxu0 0.0
    %1009 = vmatprep.subr.mxu0 0.0
    %1010 = vmatpush1.msra.mxu0 0.0
    %1011 = vmatprep.subr.mxu0 0.0
    %1012 = vmatpush1.msra.mxu0 0.0
    %1013 = vmatprep.subr.mxu0 0.0
    %1014 = vmatpush1.msra.mxu0 0.0
    %1015 = vmatprep.subr.mxu0 0.0
    %1016 = vmatpush1.msra.mxu0 0.0
    %1017 = vmatprep.subr.mxu0 0.0
    %1018 = vmatpush1.msra.mxu0 0.0
    %1019 = vmatprep.mubr.f32.mxu0 0.0
    %1020 = vmatmul.mubr.f32.gmra.mrb[0].mxu0 %v953
    %v1021 = vpop.f32.mrb[0].mxu0
    %v1022 = vadd.f32 0.0, %v1021
    %v1023 = vpop.f32.mrb[0].mxu0
    %1024 = vdwg.mxu0
    %v1025 = vadd.f32 %v783, %v1022
    %1026 = vrot.lane.b32.xlu0 %v531, 112
    %v1027 = vpop.permute.xlu0 %1026
    %1028 = vrot.lane.b32.xlu0 %v531, 80
    %v1029 = vpop.permute.xlu0 %1028
    %v1030 = vsel %vm545, %v1027, 0
    %v1032 = vsel %vm545, %v1029, 0
    %1034 = vmatprep.subr.mxu0 0.0
    %1035 = vmatpush1.xpose.msra.mxu0 %v1032
    %1036 = vmatprep.subr.mxu0 0.0
    %1037 = vmatpush1.xpose.msra.mxu0 0.0
    %1038 = vmatprep.subr.mxu0 0.0
    %1039 = vmatpush1.xpose.msra.mxu0 0.0
    %1040 = vmatprep.subr.mxu0 0.0
    %1041 = vmatpush1.xpose.msra.mxu0 0.0
    %1042 = vmatprep.subr.mxu0 0.0
    %1043 = vmatpush1.xpose.msra.mxu0 0.0
    %1044 = vmatprep.subr.mxu0 0.0
    %1045 = vmatpush1.xpose.msra.mxu0 0.0
    %1046 = vmatprep.subr.mxu0 0.0
    %1047 = vmatpush1.xpose.msra.mxu0 0.0
    %1048 = vmatprep.subr.mxu0 0.0
    %1049 = vmatpush1.xpose.msra.mxu0 0.0
    %1050 = vmatprep.subr.mxu0 0.0
    %1051 = vmatpush1.xpose.msra.mxu0 0.0
    %1052 = vmatprep.subr.mxu0 0.0
    %1053 = vmatpush1.xpose.msra.mxu0 0.0
    %1054 = vmatprep.subr.mxu0 0.0
    %1055 = vmatpush1.xpose.msra.mxu0 0.0
    %1056 = vmatprep.subr.mxu0 0.0
    %1057 = vmatpush1.xpose.msra.mxu0 0.0
    %1058 = vmatprep.subr.mxu0 0.0
    %1059 = vmatpush1.xpose.msra.mxu0 0.0
    %1060 = vmatprep.subr.mxu0 0.0
    %1061 = vmatpush1.xpose.msra.mxu0 0.0
    %1062 = vmatprep.subr.mxu0 0.0
    %1063 = vmatpush1.xpose.msra.mxu0 0.0
    %1064 = vmatprep.subr.mxu0 0.0
    %1065 = vmatpush1.xpose.msra.mxu0 0.0
    %1066 = vmatprep.subr.mxu0 0.0
    %1067 = vmatpush1.xpose.msra.mxu0 0.0
    %1068 = vmatprep.subr.mxu0 0.0
    %1069 = vmatpush1.xpose.msra.mxu0 0.0
    %1070 = vmatprep.subr.mxu0 0.0
    %1071 = vmatpush1.xpose.msra.mxu0 0.0
    %1072 = vmatprep.subr.mxu0 0.0
    %1073 = vmatpush1.xpose.msra.mxu0 0.0
    %1074 = vmatprep.subr.mxu0 0.0
    %1075 = vmatpush1.xpose.msra.mxu0 0.0
    %1076 = vmatprep.subr.mxu0 0.0
    %1077 = vmatpush1.xpose.msra.mxu0 0.0
    %1078 = vmatprep.subr.mxu0 0.0
    %1079 = vmatpush1.xpose.msra.mxu0 0.0
    %1080 = vmatprep.subr.mxu0 0.0
    %1081 = vmatpush1.xpose.msra.mxu0 0.0
    %1082 = vmatprep.subr.mxu0 0.0
    %1083 = vmatpush1.xpose.msra.mxu0 0.0
    %1084 = vmatprep.subr.mxu0 0.0
    %1085 = vmatpush1.xpose.msra.mxu0 0.0
    %1086 = vmatprep.subr.mxu0 0.0
    %1087 = vmatpush1.xpose.msra.mxu0 0.0
    %1088 = vmatprep.subr.mxu0 0.0
    %1089 = vmatpush1.xpose.msra.mxu0 0.0
    %1090 = vmatprep.subr.mxu0 0.0
    %1091 = vmatpush1.xpose.msra.mxu0 0.0
    %1092 = vmatprep.subr.mxu0 0.0
    %1093 = vmatpush1.xpose.msra.mxu0 0.0
    %1094 = vmatprep.subr.mxu0 0.0
    %1095 = vmatpush1.xpose.msra.mxu0 0.0
    %1096 = vmatprep.subr.mxu0 0.0
    %1097 = vmatpush1.xpose.msra.mxu0 0.0
    %1098 = vmatprep.mubr.f32.mxu0 0.0
    %1099 = vmatmul.mubr.f32.gmra.mrb[0].mxu0 %v1030
    %v1100 = vpop.f32.mrb[0].mxu0
    %v1101 = vadd.f32 0.0, %v1100
    %v1102 = vpop.f32.mrb[0].mxu0
    %1103 = vdwg.mxu0
    %v1104 = vmul.f32 %v1101, 0.35355338
    %v1105 = vadd.f32 %v1104, %v331
    %v1106 = vsel %vm545, %v1105, -inf
    %1107 = vmax.xlane.f32.xlu0 %v1106
    %v1108 = vpop.xlane.xlu0 %1107
    %v1109 = vsub.f32 %v1105, %v1108
    %v1110 = vmul.f32 %v1109, 1.442695
    %v1111 = vpow.pop %v1110
    %v1112 = vsel %vm545, %v1111, 0.0
    %1113 = vadd.xlane.f32.xlu0 %v1112
    %v1114 = vpop.xlane.xlu0 %1113
    %v1115 = vrcp.pop %v1114
    %v1116 = vmul.f32 %v1111, %v1115
    %1117 = vrot.lane.b32.xlu0 %v531, 48
    %v1118 = vpop.permute.xlu0 %1117
    %v1121 = vsel %vm545, %v1116, 0
    %1123 = vmatprep.subr.mxu0 0.0
    %1124 = vmatpush1.msra.mxu0 %v1118
    %1125 = vmatprep.subr.mxu0 0.0
    %1126 = vmatpush1.msra.mxu0 0.0
    %1127 = vmatprep.subr.mxu0 0.0
    %1128 = vmatpush1.msra.mxu0 0.0
    %1129 = vmatprep.subr.mxu0 0.0
    %1130 = vmatpush1.msra.mxu0 0.0
    %1131 = vmatprep.subr.mxu0 0.0
    %1132 = vmatpush1.msra.mxu0 0.0
    %1133 = vmatprep.subr.mxu0 0.0
    %1134 = vmatpush1.msra.mxu0 0.0
    %1135 = vmatprep.subr.mxu0 0.0
    %1136 = vmatpush1.msra.mxu0 0.0
    %1137 = vmatprep.subr.mxu0 0.0
    %1138 = vmatpush1.msra.mxu0 0.0
    %1139 = vmatprep.subr.mxu0 0.0
    %1140 = vmatpush1.msra.mxu0 0.0
    %1141 = vmatprep.subr.mxu0 0.0
    %1142 = vmatpush1.msra.mxu0 0.0
    %1143 = vmatprep.subr.mxu0 0.0
    %1144 = vmatpush1.msra.mxu0 0.0
    %1145 = vmatprep.subr.mxu0 0.0
    %1146 = vmatpush1.msra.mxu0 0.0
    %1147 = vmatprep.subr.mxu0 0.0
    %1148 = vmatpush1.msra.mxu0 0.0
    %1149 = vmatprep.subr.mxu0 0.0
    %1150 = vmatpush1.msra.mxu0 0.0
    %1151 = vmatprep.subr.mxu0 0.0
    %1152 = vmatpush1.msra.mxu0 0.0
    %1153 = vmatprep.subr.mxu0 0.0
    %1154 = vmatpush1.msra.mxu0 0.0
    %1155 = vmatprep.subr.mxu0 0.0
    %1156 = vmatpush1.msra.mxu0 0.0
    %1157 = vmatprep.subr.mxu0 0.0
    %1158 = vmatpush1.msra.mxu0 0.0
    %1159 = vmatprep.subr.mxu0 0.0
    %1160 = vmatpush1.msra.mxu0 0.0
    %1161 = vmatprep.subr.mxu0 0.0
    %1162 = vmatpush1.msra.mxu0 0.0
    %1163 = vmatprep.subr.mxu0 0.0
    %1164 = vmatpush1.msra.mxu0 0.0
    %1165 = vmatprep.subr.mxu0 0.0
    %1166 = vmatpush1.msra.mxu0 0.0
    %1167 = vmatprep.subr.mxu0 0.0
    %1168 = vmatpush1.msra.mxu0 0.0
    %1169 = vmatprep.subr.mxu0 0.0
    %1170 = vmatpush1.msra.mxu0 0.0
    %1171 = vmatprep.subr.mxu0 0.0
    %1172 = vmatpush1.msra.mxu0 0.0
    %1173 = vmatprep.subr.mxu0 0.0
    %1174 = vmatpush1.msra.mxu0 0.0
    %1175 = vmatprep.subr.mxu0 0.0
    %1176 = vmatpush1.msra.mxu0 0.0
    %1177 = vmatprep.subr.mxu0 0.0
    %1178 = vmatpush1.msra.mxu0 0.0
    %1179 = vmatprep.subr.mxu0 0.0
    %1180 = vmatpush1.msra.mxu0 0.0
    %1181 = vmatprep.subr.mxu0 0.0
    %1182 = vmatpush1.msra.mxu0 0.0
    %1183 = vmatprep.subr.mxu0 0.0
    %1184 = vmatpush1.msra.mxu0 0.0
    %1185 = vmatprep.subr.mxu0 0.0
    %1186 = vmatpush1.msra.mxu0 0.0
    %1187 = vmatprep.mubr.f32.mxu0 0.0
    %1188 = vmatmul.mubr.f32.gmra.mrb[0].mxu0 %v1121
    %v1189 = vpop.f32.mrb[0].mxu0
    %v1190 = vadd.f32 0.0, %v1189
    %v1191 = vpop.f32.mrb[0].mxu0
    %1192 = vdwg.mxu0
    %v1193 = vld [vmem:[%s47 + $0x10] sm:$0xff]
    %v1195 = vsel %vm545, %v1190, 0
    %1197 = vmatprep.subr.mxu0 0.0
    %1198 = vmatpush1.msra.mxu0 %v1193
    %1199 = vmatprep.subr.mxu0 0.0
    %1200 = vmatpush1.msra.mxu0 0.0
    %1201 = vmatprep.subr.mxu0 0.0
    %1202 = vmatpush1.msra.mxu0 0.0
    %1203 = vmatprep.subr.mxu0 0.0
    %1204 = vmatpush1.msra.mxu0 0.0
    %1205 = vmatprep.subr.mxu0 0.0
    %1206 = vmatpush1.msra.mxu0 0.0
    %1207 = vmatprep.subr.mxu0 0.0
    %1208 = vmatpush1.msra.mxu0 0.0
    %1209 = vmatprep.subr.mxu0 0.0
    %1210 = vmatpush1.msra.mxu0 0.0
    %1211 = vmatprep.subr.mxu0 0.0
    %1212 = vmatpush1.msra.mxu0 0.0
    %1213 = vmatprep.subr.mxu0 0.0
    %1214 = vmatpush1.msra.mxu0 0.0
    %1215 = vmatprep.subr.mxu0 0.0
    %1216 = vmatpush1.msra.mxu0 0.0
    %1217 = vmatprep.subr.mxu0 0.0
    %1218 = vmatpush1.msra.mxu0 0.0
    %1219 = vmatprep.subr.mxu0 0.0
    %1220 = vmatpush1.msra.mxu0 0.0
    %1221 = vmatprep.subr.mxu0 0.0
    %1222 = vmatpush1.msra.mxu0 0.0
    %1223 = vmatprep.subr.mxu0 0.0
    %1224 = vmatpush1.msra.mxu0 0.0
    %1225 = vmatprep.subr.mxu0 0.0
    %1226 = vmatpush1.msra.mxu0 0.0
    %1227 = vmatprep.subr.mxu0 0.0
    %1228 = vmatpush1.msra.mxu0 0.0
    %1229 = vmatprep.subr.mxu0 0.0
    %1230 = vmatpush1.msra.mxu0 0.0
    %1231 = vmatprep.subr.mxu0 0.0
    %1232 = vmatpush1.msra.mxu0 0.0
    %1233 = vmatprep.subr.mxu0 0.0
    %1234 = vmatpush1.msra.mxu0 0.0
    %1235 = vmatprep.subr.mxu0 0.0
    %1236 = vmatpush1.msra.mxu0 0.0
    %1237 = vmatprep.subr.mxu0 0.0
    %1238 = vmatpush1.msra.mxu0 0.0
    %1239 = vmatprep.subr.mxu0 0.0
    %1240 = vmatpush1.msra.mxu0 0.0
    %1241 = vmatprep.subr.mxu0 0.0
    %1242 = vmatpush1.msra.mxu0 0.0
    %1243 = vmatprep.subr.mxu0 0.0
    %1244 = vmatpush1.msra.mxu0 0.0
    %1245 = vmatprep.subr.mxu0 0.0
    %1246 = vmatpush1.msra.mxu0 0.0
    %1247 = vmatprep.subr.mxu0 0.0
    %1248 = vmatpush1.msra.mxu0 0.0
    %1249 = vmatprep.subr.mxu0 0.0
    %1250 = vmatpush1.msra.mxu0 0.0
    %1251 = vmatprep.subr.mxu0 0.0
    %1252 = vmatpush1.msra.mxu0 0.0
    %1253 = vmatprep.subr.mxu0 0.0
    %1254 = vmatpush1.msra.mxu0 0.0
    %1255 = vmatprep.subr.mxu0 0.0
    %1256 = vmatpush1.msra.mxu0 0.0
    %1257 = vmatprep.subr.mxu0 0.0
    %1258 = vmatpush1.msra.mxu0 0.0
    %1259 = vmatprep.subr.mxu0 0.0
    %1260 = vmatpush1.msra.mxu0 0.0
    %1261 = vmatprep.mubr.f32.mxu0 0.0
    %1262 = vmatmul.mubr.f32.gmra.mrb[0].mxu0 %v1195
    %v1263 = vpop.f32.mrb[0].mxu0
    %v1264 = vadd.f32 0.0, %v1263
    %v1265 = vpop.f32.mrb[0].mxu0
    %1266 = vdwg.mxu0
    %v1267 = vadd.f32 %v1025, %v1264
    %1268 = vrot.lane.b32.xlu0 %v531, 104
    %v1269 = vpop.permute.xlu0 %1268
    %1270 = vrot.lane.b32.xlu0 %v531, 72
    %v1271 = vpop.permute.xlu0 %1270
    %v1272 = vsel %vm545, %v1269, 0
    %v1274 = vsel %vm545, %v1271, 0
    %1276 = vmatprep.subr.mxu0 0.0
    %1277 = vmatpush1.xpose.msra.mxu0 %v1274
    %1278 = vmatprep.subr.mxu0 0.0
    %1279 = vmatpush1.xpose.msra.mxu0 0.0
    %1280 = vmatprep.subr.mxu0 0.0
    %1281 = vmatpush1.xpose.msra.mxu0 0.0
    %1282 = vmatprep.subr.mxu0 0.0
    %1283 = vmatpush1.xpose.msra.mxu0 0.0
    %1284 = vmatprep.subr.mxu0 0.0
    %1285 = vmatpush1.xpose.msra.mxu0 0.0
    %1286 = vmatprep.subr.mxu0 0.0
    %1287 = vmatpush1.xpose.msra.mxu0 0.0
    %1288 = vmatprep.subr.mxu0 0.0
    %1289 = vmatpush1.xpose.msra.mxu0 0.0
    %1290 = vmatprep.subr.mxu0 0.0
    %1291 = vmatpush1.xpose.msra.mxu0 0.0
    %1292 = vmatprep.subr.mxu0 0.0
    %1293 = vmatpush1.xpose.msra.mxu0 0.0
    %1294 = vmatprep.subr.mxu0 0.0
    %1295 = vmatpush1.xpose.msra.mxu0 0.0
    %1296 = vmatprep.subr.mxu0 0.0
    %1297 = vmatpush1.xpose.msra.mxu0 0.0
    %1298 = vmatprep.subr.mxu0 0.0
    %1299 = vmatpush1.xpose.msra.mxu0 0.0
    %1300 = vmatprep.subr.mxu0 0.0
    %1301 = vmatpush1.xpose.msra.mxu0 0.0
    %1302 = vmatprep.subr.mxu0 0.0
    %1303 = vmatpush1.xpose.msra.mxu0 0.0
    %1304 = vmatprep.subr.mxu0 0.0
    %1305 = vmatpush1.xpose.msra.mxu0 0.0
    %1306 = vmatprep.subr.mxu0 0.0
    %1307 = vmatpush1.xpose.msra.mxu0 0.0
    %1308 = vmatprep.subr.mxu0 0.0
    %1309 = vmatpush1.xpose.msra.mxu0 0.0
    %1310 = vmatprep.subr.mxu0 0.0
    %1311 = vmatpush1.xpose.msra.mxu0 0.0
    %1312 = vmatprep.subr.mxu0 0.0
    %1313 = vmatpush1.xpose.msra.mxu0 0.0
    %1314 = vmatprep.subr.mxu0 0.0
    %1315 = vmatpush1.xpose.msra.mxu0 0.0
    %1316 = vmatprep.subr.mxu0 0.0
    %1317 = vmatpush1.xpose.msra.mxu0 0.0
    %1318 = vmatprep.subr.mxu0 0.0
    %1319 = vmatpush1.xpose.msra.mxu0 0.0
    %1320 = vmatprep.subr.mxu0 0.0
    %1321 = vmatpush1.xpose.msra.mxu0 0.0
    %1322 = vmatprep.subr.mxu0 0.0
    %1323 = vmatpush1.xpose.msra.mxu0 0.0
    %1324 = vmatprep.subr.mxu0 0.0
    %1325 = vmatpush1.xpose.msra.mxu0 0.0
    %1326 = vmatprep.subr.mxu0 0.0
    %1327 = vmatpush1.xpose.msra.mxu0 0.0
    %1328 = vmatprep.subr.mxu0 0.0
    %1329 = vmatpush1.xpose.msra.mxu0 0.0
    %1330 = vmatprep.subr.mxu0 0.0
    %1331 = vmatpush1.xpose.msra.mxu0 0.0
    %1332 = vmatprep.subr.mxu0 0.0
    %1333 = vmatpush1.xpose.msra.mxu0 0.0
    %1334 = vmatprep.subr.mxu0 0.0
    %1335 = vmatpush1.xpose.msra.mxu0 0.0
    %1336 = vmatprep.subr.mxu0 0.0
    %1337 = vmatpush1.xpose.msra.mxu0 0.0
    %1338 = vmatprep.subr.mxu0 0.0
    %1339 = vmatpush1.xpose.msra.mxu0 0.0
    %1340 = vmatprep.mubr.f32.mxu0 0.0
    %1341 = vmatmul.mubr.f32.gmra.mrb[0].mxu0 %v1272
    %v1342 = vpop.f32.mrb[0].mxu0
    %v1343 = vadd.f32 0.0, %v1342
    %v1344 = vpop.f32.mrb[0].mxu0
    %1345 = vdwg.mxu0
    %v1346 = vmul.f32 %v1343, 0.35355338
    %v1347 = vadd.f32 %v1346, %v331
    %v1348 = vsel %vm545, %v1347, -inf
    %1349 = vmax.xlane.f32.xlu0 %v1348
    %v1350 = vpop.xlane.xlu0 %1349
    %v1351 = vsub.f32 %v1347, %v1350
    %v1352 = vmul.f32 %v1351, 1.442695
    %v1353 = vpow.pop %v1352
    %v1354 = vsel %vm545, %v1353, 0.0
    %1355 = vadd.xlane.f32.xlu0 %v1354
    %v1356 = vpop.xlane.xlu0 %1355
    %v1357 = vrcp.pop %v1356
    %v1358 = vmul.f32 %v1353, %v1357
    %1359 = vrot.lane.b32.xlu0 %v531, 40
    %v1360 = vpop.permute.xlu0 %1359
    %v1363 = vsel %vm545, %v1358, 0
    %1365 = vmatprep.subr.mxu0 0.0
    %1366 = vmatpush1.msra.mxu0 %v1360
    %1367 = vmatprep.subr.mxu0 0.0
    %1368 = vmatpush1.msra.mxu0 0.0
    %1369 = vmatprep.subr.mxu0 0.0
    %1370 = vmatpush1.msra.mxu0 0.0
    %1371 = vmatprep.subr.mxu0 0.0
    %1372 = vmatpush1.msra.mxu0 0.0
    %1373 = vmatprep.subr.mxu0 0.0
    %1374 = vmatpush1.msra.mxu0 0.0
    %1375 = vmatprep.subr.mxu0 0.0
    %1376 = vmatpush1.msra.mxu0 0.0
    %1377 = vmatprep.subr.mxu0 0.0
    %1378 = vmatpush1.msra.mxu0 0.0
    %1379 = vmatprep.subr.mxu0 0.0
    %1380 = vmatpush1.msra.mxu0 0.0
    %1381 = vmatprep.subr.mxu0 0.0
    %1382 = vmatpush1.msra.mxu0 0.0
    %1383 = vmatprep.subr.mxu0 0.0
    %1384 = vmatpush1.msra.mxu0 0.0
    %1385 = vmatprep.subr.mxu0 0.0
    %1386 = vmatpush1.msra.mxu0 0.0
    %1387 = vmatprep.subr.mxu0 0.0
    %1388 = vmatpush1.msra.mxu0 0.0
    %1389 = vmatprep.subr.mxu0 0.0
    %1390 = vmatpush1.msra.mxu0 0.0
    %1391 = vmatprep.subr.mxu0 0.0
    %1392 = vmatpush1.msra.mxu0 0.0
    %1393 = vmatprep.subr.mxu0 0.0
    %1394 = vmatpush1.msra.mxu0 0.0
    %1395 = vmatprep.subr.mxu0 0.0
    %1396 = vmatpush1.msra.mxu0 0.0
    %1397 = vmatprep.subr.mxu0 0.0
    %1398 = vmatpush1.msra.mxu0 0.0
    %1399 = vmatprep.subr.mxu0 0.0
    %1400 = vmatpush1.msra.mxu0 0.0
    %1401 = vmatprep.subr.mxu0 0.0
    %1402 = vmatpush1.msra.mxu0 0.0
    %1403 = vmatprep.subr.mxu0 0.0
    %1404 = vmatpush1.msra.mxu0 0.0
    %1405 = vmatprep.subr.mxu0 0.0
    %1406 = vmatpush1.msra.mxu0 0.0
    %1407 = vmatprep.subr.mxu0 0.0
    %1408 = vmatpush1.msra.mxu0 0.0
    %1409 = vmatprep.subr.mxu0 0.0
    %1410 = vmatpush1.msra.mxu0 0.0
    %1411 = vmatprep.subr.mxu0 0.0
    %1412 = vmatpush1.msra.mxu0 0.0
    %1413 = vmatprep.subr.mxu0 0.0
    %1414 = vmatpush1.msra.mxu0 0.0
    %1415 = vmatprep.subr.mxu0 0.0
    %1416 = vmatpush1.msra.mxu0 0.0
    %1417 = vmatprep.subr.mxu0 0.0
    %1418 = vmatpush1.msra.mxu0 0.0
    %1419 = vmatprep.subr.mxu0 0.0
    %1420 = vmatpush1.msra.mxu0 0.0
    %1421 = vmatprep.subr.mxu0 0.0
    %1422 = vmatpush1.msra.mxu0 0.0
    %1423 = vmatprep.subr.mxu0 0.0
    %1424 = vmatpush1.msra.mxu0 0.0
    %1425 = vmatprep.subr.mxu0 0.0
    %1426 = vmatpush1.msra.mxu0 0.0
    %1427 = vmatprep.subr.mxu0 0.0
    %1428 = vmatpush1.msra.mxu0 0.0
    %1429 = vmatprep.mubr.f32.mxu0 0.0
    %1430 = vmatmul.mubr.f32.gmra.mrb[0].mxu0 %v1363
    %v1431 = vpop.f32.mrb[0].mxu0
    %v1432 = vadd.f32 0.0, %v1431
    %v1433 = vpop.f32.mrb[0].mxu0
    %1434 = vdwg.mxu0
    %v1435 = vld [vmem:[%s47 + $0x18] sm:$0xff]
    %v1437 = vsel %vm545, %v1432, 0
    %1439 = vmatprep.subr.mxu0 0.0
    %1440 = vmatpush1.msra.mxu0 %v1435
    %1441 = vmatprep.subr.mxu0 0.0
    %1442 = vmatpush1.msra.mxu0 0.0
    %1443 = vmatprep.subr.mxu0 0.0
    %1444 = vmatpush1.msra.mxu0 0.0
    %1445 = vmatprep.subr.mxu0 0.0
    %1446 = vmatpush1.msra.mxu0 0.0
    %1447 = vmatprep.subr.mxu0 0.0
    %1448 = vmatpush1.msra.mxu0 0.0
    %1449 = vmatprep.subr.mxu0 0.0
    %1450 = vmatpush1.msra.mxu0 0.0
    %1451 = vmatprep.subr.mxu0 0.0
    %1452 = vmatpush1.msra.mxu0 0.0
    %1453 = vmatprep.subr.mxu0 0.0
    %1454 = vmatpush1.msra.mxu0 0.0
    %1455 = vmatprep.subr.mxu0 0.0
    %1456 = vmatpush1.msra.mxu0 0.0
    %1457 = vmatprep.subr.mxu0 0.0
    %1458 = vmatpush1.msra.mxu0 0.0
    %1459 = vmatprep.subr.mxu0 0.0
    %1460 = vmatpush1.msra.mxu0 0.0
    %1461 = vmatprep.subr.mxu0 0.0
    %1462 = vmatpush1.msra.mxu0 0.0
    %1463 = vmatprep.subr.mxu0 0.0
    %1464 = vmatpush1.msra.mxu0 0.0
    %1465 = vmatprep.subr.mxu0 0.0
    %1466 = vmatpush1.msra.mxu0 0.0
    %1467 = vmatprep.subr.mxu0 0.0
    %1468 = vmatpush1.msra.mxu0 0.0
    %1469 = vmatprep.subr.mxu0 0.0
    %1470 = vmatpush1.msra.mxu0 0.0
    %1471 = vmatprep.subr.mxu0 0.0
    %1472 = vmatpush1.msra.mxu0 0.0
    %1473 = vmatprep.subr.mxu0 0.0
    %1474 = vmatpush1.msra.mxu0 0.0
    %1475 = vmatprep.subr.mxu0 0.0
    %1476 = vmatpush1.msra.mxu0 0.0
    %1477 = vmatprep.subr.mxu0 0.0
    %1478 = vmatpush1.msra.mxu0 0.0
    %1479 = vmatprep.subr.mxu0 0.0
    %1480 = vmatpush1.msra.mxu0 0.0
    %1481 = vmatprep.subr.mxu0 0.0
    %1482 = vmatpush1.msra.mxu0 0.0
    %1483 = vmatprep.subr.mxu0 0.0
    %1484 = vmatpush1.msra.mxu0 0.0
    %1485 = vmatprep.subr.mxu0 0.0
    %1486 = vmatpush1.msra.mxu0 0.0
    %1487 = vmatprep.subr.mxu0 0.0
    %1488 = vmatpush1.msra.mxu0 0.0
    %1489 = vmatprep.subr.mxu0 0.0
    %1490 = vmatpush1.msra.mxu0 0.0
    %1491 = vmatprep.subr.mxu0 0.0
    %1492 = vmatpush1.msra.mxu0 0.0
    %1493 = vmatprep.subr.mxu0 0.0
    %1494 = vmatpush1.msra.mxu0 0.0
    %1495 = vmatprep.subr.mxu0 0.0
    %1496 = vmatpush1.msra.mxu0 0.0
    %1497 = vmatprep.subr.mxu0 0.0
    %1498 = vmatpush1.msra.mxu0 0.0
    %1499 = vmatprep.subr.mxu0 0.0
    %1500 = vmatpush1.msra.mxu0 0.0
    %1501 = vmatprep.subr.mxu0 0.0
    %1502 = vmatpush1.msra.mxu0 0.0
    %1503 = vmatprep.mubr.f32.mxu0 0.0
    %1504 = vmatmul.mubr.f32.gmra.mrb[0].mxu0 %v1437
    %v1505 = vpop.f32.mrb[0].mxu0
    %v1506 = vadd.f32 0.0, %v1505
    %v1507 = vpop.f32.mrb[0].mxu0
    %1508 = vdwg.mxu0
    %v1509 = vadd.f32 %v1267, %v1506
    %v1510 = vadd.f32 %v416, %v1509
    %v1511 = vsel %vm419, %v1510, 0.0
    %1512 = vadd.xlane.f32.xlu0 %v1511
    %v1513 = vpop.xlane.xlu0 %1512
    %v1514 = vmul.f32 %v1513, %v423
    %v1515 = vsub.f32 %v1510, %v1514
    %v1516 = vmul.f32 %v1515, %v1515
    %v1517 = vsel %vm419, %v1516, 0.0
    %1518 = vadd.xlane.f32.xlu0 %v1517
    %v1519 = vpop.xlane.xlu0 %1518
    %v1520 = vmul.f32 %v1519, %v423
    %v1521 = vadd.f32 %v1520, 1e-05
    %v1522 = vrsqrt.pop %v1521
    %v1523 = vmul.f32 %v1515, %v1522
    %v1524 = vld [vmem:[%s35] sm:$0x1]
    %v1526 = vlaneseq
    %v1527 = vshrl.u32 %v1526, 7
    %v1528 = vsub.s32 0, %v1527
    %v1529 = vrot.slane %v1524, %v1528
    %v1531 = vmul.f32 %v1523, %v1529
    %v1532 = vld [vmem:[%s33] sm:$0x1]
    %v1534 = vlaneseq
    %v1535 = vshrl.u32 %v1534, 7
    %v1536 = vsub.s32 0, %v1535
    %v1537 = vrot.slane %v1532, %v1536
    %v1539 = vadd.f32 %v1531, %v1537
    %v1540 = vld [vmem:[%s39] sm:$0xff]
    %v1541 = vld [vmem:[%s39 + $0x8] sm:$0xff]
    %v1542 = vld [vmem:[%s39 + $0x10] sm:$0xff]
    %v1543 = vld [vmem:[%s39 + $0x18] sm:$0xff]
    %v1544 = vld [vmem:[%s37] sm:$0x1]
    %v1546 = vlaneseq
    %v1547 = vshrl.u32 %v1546, 7
    %v1548 = vsub.s32 0, %v1547
    %v1549 = vrot.slane %v1544, %v1548
    %v1552 = vsel %vm419, %v1539, 0
    %1554 = vmatprep.subr.mxu0 0.0
    %1555 = vmatpush1.msra.mxu0 %v1540
    %1556 = vmatprep.subr.mxu0 0.0
    %1557 = vmatpush1.msra.mxu0 %v1541
    %1558 = vmatprep.subr.mxu0 0.0
    %1559 = vmatpush1.msra.mxu0 %v1542
    %1560 = vmatprep.subr.mxu0 0.0
    %1561 = vmatpush1.msra.mxu0 %v1543
    %1562 = vmatprep.subr.mxu0 0.0
    %1563 = vmatpush1.msra.mxu0 0.0
    %1564 = vmatprep.subr.mxu0 0.0
    %1565 = vmatpush1.msra.mxu0 0.0
    %1566 = vmatprep.subr.mxu0 0.0
    %1567 = vmatpush1.msra.mxu0 0.0
    %1568 = vmatprep.subr.mxu0 0.0
    %1569 = vmatpush1.msra.mxu0 0.0
    %1570 = vmatprep.subr.mxu0 0.0
    %1571 = vmatpush1.msra.mxu0 0.0
    %1572 = vmatprep.subr.mxu0 0.0
    %1573 = vmatpush1.msra.mxu0 0.0
    %1574 = vmatprep.subr.mxu0 0.0
    %1575 = vmatpush1.msra.mxu0 0.0
    %1576 = vmatprep.subr.mxu0 0.0
    %1577 = vmatpush1.msra.mxu0 0.0
    %1578 = vmatprep.subr.mxu0 0.0
    %1579 = vmatpush1.msra.mxu0 0.0
    %1580 = vmatprep.subr.mxu0 0.0
    %1581 = vmatpush1.msra.mxu0 0.0
    %1582 = vmatprep.subr.mxu0 0.0
    %1583 = vmatpush1.msra.mxu0 0.0
    %1584 = vmatprep.subr.mxu0 0.0
    %1585 = vmatpush1.msra.mxu0 0.0
    %1586 = vmatprep.subr.mxu0 0.0
    %1587 = vmatpush1.msra.mxu0 0.0
    %1588 = vmatprep.subr.mxu0 0.0
    %1589 = vmatpush1.msra.mxu0 0.0
    %1590 = vmatprep.subr.mxu0 0.0
    %1591 = vmatpush1.msra.mxu0 0.0
    %1592 = vmatprep.subr.mxu0 0.0
    %1593 = vmatpush1.msra.mxu0 0.0
    %1594 = vmatprep.subr.mxu0 0.0
    %1595 = vmatpush1.msra.mxu0 0.0
    %1596 = vmatprep.subr.mxu0 0.0
    %1597 = vmatpush1.msra.mxu0 0.0
    %1598 = vmatprep.subr.mxu0 0.0
    %1599 = vmatpush1.msra.mxu0 0.0
    %1600 = vmatprep.subr.mxu0 0.0
    %1601 = vmatpush1.msra.mxu0 0.0
    %1602 = vmatprep.subr.mxu0 0.0
    %1603 = vmatpush1.msra.mxu0 0.0
    %1604 = vmatprep.subr.mxu0 0.0
    %1605 = vmatpush1.msra.mxu0 0.0
    %1606 = vmatprep.subr.mxu0 0.0
    %1607 = vmatpush1.msra.mxu0 0.0
    %1608 = vmatprep.subr.mxu0 0.0
    %1609 = vmatpush1.msra.mxu0 0.0
    %1610 = vmatprep.subr.mxu0 0.0
    %1611 = vmatpush1.msra.mxu0 0.0
    %1612 = vmatprep.subr.mxu0 0.0
    %1613 = vmatpush1.msra.mxu0 0.0
    %1614 = vmatprep.subr.mxu0 0.0
    %1615 = vmatpush1.msra.mxu0 0.0
    %1616 = vmatprep.subr.mxu0 0.0
    %1617 = vmatpush1.msra.mxu0 0.0
    %1618 = vmatprep.mubr.f32.mxu0 0.0
    %1619 = vmatmul.mubr.f32.gmra.mrb[0].mxu0 %v1552
    %v1620 = vpop.f32.mrb[0].mxu0
    %v1621 = vadd.f32 %v1549, %v1620
    %v1622 = vpop.f32.mrb[0].mxu0
    %1623 = vdwg.mxu0
    %v1624 = vmul.f32 %v1621, %v1621
    %v1625 = vmul.f32 %v1621, %v1624
    %v1626 = vmul.f32 %v1625, 0.044715
    %v1627 = vadd.f32 %v1621, %v1626
    %v1628 = vmul.f32 %v1627, 0.7978846
    %v1629 = vtanh.pop %v1628
    %v1630 = vadd.f32 %v1629, 1.0
    %v1631 = vmul.f32 %v1630, 0.5
    %v1632 = vmul.f32 %v1621, %v1631
    %v1633 = vld [vmem:[%s43] sm:$0xff]
    %v1634 = vld [vmem:[%s43 + $0x8] sm:$0xff]
    %v1635 = vld [vmem:[%s43 + $0x10] sm:$0xff]
    %v1636 = vld [vmem:[%s43 + $0x18] sm:$0xff]
    %v1637 = vld [vmem:[%s43 + $0x20] sm:$0xff]
    %v1638 = vld [vmem:[%s43 + $0x28] sm:$0xff]
    %v1639 = vld [vmem:[%s43 + $0x30] sm:$0xff]
    %v1640 = vld [vmem:[%s43 + $0x38] sm:$0xff]
    %v1641 = vld [vmem:[%s43 + $0x40] sm:$0xff]
    %v1642 = vld [vmem:[%s43 + $0x48] sm:$0xff]
    %v1643 = vld [vmem:[%s43 + $0x50] sm:$0xff]
    %v1644 = vld [vmem:[%s43 + $0x58] sm:$0xff]
    %v1645 = vld [vmem:[%s43 + $0x60] sm:$0xff]
    %v1646 = vld [vmem:[%s43 + $0x68] sm:$0xff]
    %v1647 = vld [vmem:[%s43 + $0x70] sm:$0xff]
    %v1648 = vld [vmem:[%s43 + $0x78] sm:$0xff]
    %v1649 = vld [vmem:[%s41] sm:$0x1]
    %v1651 = vlaneseq
    %v1652 = vshrl.u32 %v1651, 7
    %v1653 = vsub.s32 0, %v1652
    %v1654 = vrot.slane %v1649, %v1653
    %1656 = vmatprep.subr.mxu0 0.0
    %1657 = vmatpush1.msra.mxu0 %v1633
    %1658 = vmatprep.subr.mxu0 0.0
    %1659 = vmatpush1.msra.mxu0 %v1634
    %1660 = vmatprep.subr.mxu0 0.0
    %1661 = vmatpush1.msra.mxu0 %v1635
    %1662 = vmatprep.subr.mxu0 0.0
    %1663 = vmatpush1.msra.mxu0 %v1636
    %1664 = vmatprep.subr.mxu0 0.0
    %1665 = vmatpush1.msra.mxu0 %v1637
    %1666 = vmatprep.subr.mxu0 0.0
    %1667 = vmatpush1.msra.mxu0 %v1638
    %1668 = vmatprep.subr.mxu0 0.0
    %1669 = vmatpush1.msra.mxu0 %v1639
    %1670 = vmatprep.subr.mxu0 0.0
    %1671 = vmatpush1.msra.mxu0 %v1640
    %1672 = vmatprep.subr.mxu0 0.0
    %1673 = vmatpush1.msra.mxu0 %v1641
    %1674 = vmatprep.subr.mxu0 0.0
    %1675 = vmatpush1.msra.mxu0 %v1642
    %1676 = vmatprep.subr.mxu0 0.0
    %1677 = vmatpush1.msra.mxu0 %v1643
    %1678 = vmatprep.subr.mxu0 0.0
    %1679 = vmatpush1.msra.mxu0 %v1644
    %1680 = vmatprep.subr.mxu0 0.0
    %1681 = vmatpush1.msra.mxu0 %v1645
    %1682 = vmatprep.subr.mxu0 0.0
    %1683 = vmatpush1.msra.mxu0 %v1646
    %1684 = vmatprep.subr.mxu0 0.0
    %1685 = vmatpush1.msra.mxu0 %v1647
    %1686 = vmatprep.subr.mxu0 0.0
    %1687 = vmatpush1.msra.mxu0 %v1648
    %1688 = vmatprep.subr.mxu0 0.0
    %1689 = vmatpush1.msra.mxu0 0.0
    %1690 = vmatprep.subr.mxu0 0.0
    %1691 = vmatpush1.msra.mxu0 0.0
    %1692 = vmatprep.subr.mxu0 0.0
    %1693 = vmatpush1.msra.mxu0 0.0
    %1694 = vmatprep.subr.mxu0 0.0
    %1695 = vmatpush1.msra.mxu0 0.0
    %1696 = vmatprep.subr.mxu0 0.0
    %1697 = vmatpush1.msra.mxu0 0.0
    %1698 = vmatprep.subr.mxu0 0.0
    %1699 = vmatpush1.msra.mxu0 0.0
    %1700 = vmatprep.subr.mxu0 0.0
    %1701 = vmatpush1.msra.mxu0 0.0
    %1702 = vmatprep.subr.mxu0 0.0
    %1703 = vmatpush1.msra.mxu0 0.0
    %1704 = vmatprep.subr.mxu0 0.0
    %1705 = vmatpush1.msra.mxu0 0.0
    %1706 = vmatprep.subr.mxu0 0.0
    %1707 = vmatpush1.msra.mxu0 0.0
    %1708 = vmatprep.subr.mxu0 0.0
    %1709 = vmatpush1.msra.mxu0 0.0
    %1710 = vmatprep.subr.mxu0 0.0
    %1711 = vmatpush1.msra.mxu0 0.0
    %1712 = vmatprep.subr.mxu0 0.0
    %1713 = vmatpush1.msra.mxu0 0.0
    %1714 = vmatprep.subr.mxu0 0.0
    %1715 = vmatpush1.msra.mxu0 0.0
    %1716 = vmatprep.subr.mxu0 0.0
    %1717 = vmatpush1.msra.mxu0 0.0
    %1718 = vmatprep.subr.mxu0 0.0
    %1719 = vmatpush1.msra.mxu0 0.0
    %1720 = vmatprep.mubr.f32.mxu0 0.0
    %1721 = vmatmul.mubr.f32.gmra.mrb[0].mxu0 %v1632
    %v1722 = vpop.f32.mrb[0].mxu0
    %v1723 = vadd.f32 %v1654, %v1722
    %v1724 = vpop.f32.mrb[0].mxu0
    %1725 = vdwg.mxu0
    %v1726 = vadd.f32 %v1510, %v1723
    %v1727 = vsel %vm419, %v1726, 0.0
    %1728 = vadd.xlane.f32.xlu0 %v1727
    %v1729 = vpop.xlane.xlu0 %1728
    %v1730 = vmul.f32 %v1729, %v423
    %v1731 = vsub.f32 %v1726, %v1730
    %v1732 = vmul.f32 %v1731, %v1731
    %v1733 = vsel %vm419, %v1732, 0.0
    %1734 = vadd.xlane.f32.xlu0 %v1733
    %v1735 = vpop.xlane.xlu0 %1734
    %v1736 = vmul.f32 %v1735, %v423
    %v1737 = vadd.f32 %v1736, 1e-05
    %v1738 = vrsqrt.pop %v1737
    %v1739 = vmul.f32 %v1731, %v1738
    %v1740 = vld [vmem:[%s55] sm:$0x1]
    %v1742 = vlaneseq
    %v1743 = vshrl.u32 %v1742, 7
    %v1744 = vsub.s32 0, %v1743
    %v1745 = vrot.slane %v1740, %v1744
    %v1747 = vmul.f32 %v1739, %v1745
    %v1748 = vld [vmem:[%s53] sm:$0x1]
    %v1750 = vlaneseq
    %v1751 = vshrl.u32 %v1750, 7
    %v1752 = vsub.s32 0, %v1751
    %v1753 = vrot.slane %v1748, %v1752
    %v1755 = vadd.f32 %v1747, %v1753
    %v1756 = vld [vmem:[%s75] sm:$0xff]
    %v1757 = vld [vmem:[%s75 + $0x8] sm:$0xff]
    %v1758 = vld [vmem:[%s75 + $0x10] sm:$0xff]
    %v1759 = vld [vmem:[%s75 + $0x18] sm:$0xff]
    %v1760 = vld [vmem:[%s73] sm:$0x1]
    %v1762 = vlaneseq
    %v1763 = vshrl.u32 %v1762, 7
    %v1764 = vsub.s32 0, %v1763
    %v1765 = vrot.slane %v1760, %v1764
    %v1768 = vsel %vm419, %v1755, 0
    %1770 = vmatprep.subr.mxu0 0.0
    %1771 = vmatpush1.msra.mxu0 %v1756
    %1772 = vmatprep.subr.mxu0 0.0
    %1773 = vmatpush1.msra.mxu0 %v1757
    %1774 = vmatprep.subr.mxu0 0.0
    %1775 = vmatpush1.msra.mxu0 %v1758
    %1776 = vmatprep.subr.mxu0 0.0
    %1777 = vmatpush1.msra.mxu0 %v1759
    %1778 = vmatprep.subr.mxu0 0.0
    %1779 = vmatpush1.msra.mxu0 0.0
    %1780 = vmatprep.subr.mxu0 0.0
    %1781 = vmatpush1.msra.mxu0 0.0
    %1782 = vmatprep.subr.mxu0 0.0
    %1783 = vmatpush1.msra.mxu0 0.0
    %1784 = vmatprep.subr.mxu0 0.0
    %1785 = vmatpush1.msra.mxu0 0.0
    %1786 = vmatprep.subr.mxu0 0.0
    %1787 = vmatpush1.msra.mxu0 0.0
    %1788 = vmatprep.subr.mxu0 0.0
    %1789 = vmatpush1.msra.mxu0 0.0
    %1790 = vmatprep.subr.mxu0 0.0
    %1791 = vmatpush1.msra.mxu0 0.0
    %1792 = vmatprep.subr.mxu0 0.0
    %1793 = vmatpush1.msra.mxu0 0.0
    %1794 = vmatprep.subr.mxu0 0.0
    %1795 = vmatpush1.msra.mxu0 0.0
    %1796 = vmatprep.subr.mxu0 0.0
    %1797 = vmatpush1.msra.mxu0 0.0
    %1798 = vmatprep.subr.mxu0 0.0
    %1799 = vmatpush1.msra.mxu0 0.0
    %1800 = vmatprep.subr.mxu0 0.0
    %1801 = vmatpush1.msra.mxu0 0.0
    %1802 = vmatprep.subr.mxu0 0.0
    %1803 = vmatpush1.msra.mxu0 0.0
    %1804 = vmatprep.subr.mxu0 0.0
    %1805 = vmatpush1.msra.mxu0 0.0
    %1806 = vmatprep.subr.mxu0 0.0
    %1807 = vmatpush1.msra.mxu0 0.0
    %1808 = vmatprep.subr.mxu0 0.0
    %1809 = vmatpush1.msra.mxu0 0.0
    %1810 = vmatprep.subr.mxu0 0.0
    %1811 = vmatpush1.msra.mxu0 0.0
    %1812 = vmatprep.subr.mxu0 0.0
    %1813 = vmatpush1.msra.mxu0 0.0
    %1814 = vmatprep.subr.mxu0 0.0
    %1815 = vmatpush1.msra.mxu0 0.0
    %1816 = vmatprep.subr.mxu0 0.0
    %1817 = vmatpush1.msra.mxu0 0.0
    %1818 = vmatprep.subr.mxu0 0.0
    %1819 = vmatpush1.msra.mxu0 0.0
    %1820 = vmatprep.subr.mxu0 0.0
    %1821 = vmatpush1.msra.mxu0 0.0
    %1822 = vmatprep.subr.mxu0 0.0
    %1823 = vmatpush1.msra.mxu0 0.0
    %1824 = vmatprep.subr.mxu0 0.0
    %1825 = vmatpush1.msra.mxu0 0.0
    %1826 = vmatprep.subr.mxu0 0.0
    %1827 = vmatpush1.msra.mxu0 0.0
    %1828 = vmatprep.subr.mxu0 0.0
    %1829 = vmatpush1.msra.mxu0 0.0
    %1830 = vmatprep.subr.mxu0 0.0
    %1831 = vmatpush1.msra.mxu0 0.0
    %1832 = vmatprep.subr.mxu0 0.0
    %1833 = vmatpush1.msra.mxu0 0.0
    %1834 = vmatprep.mubr.f32.mxu0 0.0
    %1835 = vmatmul.mubr.f32.gmra.mrb[0].mxu0 %v1768
    %v1836 = vpop.f32.mrb[0].mxu0
    %v1837 = vadd.f32 %v1765, %v1836
    %v1838 = vpop.f32.mrb[0].mxu0
    %1839 = vdwg.mxu0
    %v1840 = vld [vmem:[%s69] sm:$0x1]
    %v1842 = vlaneseq
    %v1843 = vshrl.u32 %v1842, 7
    %v1844 = vsub.s32 0, %v1843
    %v1845 = vrot.slane %v1840, %v1844
    %v1847 = vadd.f32 %v1845, 0.0
    %1849 = vrot.lane.b32.xlu0 %v1837, 96
    %v1850 = vpop.permute.xlu0 %1849
    %v1851 = vsel %vm545, %v1837, 0
    %v1853 = vsel %vm545, %v1850, 0
    %1855 = vmatprep.subr.mxu0 0.0
    %1856 = vmatpush1.xpose.msra.mxu0 %v1853
    %1857 = vmatprep.subr.mxu0 0.0
    %1858 = vmatpush1.xpose.msra.mxu0 0.0
    %1859 = vmatprep.subr.mxu0 0.0
    %1860 = vmatpush1.xpose.msra.mxu0 0.0
    %1861 = vmatprep.subr.mxu0 0.0
    %1862 = vmatpush1.xpose.msra.mxu0 0.0
    %1863 = vmatprep.subr.mxu0 0.0
    %1864 = vmatpush1.xpose.msra.mxu0 0.0
    %1865 = vmatprep.subr.mxu0 0.0
    %1866 = vmatpush1.xpose.msra.mxu0 0.0
    %1867 = vmatprep.subr.mxu0 0.0
    %1868 = vmatpush1.xpose.msra.mxu0 0.0
    %1869 = vmatprep.subr.mxu0 0.0
    %1870 = vmatpush1.xpose.msra.mxu0 0.0
    %1871 = vmatprep.subr.mxu0 0.0
    %1872 = vmatpush1.xpose.msra.mxu0 0.0
    %1873 = vmatprep.subr.mxu0 0.0
    %1874 = vmatpush1.xpose.msra.mxu0 0.0
    %1875 = vmatprep.subr.mxu0 0.0
    %1876 = vmatpush1.xpose.msra.mxu0 0.0
    %1877 = vmatprep.subr.mxu0 0.0
    %1878 = vmatpush1.xpose.msra.mxu0 0.0
    %1879 = vmatprep.subr.mxu0 0.0
    %1880 = vmatpush1.xpose.msra.mxu0 0.0
    %1881 = vmatprep.subr.mxu0 0.0
    %1882 = vmatpush1.xpose.msra.mxu0 0.0
    %1883 = vmatprep.subr.mxu0 0.0
    %1884 = vmatpush1.xpose.msra.mxu0 0.0
    %1885 = vmatprep.subr.mxu0 0.0
    %1886 = vmatpush1.xpose.msra.mxu0 0.0
    %1887 = vmatprep.subr.mxu0 0.0
    %1888 = vmatpush1.xpose.msra.mxu0 0.0
    %1889 = vmatprep.subr.mxu0 0.0
    %1890 = vmatpush1.xpose.msra.mxu0 0.0
    %1891 = vmatprep.subr.mxu0 0.0
    %1892 = vmatpush1.xpose.msra.mxu0 0.0
    %1893 = vmatprep.subr.mxu0 0.0
    %1894 = vmatpush1.xpose.msra.mxu0 0.0
    %1895 = vmatprep.subr.mxu0 0.0
    %1896 = vmatpush1.xpose.msra.mxu0 0.0
    %1897 = vmatprep.subr.mxu0 0.0
    %1898 = vmatpush1.xpose.msra.mxu0 0.0
    %1899 = vmatprep.subr.mxu0 0.0
    %1900 = vmatpush1.xpose.msra.mxu0 0.0
    %1901 = vmatprep.subr.mxu0 0.0
    %1902 = vmatpush1.xpose.msra.mxu0 0.0
    %1903 = vmatprep.subr.mxu0 0.0
    %1904 = vmatpush1.xpose.msra.mxu0 0.0
    %1905 = vmatprep.subr.mxu0 0.0
    %1906 = vmatpush1.xpose.msra.mxu0 0.0
    %1907 = vmatprep.subr.mxu0 0.0
    %1908 = vmatpush1.xpose.msra.mxu0 0.0
    %1909 = vmatprep.subr.mxu0 0.0
    %1910 = vmatpush1.xpose.msra.mxu0 0.0
    %1911 = vmatprep.subr.mxu0 0.0
    %1912 = vmatpush1.xpose.msra.mxu0 0.0
    %1913 = vmatprep.subr.mxu0 0.0
    %1914 = vmatpush1.xpose.msra.mxu0 0.0
    %1915 = vmatprep.subr.mxu0 0.0
    %1916 = vmatpush1.xpose.msra.mxu0 0.0
    %1917 = vmatprep.subr.mxu0 0.0
    %1918 = vmatpush1.xpose.msra.mxu0 0.0
    %1919 = vmatprep.mubr.f32.mxu0 0.0
    %1920 = vmatmul.mubr.f32.gmra.mrb[0].mxu0 %v1851
    %v1921 = vpop.f32.mrb[0].mxu0
    %v1922 = vadd.f32 0.0, %v1921
    %v1923 = vpop.f32.mrb[0].mxu0
    %1924 = vdwg.mxu0
    %v1925 = vmul.f32 %v1922, 0.35355338
    %v1926 = vadd.f32 %v1925, %v331
    %v1927 = vsel %vm545, %v1926, -inf
    %1928 = vmax.xlane.f32.xlu0 %v1927
    %v1929 = vpop.xlane.xlu0 %1928
    %v1930 = vsub.f32 %v1926, %v1929
    %v1931 = vmul.f32 %v1930, 1.442695
    %v1932 = vpow.pop %v1931
    %v1933 = vsel %vm545, %v1932, 0.0
    %1934 = vadd.xlane.f32.xlu0 %v1933
    %v1935 = vpop.xlane.xlu0 %1934
    %v1936 = vrcp.pop %v1935
    %v1937 = vmul.f32 %v1932, %v1936
    %1938 = vrot.lane.b32.xlu0 %v1837, 64
    %v1939 = vpop.permute.xlu0 %1938
    %v1942 = vsel %vm545, %v1937, 0
    %1944 = vmatprep.subr.mxu0 0.0
    %1945 = vmatpush1.msra.mxu0 %v1939
    %1946 = vmatprep.subr.mxu0 0.0
    %1947 = vmatpush1.msra.mxu0 0.0
    %1948 = vmatprep.subr.mxu0 0.0
    %1949 = vmatpush1.msra.mxu0 0.0
    %1950 = vmatprep.subr.mxu0 0.0
    %1951 = vmatpush1.msra.mxu0 0.0
    %1952 = vmatprep.subr.mxu0 0.0
    %1953 = vmatpush1.msra.mxu0 0.0
    %1954 = vmatprep.subr.mxu0 0.0
    %1955 = vmatpush1.msra.mxu0 0.0
    %1956 = vmatprep.subr.mxu0 0.0
    %1957 = vmatpush1.msra.mxu0 0.0
    %1958 = vmatprep.subr.mxu0 0.0
    %1959 = vmatpush1.msra.mxu0 0.0
    %1960 = vmatprep.subr.mxu0 0.0
    %1961 = vmatpush1.msra.mxu0 0.0
    %1962 = vmatprep.subr.mxu0 0.0
    %1963 = vmatpush1.msra.mxu0 0.0
    %1964 = vmatprep.subr.mxu0 0.0
    %1965 = vmatpush1.msra.mxu0 0.0
    %1966 = vmatprep.subr.mxu0 0.0
    %1967 = vmatpush1.msra.mxu0 0.0
    %1968 = vmatprep.subr.mxu0 0.0
    %1969 = vmatpush1.msra.mxu0 0.0
    %1970 = vmatprep.subr.mxu0 0.0
    %1971 = vmatpush1.msra.mxu0 0.0
    %1972 = vmatprep.subr.mxu0 0.0
    %1973 = vmatpush1.msra.mxu0 0.0
    %1974 = vmatprep.subr.mxu0 0.0
    %1975 = vmatpush1.msra.mxu0 0.0
    %1976 = vmatprep.subr.mxu0 0.0
    %1977 = vmatpush1.msra.mxu0 0.0
    %1978 = vmatprep.subr.mxu0 0.0
    %1979 = vmatpush1.msra.mxu0 0.0
    %1980 = vmatprep.subr.mxu0 0.0
    %1981 = vmatpush1.msra.mxu0 0.0
    %1982 = vmatprep.subr.mxu0 0.0
    %1983 = vmatpush1.msra.mxu0 0.0
    %1984 = vmatprep.subr.mxu0 0.0
    %1985 = vmatpush1.msra.mxu0 0.0
    %1986 = vmatprep.subr.mxu0 0.0
    %1987 = vmatpush1.msra.mxu0 0.0
    %1988 = vmatprep.subr.mxu0 0.0
    %1989 = vmatpush1.msra.mxu0 0.0
    %1990 = vmatprep.subr.mxu0 0.0
    %1991 = vmatpush1.msra.mxu0 0.0
    %1992 = vmatprep.subr.mxu0 0.0
    %1993 = vmatpush1.msra.mxu0 0.0
    %1994 = vmatprep.subr.mxu0 0.0
    %1995 = vmatpush1.msra.mxu0 0.0
    %1996 = vmatprep.subr.mxu0 0.0
    %1997 = vmatpush1.msra.mxu0 0.0
    %1998 = vmatprep.subr.mxu0 0.0
    %1999 = vmatpush1.msra.mxu0 0.0
    %2000 = vmatprep.subr.mxu0 0.0
    %2001 = vmatpush1.msra.mxu0 0.0
    %2002 = vmatprep.subr.mxu0 0.0
    %2003 = vmatpush1.msra.mxu0 0.0
    %2004 = vmatprep.subr.mxu0 0.0
    %2005 = vmatpush1.msra.mxu0 0.0
    %2006 = vmatprep.subr.mxu0 0.0
    %2007 = vmatpush1.msra.mxu0 0.0
    %2008 = vmatprep.mubr.f32.mxu0 0.0
    %2009 = vmatmul.mubr.f32.gmra.mrb[0].mxu0 %v1942
    %v2010 = vpop.f32.mrb[0].mxu0
    %v2011 = vadd.f32 0.0, %v2010
    %v2012 = vpop.f32.mrb[0].mxu0
    %2013 = vdwg.mxu0
    %v2014 = vld [vmem:[%s71] sm:$0xff]
    %v2016 = vsel %vm545, %v2011, 0
    %2018 = vmatprep.subr.mxu0 0.0
    %2019 = vmatpush1.msra.mxu0 %v2014
    %2020 = vmatprep.subr.mxu0 0.0
    %2021 = vmatpush1.msra.mxu0 0.0
    %2022 = vmatprep.subr.mxu0 0.0
    %2023 = vmatpush1.msra.mxu0 0.0
    %2024 = vmatprep.subr.mxu0 0.0
    %2025 = vmatpush1.msra.mxu0 0.0
    %2026 = vmatprep.subr.mxu0 0.0
    %2027 = vmatpush1.msra.mxu0 0.0
    %2028 = vmatprep.subr.mxu0 0.0
    %2029 = vmatpush1.msra.mxu0 0.0
    %2030 = vmatprep.subr.mxu0 0.0
    %2031 = vmatpush1.msra.mxu0 0.0
    %2032 = vmatprep.subr.mxu0 0.0
    %2033 = vmatpush1.msra.mxu0 0.0
    %2034 = vmatprep.subr.mxu0 0.0
    %2035 = vmatpush1.msra.mxu0 0.0
    %2036 = vmatprep.subr.mxu0 0.0
    %2037 = vmatpush1.msra.mxu0 0.0
    %2038 = vmatprep.subr.mxu0 0.0
    %2039 = vmatpush1.msra.mxu0 0.0
    %2040 = vmatprep.subr.mxu0 0.0
    %2041 = vmatpush1.msra.mxu0 0.0
    %2042 = vmatprep.subr.mxu0 0.0
    %2043 = vmatpush1.msra.mxu0 0.0
    %2044 = vmatprep.subr.mxu0 0.0
    %2045 = vmatpush1.msra.mxu0 0.0
    %2046 = vmatprep.subr.mxu0 0.0
    %2047 = vmatpush1.msra.mxu0 0.0
    %2048 = vmatprep.subr.mxu0 0.0
    %2049 = vmatpush1.msra.mxu0 0.0
    %2050 = vmatprep.subr.mxu0 0.0
    %2051 = vmatpush1.msra.mxu0 0.0
    %2052 = vmatprep.subr.mxu0 0.0
    %2053 = vmatpush1.msra.mxu0 0.0
    %2054 = vmatprep.subr.mxu0 0.0
    %2055 = vmatpush1.msra.mxu0 0.0
    %2056 = vmatprep.subr.mxu0 0.0
    %2057 = vmatpush1.msra.mxu0 0.0
    %2058 = vmatprep.subr.mxu0 0.0
    %2059 = vmatpush1.msra.mxu0 0.0
    %2060 = vmatprep.subr.mxu0 0.0
    %2061 = vmatpush1.msra.mxu0 0.0
    %2062 = vmatprep.subr.mxu0 0.0
    %2063 = vmatpush1.msra.mxu0 0.0
    %2064 = vmatprep.subr.mxu0 0.0
    %2065 = vmatpush1.msra.mxu0 0.0
    %2066 = vmatprep.subr.mxu0 0.0
    %2067 = vmatpush1.msra.mxu0 0.0
    %2068 = vmatprep.subr.mxu0 0.0
    %2069 = vmatpush1.msra.mxu0 0.0
    %2070 = vmatprep.subr.mxu0 0.0
    %2071 = vmatpush1.msra.mxu0 0.0
    %2072 = vmatprep.subr.mxu0 0.0
    %2073 = vmatpush1.msra.mxu0 0.0
    %2074 = vmatprep.subr.mxu0 0.0
    %2075 = vmatpush1.msra.mxu0 0.0
    %2076 = vmatprep.subr.mxu0 0.0
    %2077 = vmatpush1.msra.mxu0 0.0
    %2078 = vmatprep.subr.mxu0 0.0
    %2079 = vmatpush1.msra.mxu0 0.0
    %2080 = vmatprep.subr.mxu0 0.0
    %2081 = vmatpush1.msra.mxu0 0.0
    %2082 = vmatprep.mubr.f32.mxu0 0.0
    %2083 = vmatmul.mubr.f32.gmra.mrb[0].mxu0 %v2016
    %v2084 = vpop.f32.mrb[0].mxu0
    %v2085 = vadd.f32 0.0, %v2084
    %v2086 = vpop.f32.mrb[0].mxu0
    %2087 = vdwg.mxu0
    %v2088 = vadd.f32 %v1847, %v2085
    %2089 = vrot.lane.b32.xlu0 %v1837, 120
    %v2090 = vpop.permute.xlu0 %2089
    %2091 = vrot.lane.b32.xlu0 %v1837, 88
    %v2092 = vpop.permute.xlu0 %2091
    %v2093 = vsel %vm545, %v2090, 0
    %v2095 = vsel %vm545, %v2092, 0
    %2097 = vmatprep.subr.mxu0 0.0
    %2098 = vmatpush1.xpose.msra.mxu0 %v2095
    %2099 = vmatprep.subr.mxu0 0.0
    %2100 = vmatpush1.xpose.msra.mxu0 0.0
    %2101 = vmatprep.subr.mxu0 0.0
    %2102 = vmatpush1.xpose.msra.mxu0 0.0
    %2103 = vmatprep.subr.mxu0 0.0
    %2104 = vmatpush1.xpose.msra.mxu0 0.0
    %2105 = vmatprep.subr.mxu0 0.0
    %2106 = vmatpush1.xpose.msra.mxu0 0.0
    %2107 = vmatprep.subr.mxu0 0.0
    %2108 = vmatpush1.xpose.msra.mxu0 0.0
    %2109 = vmatprep.subr.mxu0 0.0
    %2110 = vmatpush1.xpose.msra.mxu0 0.0
    %2111 = vmatprep.subr.mxu0 0.0
    %2112 = vmatpush1.xpose.msra.mxu0 0.0
    %2113 = vmatprep.subr.mxu0 0.0
    %2114 = vmatpush1.xpose.msra.mxu0 0.0
    %2115 = vmatprep.subr.mxu0 0.0
    %2116 = vmatpush1.xpose.msra.mxu0 0.0
    %2117 = vmatprep.subr.mxu0 0.0
    %2118 = vmatpush1.xpose.msra.mxu0 0.0
    %2119 = vmatprep.subr.mxu0 0.0
    %2120 = vmatpush1.xpose.msra.mxu0 0.0
    %2121 = vmatprep.subr.mxu0 0.0
    %2122 = vmatpush1.xpose.msra.mxu0 0.0
    %2123 = vmatprep.subr.mxu0 0.0
    %2124 = vmatpush1.xpose.msra.mxu0 0.0
    %2125 = vmatprep.subr.mxu0 0.0
    %2126 = vmatpush1.xpose.msra.mxu0 0.0
    %2127 = vmatprep.subr.mxu0 0.0
    %2128 = vmatpush1.xpose.msra.mxu0 0.0
    %2129 = vmatprep.subr.mxu0 0.0
    %2130 = vmatpush1.xpose.msra.mxu0 0.0
    %2131 = vmatprep.subr.mxu0 0.0
    %2132 = vmatpush1.xpose.msra.mxu0 0.0
    %2133 = vmatprep.subr.mxu0 0.0
    %2134 = vmatpush1.xpose.msra.mxu0 0.0
    %2135 = vmatprep.subr.mxu0 0.0
    %2136 = vmatpush1.xpose.msra.mxu0 0.0
    %2137 = vmatprep.subr.mxu0 0.0
    %2138 = vmatpush1.xpose.msra.mxu0 0.0
    %2139 = vmatprep.subr.mxu0 0.0
    %2140 = vmatpush1.xpose.msra.mxu0 0.0
    %2141 = vmatprep.subr.mxu0 0.0
    %2142 = vmatpush1.xpose.msra.mxu0 0.0
    %2143 = vmatprep.subr.mxu0 0.0
    %2144 = vmatpush1.xpose.msra.mxu0 0.0
    %2145 = vmatprep.subr.mxu0 0.0
    %2146 = vmatpush1.xpose.msra.mxu0 0.0
    %2147 = vmatprep.subr.mxu0 0.0
    %2148 = vmatpush1.xpose.msra.mxu0 0.0
    %2149 = vmatprep.subr.mxu0 0.0
    %2150 = vmatpush1.xpose.msra.mxu0 0.0
    %2151 = vmatprep.subr.mxu0 0.0
    %2152 = vmatpush1.xpose.msra.mxu0 0.0
    %2153 = vmatprep.subr.mxu0 0.0
    %2154 = vmatpush1.xpose.msra.mxu0 0.0
    %2155 = vmatprep.subr.mxu0 0.0
    %2156 = vmatpush1.xpose.msra.mxu0 0.0
    %2157 = vmatprep.subr.mxu0 0.0
    %2158 = vmatpush1.xpose.msra.mxu0 0.0
    %2159 = vmatprep.subr.mxu0 0.0
    %2160 = vmatpush1.xpose.msra.mxu0 0.0
    %2161 = vmatprep.mubr.f32.mxu0 0.0
    %2162 = vmatmul.mubr.f32.gmra.mrb[0].mxu0 %v2093
    %v2163 = vpop.f32.mrb[0].mxu0
    %v2164 = vadd.f32 0.0, %v2163
    %v2165 = vpop.f32.mrb[0].mxu0
    %2166 = vdwg.mxu0
    %v2167 = vmul.f32 %v2164, 0.35355338
    %v2168 = vadd.f32 %v2167, %v331
    %v2169 = vsel %vm545, %v2168, -inf
    %2170 = vmax.xlane.f32.xlu0 %v2169
    %v2171 = vpop.xlane.xlu0 %2170
    %v2172 = vsub.f32 %v2168, %v2171
    %v2173 = vmul.f32 %v2172, 1.442695
    %v2174 = vpow.pop %v2173
    %v2175 = vsel %vm545, %v2174, 0.0
    %2176 = vadd.xlane.f32.xlu0 %v2175
    %v2177 = vpop.xlane.xlu0 %2176
    %v2178 = vrcp.pop %v2177
    %v2179 = vmul.f32 %v2174, %v2178
    %2180 = vrot.lane.b32.xlu0 %v1837, 56
    %v2181 = vpop.permute.xlu0 %2180
    %v2184 = vsel %vm545, %v2179, 0
    %2186 = vmatprep.subr.mxu0 0.0
    %2187 = vmatpush1.msra.mxu0 %v2181
    %2188 = vmatprep.subr.mxu0 0.0
    %2189 = vmatpush1.msra.mxu0 0.0
    %2190 = vmatprep.subr.mxu0 0.0
    %2191 = vmatpush1.msra.mxu0 0.0
    %2192 = vmatprep.subr.mxu0 0.0
    %2193 = vmatpush1.msra.mxu0 0.0
    %2194 = vmatprep.subr.mxu0 0.0
    %2195 = vmatpush1.msra.mxu0 0.0
    %2196 = vmatprep.subr.mxu0 0.0
    %2197 = vmatpush1.msra.mxu0 0.0
    %2198 = vmatprep.subr.mxu0 0.0
    %2199 = vmatpush1.msra.mxu0 0.0
    %2200 = vmatprep.subr.mxu0 0.0
    %2201 = vmatpush1.msra.mxu0 0.0
    %2202 = vmatprep.subr.mxu0 0.0
    %2203 = vmatpush1.msra.mxu0 0.0
    %2204 = vmatprep.subr.mxu0 0.0
    %2205 = vmatpush1.msra.mxu0 0.0
    %2206 = vmatprep.subr.mxu0 0.0
    %2207 = vmatpush1.msra.mxu0 0.0
    %2208 = vmatprep.subr.mxu0 0.0
    %2209 = vmatpush1.msra.mxu0 0.0
    %2210 = vmatprep.subr.mxu0 0.0
    %2211 = vmatpush1.msra.mxu0 0.0
    %2212 = vmatprep.subr.mxu0 0.0
    %2213 = vmatpush1.msra.mxu0 0.0
    %2214 = vmatprep.subr.mxu0 0.0
    %2215 = vmatpush1.msra.mxu0 0.0
    %2216 = vmatprep.subr.mxu0 0.0
    %2217 = vmatpush1.msra.mxu0 0.0
    %2218 = vmatprep.subr.mxu0 0.0
    %2219 = vmatpush1.msra.mxu0 0.0
    %2220 = vmatprep.subr.mxu0 0.0
    %2221 = vmatpush1.msra.mxu0 0.0
    %2222 = vmatprep.subr.mxu0 0.0
    %2223 = vmatpush1.msra.mxu0 0.0
    %2224 = vmatprep.subr.mxu0 0.0
    %2225 = vmatpush1.msra.mxu0 0.0
    %2226 = vmatprep.subr.mxu0 0.0
    %2227 = vmatpush1.msra.mxu0 0.0
    %2228 = vmatprep.subr.mxu0 0.0
    %2229 = vmatpush1.msra.mxu0 0.0
    %2230 = vmatprep.subr.mxu0 0.0
    %2231 = vmatpush1.msra.mxu0 0.0
    %2232 = vmatprep.subr.mxu0 0.0
    %2233 = vmatpush1.msra.mxu0 0.0
    %2234 = vmatprep.subr.mxu0 0.0
    %2235 = vmatpush1.msra.mxu0 0.0
    %2236 = vmatprep.subr.mxu0 0.0
    %2237 = vmatpush1.msra.mxu0 0.0
    %2238 = vmatprep.subr.mxu0 0.0
    %2239 = vmatpush1.msra.mxu0 0.0
    %2240 = vmatprep.subr.mxu0 0.0
    %2241 = vmatpush1.msra.mxu0 0.0
    %2242 = vmatprep.subr.mxu0 0.0
    %2243 = vmatpush1.msra.mxu0 0.0
    %2244 = vmatprep.subr.mxu0 0.0
    %2245 = vmatpush1.msra.mxu0 0.0
    %2246 = vmatprep.subr.mxu0 0.0
    %2247 = vmatpush1.msra.mxu0 0.0
    %2248 = vmatprep.subr.mxu0 0.0
    %2249 = vmatpush1.msra.mxu0 0.0
    %2250 = vmatprep.mubr.f32.mxu0 0.0
    %2251 = vmatmul.mubr.f32.gmra.mrb[0].mxu0 %v2184
    %v2252 = vpop.f32.mrb[0].mxu0
    %v2253 = vadd.f32 0.0, %v2252
    %v2254 = vpop.f32.mrb[0].mxu0
    %2255 = vdwg.mxu0
    %v2256 = vld [vmem:[%s71 + $0x8] sm:$0xff]
    %v2258 = vsel %vm545, %v2253, 0
    %2260 = vmatprep.subr.mxu0 0.0
    %2261 = vmatpush1.msra.mxu0 %v2256
    %2262 = vmatprep.subr.mxu0 0.0
    %2263 = vmatpush1.msra.mxu0 0.0
    %2264 = vmatprep.subr.mxu0 0.0
    %2265 = vmatpush1.msra.mxu0 0.0
    %2266 = vmatprep.subr.mxu0 0.0
    %2267 = vmatpush1.msra.mxu0 0.0
    %2268 = vmatprep.subr.mxu0 0.0
    %2269 = vmatpush1.msra.mxu0 0.0
    %2270 = vmatprep.subr.mxu0 0.0
    %2271 = vmatpush1.msra.mxu0 0.0
    %2272 = vmatprep.subr.mxu0 0.0
    %2273 = vmatpush1.msra.mxu0 0.0
    %2274 = vmatprep.subr.mxu0 0.0
    %2275 = vmatpush1.msra.mxu0 0.0
    %2276 = vmatprep.subr.mxu0 0.0
    %2277 = vmatpush1.msra.mxu0 0.0
    %2278 = vmatprep.subr.mxu0 0.0
    %2279 = vmatpush1.msra.mxu0 0.0
    %2280 = vmatprep.subr.mxu0 0.0
    %2281 = vmatpush1.msra.mxu0 0.0
    %2282 = vmatprep.subr.mxu0 0.0
    %2283 = vmatpush1.msra.mxu0 0.0
    %2284 = vmatprep.subr.mxu0 0.0
    %2285 = vmatpush1.msra.mxu0 0.0
    %2286 = vmatprep.subr.mxu0 0.0
    %2287 = vmatpush1.msra.mxu0 0.0
    %2288 = vmatprep.subr.mxu0 0.0
    %2289 = vmatpush1.msra.mxu0 0.0
    %2290 = vmatprep.subr.mxu0 0.0
    %2291 = vmatpush1.msra.mxu0 0.0
    %2292 = vmatprep.subr.mxu0 0.0
    %2293 = vmatpush1.msra.mxu0 0.0
    %2294 = vmatprep.subr.mxu0 0.0
    %2295 = vmatpush1.msra.mxu0 0.0
    %2296 = vmatprep.subr.mxu0 0.0
    %2297 = vmatpush1.msra.mxu0 0.0
    %2298 = vmatprep.subr.mxu0 0.0
    %2299 = vmatpush1.msra.mxu0 0.0
    %2300 = vmatprep.subr.mxu0 0.0
    %2301 = vmatpush1.msra.mxu0 0.0
    %2302 = vmatprep.subr.mxu0 0.0
    %2303 = vmatpush1.msra.mxu0 0.0
    %2304 = vmatprep.subr.mxu0 0.0
    %2305 = vmatpush1.msra.mxu0 0.0
    %2306 = vmatprep.subr.mxu0 0.0
    %2307 = vmatpush1.msra.mxu0 0.0
    %2308 = vmatprep.subr.mxu0 0.0
    %2309 = vmatpush1.msra.mxu0 0.0
    %2310 = vmatprep.subr.mxu0 0.0
    %2311 = vmatpush1.msra.mxu0 0.0
    %2312 = vmatprep.subr.mxu0 0.0
    %2313 = vmatpush1.msra.mxu0 0.0
    %2314 = vmatprep.subr.mxu0 0.0
    %2315 = vmatpush1.msra.mxu0 0.0
    %2316 = vmatprep.subr.mxu0 0.0
    %2317 = vmatpush1.msra.mxu0 0.0
    %2318 = vmatprep.subr.mxu0 0.0
    %2319 = vmatpush1.msra.mxu0 0.0
    %2320 = vmatprep.subr.mxu0 0.0
    %2321 = vmatpush1.msra.mxu0 0.0
    %2322 = vmatprep.subr.mxu0 0.0
    %2323 = vmatpush1.msra.mxu0 0.0
    %2324 = vmatprep.mubr.f32.mxu0 0.0
    %2325 = vmatmul.mubr.f32.gmra.mrb[0].mxu0 %v2258
    %v2326 = vpop.f32.mrb[0].mxu0
    %v2327 = vadd.f32 0.0, %v2326
    %v2328 = vpop.f32.mrb[0].mxu0
    %2329 = vdwg.mxu0
    %v2330 = vadd.f32 %v2088, %v2327
    %2331 = vrot.lane.b32.xlu0 %v1837, 112
    %v2332 = vpop.permute.xlu0 %2331
    %2333 = vrot.lane.b32.xlu0 %v1837, 80
    %v2334 = vpop.permute.xlu0 %2333
    %v2335 = vsel %vm545, %v2332, 0
    %v2337 = vsel %vm545, %v2334, 0
    %2339 = vmatprep.subr.mxu0 0.0
    %2340 = vmatpush1.xpose.msra.mxu0 %v2337
    %2341 = vmatprep.subr.mxu0 0.0
    %2342 = vmatpush1.xpose.msra.mxu0 0.0
    %2343 = vmatprep.subr.mxu0 0.0
    %2344 = vmatpush1.xpose.msra.mxu0 0.0
    %2345 = vmatprep.subr.mxu0 0.0
    %2346 = vmatpush1.xpose.msra.mxu0 0.0
    %2347 = vmatprep.subr.mxu0 0.0
    %2348 = vmatpush1.xpose.msra.mxu0 0.0
    %2349 = vmatprep.subr.mxu0 0.0
    %2350 = vmatpush1.xpose.msra.mxu0 0.0
    %2351 = vmatprep.subr.mxu0 0.0
    %2352 = vmatpush1.xpose.msra.mxu0 0.0
    %2353 = vmatprep.subr.mxu0 0.0
    %2354 = vmatpush1.xpose.msra.mxu0 0.0
    %2355 = vmatprep.subr.mxu0 0.0
    %2356 = vmatpush1.xpose.msra.mxu0 0.0
    %2357 = vmatprep.subr.mxu0 0.0
    %2358 = vmatpush1.xpose.msra.mxu0 0.0
    %2359 = vmatprep.subr.mxu0 0.0
    %2360 = vmatpush1.xpose.msra.mxu0 0.0
    %2361 = vmatprep.subr.mxu0 0.0
    %2362 = vmatpush1.xpose.msra.mxu0 0.0
    %2363 = vmatprep.subr.mxu0 0.0
    %2364 = vmatpush1.xpose.msra.mxu0 0.0
    %2365 = vmatprep.subr.mxu0 0.0
    %2366 = vmatpush1.xpose.msra.mxu0 0.0
    %2367 = vmatprep.subr.mxu0 0.0
    %2368 = vmatpush1.xpose.msra.mxu0 0.0
    %2369 = vmatprep.subr.mxu0 0.0
    %2370 = vmatpush1.xpose.msra.mxu0 0.0
    %2371 = vmatprep.subr.mxu0 0.0
    %2372 = vmatpush1.xpose.msra.mxu0 0.0
    %2373 = vmatprep.subr.mxu0 0.0
    %2374 = vmatpush1.xpose.msra.mxu0 0.0
    %2375 = vmatprep.subr.mxu0 0.0
    %2376 = vmatpush1.xpose.msra.mxu0 0.0
    %2377 = vmatprep.subr.mxu0 0.0
    %2378 = vmatpush1.xpose.msra.mxu0 0.0
    %2379 = vmatprep.subr.mxu0 0.0
    %2380 = vmatpush1.xpose.msra.mxu0 0.0
    %2381 = vmatprep.subr.mxu0 0.0
    %2382 = vmatpush1.xpose.msra.mxu0 0.0
    %2383 = vmatprep.subr.mxu0 0.0
    %2384 = vmatpush1.xpose.msra.mxu0 0.0
    %2385 = vmatprep.subr.mxu0 0.0
    %2386 = vmatpush1.xpose.msra.mxu0 0.0
    %2387 = vmatprep.subr.mxu0 0.0
    %2388 = vmatpush1.xpose.msra.mxu0 0.0
    %2389 = vmatprep.subr.mxu0 0.0
    %2390 = vmatpush1.xpose.msra.mxu0 0.0
    %2391 = vmatprep.subr.mxu0 0.0
    %2392 = vmatpush1.xpose.msra.mxu0 0.0
    %2393 = vmatprep.subr.mxu0 0.0
    %2394 = vmatpush1.xpose.msra.mxu0 0.0
    %2395 = vmatprep.subr.mxu0 0.0
    %2396 = vmatpush1.xpose.msra.mxu0 0.0
    %2397 = vmatprep.subr.mxu0 0.0
    %2398 = vmatpush1.xpose.msra.mxu0 0.0
    %2399 = vmatprep.subr.mxu0 0.0
    %2400 = vmatpush1.xpose.msra.mxu0 0.0
    %2401 = vmatprep.subr.mxu0 0.0
    %2402 = vmatpush1.xpose.msra.mxu0 0.0
    %2403 = vmatprep.mubr.f32.mxu0 0.0
    %2404 = vmatmul.mubr.f32.gmra.mrb[0].mxu0 %v2335
    %v2405 = vpop.f32.mrb[0].mxu0
    %v2406 = vadd.f32 0.0, %v2405
    %v2407 = vpop.f32.mrb[0].mxu0
    %2408 = vdwg.mxu0
    %v2409 = vmul.f32 %v2406, 0.35355338
    %v2410 = vadd.f32 %v2409, %v331
    %v2411 = vsel %vm545, %v2410, -inf
    %2412 = vmax.xlane.f32.xlu0 %v2411
    %v2413 = vpop.xlane.xlu0 %2412
    %v2414 = vsub.f32 %v2410, %v2413
    %v2415 = vmul.f32 %v2414, 1.442695
    %v2416 = vpow.pop %v2415
    %v2417 = vsel %vm545, %v2416, 0.0
    %2418 = vadd.xlane.f32.xlu0 %v2417
    %v2419 = vpop.xlane.xlu0 %2418
    %v2420 = vrcp.pop %v2419
    %v2421 = vmul.f32 %v2416, %v2420
    %2422 = vrot.lane.b32.xlu0 %v1837, 48
    %v2423 = vpop.permute.xlu0 %2422
    %v2426 = vsel %vm545, %v2421, 0
    %2428 = vmatprep.subr.mxu0 0.0
    %2429 = vmatpush1.msra.mxu0 %v2423
    %2430 = vmatprep.subr.mxu0 0.0
    %2431 = vmatpush1.msra.mxu0 0.0
    %2432 = vmatprep.subr.mxu0 0.0
    %2433 = vmatpush1.msra.mxu0 0.0
    %2434 = vmatprep.subr.mxu0 0.0
    %2435 = vmatpush1.msra.mxu0 0.0
    %2436 = vmatprep.subr.mxu0 0.0
    %2437 = vmatpush1.msra.mxu0 0.0
    %2438 = vmatprep.subr.mxu0 0.0
    %2439 = vmatpush1.msra.mxu0 0.0
    %2440 = vmatprep.subr.mxu0 0.0
    %2441 = vmatpush1.msra.mxu0 0.0
    %2442 = vmatprep.subr.mxu0 0.0
    %2443 = vmatpush1.msra.mxu0 0.0
    %2444 = vmatprep.subr.mxu0 0.0
    %2445 = vmatpush1.msra.mxu0 0.0
    %2446 = vmatprep.subr.mxu0 0.0
    %2447 = vmatpush1.msra.mxu0 0.0
    %2448 = vmatprep.subr.mxu0 0.0
    %2449 = vmatpush1.msra.mxu0 0.0
    %2450 = vmatprep.subr.mxu0 0.0
    %2451 = vmatpush1.msra.mxu0 0.0
    %2452 = vmatprep.subr.mxu0 0.0
    %2453 = vmatpush1.msra.mxu0 0.0
    %2454 = vmatprep.subr.mxu0 0.0
    %2455 = vmatpush1.msra.mxu0 0.0
    %2456 = vmatprep.subr.mxu0 0.0
    %2457 = vmatpush1.msra.mxu0 0.0
    %2458 = vmatprep.subr.mxu0 0.0
    %2459 = vmatpush1.msra.mxu0 0.0
    %2460 = vmatprep.subr.mxu0 0.0
    %2461 = vmatpush1.msra.mxu0 0.0
    %2462 = vmatprep.subr.mxu0 0.0
    %2463 = vmatpush1.msra.mxu0 0.0
    %2464 = vmatprep.subr.mxu0 0.0
    %2465 = vmatpush1.msra.mxu0 0.0
    %2466 = vmatprep.subr.mxu0 0.0
    %2467 = vmatpush1.msra.mxu0 0.0
    %2468 = vmatprep.subr.mxu0 0.0
    %2469 = vmatpush1.msra.mxu0 0.0
    %2470 = vmatprep.subr.mxu0 0.0
    %2471 = vmatpush1.msra.mxu0 0.0
    %2472 = vmatprep.subr.mxu0 0.0
    %2473 = vmatpush1.msra.mxu0 0.0
    %2474 = vmatprep.subr.mxu0 0.0
    %2475 = vmatpush1.msra.mxu0 0.0
    %2476 = vmatprep.subr.mxu0 0.0
    %2477 = vmatpush1.msra.mxu0 0.0
    %2478 = vmatprep.subr.mxu0 0.0
    %2479 = vmatpush1.msra.mxu0 0.0
    %2480 = vmatprep.subr.mxu0 0.0
    %2481 = vmatpush1.msra.mxu0 0.0
    %2482 = vmatprep.subr.mxu0 0.0
    %2483 = vmatpush1.msra.mxu0 0.0
    %2484 = vmatprep.subr.mxu0 0.0
    %2485 = vmatpush1.msra.mxu0 0.0
    %2486 = vmatprep.subr.mxu0 0.0
    %2487 = vmatpush1.msra.mxu0 0.0
    %2488 = vmatprep.subr.mxu0 0.0
    %2489 = vmatpush1.msra.mxu0 0.0
    %2490 = vmatprep.subr.mxu0 0.0
    %2491 = vmatpush1.msra.mxu0 0.0
    %2492 = vmatprep.mubr.f32.mxu0 0.0
    %2493 = vmatmul.mubr.f32.gmra.mrb[0].mxu0 %v2426
    %v2494 = vpop.f32.mrb[0].mxu0
    %v2495 = vadd.f32 0.0, %v2494
    %v2496 = vpop.f32.mrb[0].mxu0
    %2497 = vdwg.mxu0
    %v2498 = vld [vmem:[%s71 + $0x10] sm:$0xff]
    %v2500 = vsel %vm545, %v2495, 0
    %2502 = vmatprep.subr.mxu0 0.0
    %2503 = vmatpush1.msra.mxu0 %v2498
    %2504 = vmatprep.subr.mxu0 0.0
    %2505 = vmatpush1.msra.mxu0 0.0
    %2506 = vmatprep.subr.mxu0 0.0
    %2507 = vmatpush1.msra.mxu0 0.0
    %2508 = vmatprep.subr.mxu0 0.0
    %2509 = vmatpush1.msra.mxu0 0.0
    %2510 = vmatprep.subr.mxu0 0.0
    %2511 = vmatpush1.msra.mxu0 0.0
    %2512 = vmatprep.subr.mxu0 0.0
    %2513 = vmatpush1.msra.mxu0 0.0
    %2514 = vmatprep.subr.mxu0 0.0
    %2515 = vmatpush1.msra.mxu0 0.0
    %2516 = vmatprep.subr.mxu0 0.0
    %2517 = vmatpush1.msra.mxu0 0.0
    %2518 = vmatprep.subr.mxu0 0.0
    %2519 = vmatpush1.msra.mxu0 0.0
    %2520 = vmatprep.subr.mxu0 0.0
    %2521 = vmatpush1.msra.mxu0 0.0
    %2522 = vmatprep.subr.mxu0 0.0
    %2523 = vmatpush1.msra.mxu0 0.0
    %2524 = vmatprep.subr.mxu0 0.0
    %2525 = vmatpush1.msra.mxu0 0.0
    %2526 = vmatprep.subr.mxu0 0.0
    %2527 = vmatpush1.msra.mxu0 0.0
    %2528 = vmatprep.subr.mxu0 0.0
    %2529 = vmatpush1.msra.mxu0 0.0
    %2530 = vmatprep.subr.mxu0 0.0
    %2531 = vmatpush1.msra.mxu0 0.0
    %2532 = vmatprep.subr.mxu0 0.0
    %2533 = vmatpush1.msra.mxu0 0.0
    %2534 = vmatprep.subr.mxu0 0.0
    %2535 = vmatpush1.msra.mxu0 0.0
    %2536 = vmatprep.subr.mxu0 0.0
    %2537 = vmatpush1.msra.mxu0 0.0
    %2538 = vmatprep.subr.mxu0 0.0
    %2539 = vmatpush1.msra.mxu0 0.0
    %2540 = vmatprep.subr.mxu0 0.0
    %2541 = vmatpush1.msra.mxu0 0.0
    %2542 = vmatprep.subr.mxu0 0.0
    %2543 = vmatpush1.msra.mxu0 0.0
    %2544 = vmatprep.subr.mxu0 0.0
    %2545 = vmatpush1.msra.mxu0 0.0
    %2546 = vmatprep.subr.mxu0 0.0
    %2547 = vmatpush1.msra.mxu0 0.0
    %2548 = vmatprep.subr.mxu0 0.0
    %2549 = vmatpush1.msra.mxu0 0.0
    %2550 = vmatprep.subr.mxu0 0.0
    %2551 = vmatpush1.msra.mxu0 0.0
    %2552 = vmatprep.subr.mxu0 0.0
    %2553 = vmatpush1.msra.mxu0 0.0
    %2554 = vmatprep.subr.mxu0 0.0
    %2555 = vmatpush1.msra.mxu0 0.0
    %2556 = vmatprep.subr.mxu0 0.0
    %2557 = vmatpush1.msra.mxu0 0.0
    %2558 = vmatprep.subr.mxu0 0.0
    %2559 = vmatpush1.msra.mxu0 0.0
    %2560 = vmatprep.subr.mxu0 0.0
    %2561 = vmatpush1.msra.mxu0 0.0
    %2562 = vmatprep.subr.mxu0 0.0
    %2563 = vmatpush1.msra.mxu0 0.0
    %2564 = vmatprep.subr.mxu0 0.0
    %2565 = vmatpush1.msra.mxu0 0.0
    %2566 = vmatprep.mubr.f32.mxu0 0.0
    %2567 = vmatmul.mubr.f32.gmra.mrb[0].mxu0 %v2500
    %v2568 = vpop.f32.mrb[0].mxu0
    %v2569 = vadd.f32 0.0, %v2568
    %v2570 = vpop.f32.mrb[0].mxu0
    %2571 = vdwg.mxu0
    %v2572 = vadd.f32 %v2330, %v2569
    %2573 = vrot.lane.b32.xlu0 %v1837, 104
    %v2574 = vpop.permute.xlu0 %2573
    %2575 = vrot.lane.b32.xlu0 %v1837, 72
    %v2576 = vpop.permute.xlu0 %2575
    %v2577 = vsel %vm545, %v2574, 0
    %v2579 = vsel %vm545, %v2576, 0
    %2581 = vmatprep.subr.mxu0 0.0
    %2582 = vmatpush1.xpose.msra.mxu0 %v2579
    %2583 = vmatprep.subr.mxu0 0.0
    %2584 = vmatpush1.xpose.msra.mxu0 0.0
    %2585 = vmatprep.subr.mxu0 0.0
    %2586 = vmatpush1.xpose.msra.mxu0 0.0
    %2587 = vmatprep.subr.mxu0 0.0
    %2588 = vmatpush1.xpose.msra.mxu0 0.0
    %2589 = vmatprep.subr.mxu0 0.0
    %2590 = vmatpush1.xpose.msra.mxu0 0.0
    %2591 = vmatprep.subr.mxu0 0.0
    %2592 = vmatpush1.xpose.msra.mxu0 0.0
    %2593 = vmatprep.subr.mxu0 0.0
    %2594 = vmatpush1.xpose.msra.mxu0 0.0
    %2595 = vmatprep.subr.mxu0 0.0
    %2596 = vmatpush1.xpose.msra.mxu0 0.0
    %2597 = vmatprep.subr.mxu0 0.0
    %2598 = vmatpush1.xpose.msra.mxu0 0.0
    %2599 = vmatprep.subr.mxu0 0.0
    %2600 = vmatpush1.xpose.msra.mxu0 0.0
    %2601 = vmatprep.subr.mxu0 0.0
    %2602 = vmatpush1.xpose.msra.mxu0 0.0
    %2603 = vmatprep.subr.mxu0 0.0
    %2604 = vmatpush1.xpose.msra.mxu0 0.0
    %2605 = vmatprep.subr.mxu0 0.0
    %2606 = vmatpush1.xpose.msra.mxu0 0.0
    %2607 = vmatprep.subr.mxu0 0.0
    %2608 = vmatpush1.xpose.msra.mxu0 0.0
    %2609 = vmatprep.subr.mxu0 0.0
    %2610 = vmatpush1.xpose.msra.mxu0 0.0
    %2611 = vmatprep.subr.mxu0 0.0
    %2612 = vmatpush1.xpose.msra.mxu0 0.0
    %2613 = vmatprep.subr.mxu0 0.0
    %2614 = vmatpush1.xpose.msra.mxu0 0.0
    %2615 = vmatprep.subr.mxu0 0.0
    %2616 = vmatpush1.xpose.msra.mxu0 0.0
    %2617 = vmatprep.subr.mxu0 0.0
    %2618 = vmatpush1.xpose.msra.mxu0 0.0
    %2619 = vmatprep.subr.mxu0 0.0
    %2620 = vmatpush1.xpose.msra.mxu0 0.0
    %2621 = vmatprep.subr.mxu0 0.0
    %2622 = vmatpush1.xpose.msra.mxu0 0.0
    %2623 = vmatprep.subr.mxu0 0.0
    %2624 = vmatpush1.xpose.msra.mxu0 0.0
    %2625 = vmatprep.subr.mxu0 0.0
    %2626 = vmatpush1.xpose.msra.mxu0 0.0
    %2627 = vmatprep.subr.mxu0 0.0
    %2628 = vmatpush1.xpose.msra.mxu0 0.0
    %2629 = vmatprep.subr.mxu0 0.0
    %2630 = vmatpush1.xpose.msra.mxu0 0.0
    %2631 = vmatprep.subr.mxu0 0.0
    %2632 = vmatpush1.xpose.msra.mxu0 0.0
    %2633 = vmatprep.subr.mxu0 0.0
    %2634 = vmatpush1.xpose.msra.mxu0 0.0
    %2635 = vmatprep.subr.mxu0 0.0
    %2636 = vmatpush1.xpose.msra.mxu0 0.0
    %2637 = vmatprep.subr.mxu0 0.0
    %2638 = vmatpush1.xpose.msra.mxu0 0.0
    %2639 = vmatprep.subr.mxu0 0.0
    %2640 = vmatpush1.xpose.msra.mxu0 0.0
    %2641 = vmatprep.subr.mxu0 0.0
    %2642 = vmatpush1.xpose.msra.mxu0 0.0
    %2643 = vmatprep.subr.mxu0 0.0
    %2644 = vmatpush1.xpose.msra.mxu0 0.0
    %2645 = vmatprep.mubr.f32.mxu0 0.0
    %2646 = vmatmul.mubr.f32.gmra.mrb[0].mxu0 %v2577
    %v2647 = vpop.f32.mrb[0].mxu0
    %v2648 = vadd.f32 0.0, %v2647
    %v2649 = vpop.f32.mrb[0].mxu0
    %2650 = vdwg.mxu0
    %v2651 = vmul.f32 %v2648, 0.35355338
    %v2652 = vadd.f32 %v2651, %v331
    %v2653 = vsel %vm545, %v2652, -inf
    %2654 = vmax.xlane.f32.xlu0 %v2653
    %v2655 = vpop.xlane.xlu0 %2654
    %v2656 = vsub.f32 %v2652, %v2655
    %v2657 = vmul.f32 %v2656, 1.442695
    %v2658 = vpow.pop %v2657
    %v2659 = vsel %vm545, %v2658, 0.0
    %2660 = vadd.xlane.f32.xlu0 %v2659
    %v2661 = vpop.xlane.xlu0 %2660
    %v2662 = vrcp.pop %v2661
    %v2663 = vmul.f32 %v2658, %v2662
    %2664 = vrot.lane.b32.xlu0 %v1837, 40
    %v2665 = vpop.permute.xlu0 %2664
    %v2668 = vsel %vm545, %v2663, 0
    %2670 = vmatprep.subr.mxu0 0.0
    %2671 = vmatpush1.msra.mxu0 %v2665
    %2672 = vmatprep.subr.mxu0 0.0
    %2673 = vmatpush1.msra.mxu0 0.0
    %2674 = vmatprep.subr.mxu0 0.0
    %2675 = vmatpush1.msra.mxu0 0.0
    %2676 = vmatprep.subr.mxu0 0.0
    %2677 = vmatpush1.msra.mxu0 0.0
    %2678 = vmatprep.subr.mxu0 0.0
    %2679 = vmatpush1.msra.mxu0 0.0
    %2680 = vmatprep.subr.mxu0 0.0
    %2681 = vmatpush1.msra.mxu0 0.0
    %2682 = vmatprep.subr.mxu0 0.0
    %2683 = vmatpush1.msra.mxu0 0.0
    %2684 = vmatprep.subr.mxu0 0.0
    %2685 = vmatpush1.msra.mxu0 0.0
    %2686 = vmatprep.subr.mxu0 0.0
    %2687 = vmatpush1.msra.mxu0 0.0
    %2688 = vmatprep.subr.mxu0 0.0
    %2689 = vmatpush1.msra.mxu0 0.0
    %2690 = vmatprep.subr.mxu0 0.0
    %2691 = vmatpush1.msra.mxu0 0.0
    %2692 = vmatprep.subr.mxu0 0.0
    %2693 = vmatpush1.msra.mxu0 0.0
    %2694 = vmatprep.subr.mxu0 0.0
    %2695 = vmatpush1.msra.mxu0 0.0
    %2696 = vmatprep.subr.mxu0 0.0
    %2697 = vmatpush1.msra.mxu0 0.0
    %2698 = vmatprep.subr.mxu0 0.0
    %2699 = vmatpush1.msra.mxu0 0.0
    %2700 = vmatprep.subr.mxu0 0.0
    %2701 = vmatpush1.msra.mxu0 0.0
    %2702 = vmatprep.subr.mxu0 0.0
    %2703 = vmatpush1.msra.mxu0 0.0
    %2704 = vmatprep.subr.mxu0 0.0
    %2705 = vmatpush1.msra.mxu0 0.0
    %2706 = vmatprep.subr.mxu0 0.0
    %2707 = vmatpush1.msra.mxu0 0.0
    %2708 = vmatprep.subr.mxu0 0.0
    %2709 = vmatpush1.msra.mxu0 0.0
    %2710 = vmatprep.subr.mxu0 0.0
    %2711 = vmatpush1.msra.mxu0 0.0
    %2712 = vmatprep.subr.mxu0 0.0
    %2713 = vmatpush1.msra.mxu0 0.0
    %2714 = vmatprep.subr.mxu0 0.0
    %2715 = vmatpush1.msra.mxu0 0.0
    %2716 = vmatprep.subr.mxu0 0.0
    %2717 = vmatpush1.msra.mxu0 0.0
    %2718 = vmatprep.subr.mxu0 0.0
    %2719 = vmatpush1.msra.mxu0 0.0
    %2720 = vmatprep.subr.mxu0 0.0
    %2721 = vmatpush1.msra.mxu0 0.0
    %2722 = vmatprep.subr.mxu0 0.0
    %2723 = vmatpush1.msra.mxu0 0.0
    %2724 = vmatprep.subr.mxu0 0.0
    %2725 = vmatpush1.msra.mxu0 0.0
    %2726 = vmatprep.subr.mxu0 0.0
    %2727 = vmatpush1.msra.mxu0 0.0
    %2728 = vmatprep.subr.mxu0 0.0
    %2729 = vmatpush1.msra.mxu0 0.0
    %2730 = vmatprep.subr.mxu0 0.0
    %2731 = vmatpush1.msra.mxu0 0.0
    %2732 = vmatprep.subr.mxu0 0.0
    %2733 = vmatpush1.msra.mxu0 0.0
    %2734 = vmatprep.mubr.f32.mxu0 0.0
    %2735 = vmatmul.mubr.f32.gmra.mrb[0].mxu0 %v2668
    %v2736 = vpop.f32.mrb[0].mxu0
    %v2737 = vadd.f32 0.0, %v2736
    %v2738 = vpop.f32.mrb[0].mxu0
    %2739 = vdwg.mxu0
    %v2740 = vld [vmem:[%s71 + $0x18] sm:$0xff]
    %v2742 = vsel %vm545, %v2737, 0
    %2744 = vmatprep.subr.mxu0 0.0
    %2745 = vmatpush1.msra.mxu0 %v2740
    %2746 = vmatprep.subr.mxu0 0.0
    %2747 = vmatpush1.msra.mxu0 0.0
    %2748 = vmatprep.subr.mxu0 0.0
    %2749 = vmatpush1.msra.mxu0 0.0
    %2750 = vmatprep.subr.mxu0 0.0
    %2751 = vmatpush1.msra.mxu0 0.0
    %2752 = vmatprep.subr.mxu0 0.0
    %2753 = vmatpush1.msra.mxu0 0.0
    %2754 = vmatprep.subr.mxu0 0.0
    %2755 = vmatpush1.msra.mxu0 0.0
    %2756 = vmatprep.subr.mxu0 0.0
    %2757 = vmatpush1.msra.mxu0 0.0
    %2758 = vmatprep.subr.mxu0 0.0
    %2759 = vmatpush1.msra.mxu0 0.0
    %2760 = vmatprep.subr.mxu0 0.0
    %2761 = vmatpush1.msra.mxu0 0.0
    %2762 = vmatprep.subr.mxu0 0.0
    %2763 = vmatpush1.msra.mxu0 0.0
    %2764 = vmatprep.subr.mxu0 0.0
    %2765 = vmatpush1.msra.mxu0 0.0
    %2766 = vmatprep.subr.mxu0 0.0
    %2767 = vmatpush1.msra.mxu0 0.0
    %2768 = vmatprep.subr.mxu0 0.0
    %2769 = vmatpush1.msra.mxu0 0.0
    %2770 = vmatprep.subr.mxu0 0.0
    %2771 = vmatpush1.msra.mxu0 0.0
    %2772 = vmatprep.subr.mxu0 0.0
    %2773 = vmatpush1.msra.mxu0 0.0
    %2774 = vmatprep.subr.mxu0 0.0
    %2775 = vmatpush1.msra.mxu0 0.0
    %2776 = vmatprep.subr.mxu0 0.0
    %2777 = vmatpush1.msra.mxu0 0.0
    %2778 = vmatprep.subr.mxu0 0.0
    %2779 = vmatpush1.msra.mxu0 0.0
    %2780 = vmatprep.subr.mxu0 0.0
    %2781 = vmatpush1.msra.mxu0 0.0
    %2782 = vmatprep.subr.mxu0 0.0
    %2783 = vmatpush1.msra.mxu0 0.0
    %2784 = vmatprep.subr.mxu0 0.0
    %2785 = vmatpush1.msra.mxu0 0.0
    %2786 = vmatprep.subr.mxu0 0.0
    %2787 = vmatpush1.msra.mxu0 0.0
    %2788 = vmatprep.subr.mxu0 0.0
    %2789 = vmatpush1.msra.mxu0 0.0
    %2790 = vmatprep.subr.mxu0 0.0
    %2791 = vmatpush1.msra.mxu0 0.0
    %2792 = vmatprep.subr.mxu0 0.0
    %2793 = vmatpush1.msra.mxu0 0.0
    %2794 = vmatprep.subr.mxu0 0.0
    %2795 = vmatpush1.msra.mxu0 0.0
    %2796 = vmatprep.subr.mxu0 0.0
    %2797 = vmatpush1.msra.mxu0 0.0
    %2798 = vmatprep.subr.mxu0 0.0
    %2799 = vmatpush1.msra.mxu0 0.0
    %2800 = vmatprep.subr.mxu0 0.0
    %2801 = vmatpush1.msra.mxu0 0.0
    %2802 = vmatprep.subr.mxu0 0.0
    %2803 = vmatpush1.msra.mxu0 0.0
    %2804 = vmatprep.subr.mxu0 0.0
    %2805 = vmatpush1.msra.mxu0 0.0
    %2806 = vmatprep.subr.mxu0 0.0
    %2807 = vmatpush1.msra.mxu0 0.0
    %2808 = vmatprep.mubr.f32.mxu0 0.0
    %2809 = vmatmul.mubr.f32.gmra.mrb[0].mxu0 %v2742
    %v2810 = vpop.f32.mrb[0].mxu0
    %v2811 = vadd.f32 0.0, %v2810
    %v2812 = vpop.f32.mrb[0].mxu0
    %2813 = vdwg.mxu0
    %v2814 = vadd.f32 %v2572, %v2811
    %v2815 = vadd.f32 %v1726, %v2814
    %v2816 = vsel %vm419, %v2815, 0.0
    %2817 = vadd.xlane.f32.xlu0 %v2816
    %v2818 = vpop.xlane.xlu0 %2817
    %v2819 = vmul.f32 %v2818, %v423
    %v2820 = vsub.f32 %v2815, %v2819
    %v2821 = vmul.f32 %v2820, %v2820
    %v2822 = vsel %vm419, %v2821, 0.0
    %2823 = vadd.xlane.f32.xlu0 %v2822
    %v2824 = vpop.xlane.xlu0 %2823
    %v2825 = vmul.f32 %v2824, %v423
    %v2826 = vadd.f32 %v2825, 1e-05
    %v2827 = vrsqrt.pop %v2826
    %v2828 = vmul.f32 %v2820, %v2827
    %v2829 = vld [vmem:[%s59] sm:$0x1]
    %v2831 = vlaneseq
    %v2832 = vshrl.u32 %v2831, 7
    %v2833 = vsub.s32 0, %v2832
    %v2834 = vrot.slane %v2829, %v2833
    %v2836 = vmul.f32 %v2828, %v2834
    %v2837 = vld [vmem:[%s57] sm:$0x1]
    %v2839 = vlaneseq
    %v2840 = vshrl.u32 %v2839, 7
    %v2841 = vsub.s32 0, %v2840
    %v2842 = vrot.slane %v2837, %v2841
    %v2844 = vadd.f32 %v2836, %v2842
    %v2845 = vld [vmem:[%s63] sm:$0xff]
    %v2846 = vld [vmem:[%s63 + $0x8] sm:$0xff]
    %v2847 = vld [vmem:[%s63 + $0x10] sm:$0xff]
    %v2848 = vld [vmem:[%s63 + $0x18] sm:$0xff]
    %v2849 = vld [vmem:[%s61] sm:$0x1]
    %v2851 = vlaneseq
    %v2852 = vshrl.u32 %v2851, 7
    %v2853 = vsub.s32 0, %v2852
    %v2854 = vrot.slane %v2849, %v2853
    %v2857 = vsel %vm419, %v2844, 0
    %2859 = vmatprep.subr.mxu0 0.0
    %2860 = vmatpush1.msra.mxu0 %v2845
    %2861 = vmatprep.subr.mxu0 0.0
    %2862 = vmatpush1.msra.mxu0 %v2846
    %2863 = vmatprep.subr.mxu0 0.0
    %2864 = vmatpush1.msra.mxu0 %v2847
    %2865 = vmatprep.subr.mxu0 0.0
    %2866 = vmatpush1.msra.mxu0 %v2848
    %2867 = vmatprep.subr.mxu0 0.0
    %2868 = vmatpush1.msra.mxu0 0.0
    %2869 = vmatprep.subr.mxu0 0.0
    %2870 = vmatpush1.msra.mxu0 0.0
    %2871 = vmatprep.subr.mxu0 0.0
    %2872 = vmatpush1.msra.mxu0 0.0
    %2873 = vmatprep.subr.mxu0 0.0
    %2874 = vmatpush1.msra.mxu0 0.0
    %2875 = vmatprep.subr.mxu0 0.0
    %2876 = vmatpush1.msra.mxu0 0.0
    %2877 = vmatprep.subr.mxu0 0.0
    %2878 = vmatpush1.msra.mxu0 0.0
    %2879 = vmatprep.subr.mxu0 0.0
    %2880 = vmatpush1.msra.mxu0 0.0
    %2881 = vmatprep.subr.mxu0 0.0
    %2882 = vmatpush1.msra.mxu0 0.0
    %2883 = vmatprep.subr.mxu0 0.0
    %2884 = vmatpush1.msra.mxu0 0.0
    %2885 = vmatprep.subr.mxu0 0.0
    %2886 = vmatpush1.msra.mxu0 0.0
    %2887 = vmatprep.subr.mxu0 0.0
    %2888 = vmatpush1.msra.mxu0 0.0
    %2889 = vmatprep.subr.mxu0 0.0
    %2890 = vmatpush1.msra.mxu0 0.0
    %2891 = vmatprep.subr.mxu0 0.0
    %2892 = vmatpush1.msra.mxu0 0.0
    %2893 = vmatprep.subr.mxu0 0.0
    %2894 = vmatpush1.msra.mxu0 0.0
    %2895 = vmatprep.subr.mxu0 0.0
    %2896 = vmatpush1.msra.mxu0 0.0
    %2897 = vmatprep.subr.mxu0 0.0
    %2898 = vmatpush1.msra.mxu0 0.0
    %2899 = vmatprep.subr.mxu0 0.0
    %2900 = vmatpush1.msra.mxu0 0.0
    %2901 = vmatprep.subr.mxu0 0.0
    %2902 = vmatpush1.msra.mxu0 0.0
    %2903 = vmatprep.subr.mxu0 0.0
    %2904 = vmatpush1.msra.mxu0 0.0
    %2905 = vmatprep.subr.mxu0 0.0
    %2906 = vmatpush1.msra.mxu0 0.0
    %2907 = vmatprep.subr.mxu0 0.0
    %2908 = vmatpush1.msra.mxu0 0.0
    %2909 = vmatprep.subr.mxu0 0.0
    %2910 = vmatpush1.msra.mxu0 0.0
    %2911 = vmatprep.subr.mxu0 0.0
    %2912 = vmatpush1.msra.mxu0 0.0
    %2913 = vmatprep.subr.mxu0 0.0
    %2914 = vmatpush1.msra.mxu0 0.0
    %2915 = vmatprep.subr.mxu0 0.0
    %2916 = vmatpush1.msra.mxu0 0.0
    %2917 = vmatprep.subr.mxu0 0.0
    %2918 = vmatpush1.msra.mxu0 0.0
    %2919 = vmatprep.subr.mxu0 0.0
    %2920 = vmatpush1.msra.mxu0 0.0
    %2921 = vmatprep.subr.mxu0 0.0
    %2922 = vmatpush1.msra.mxu0 0.0
    %2923 = vmatprep.mubr.f32.mxu0 0.0
    %2924 = vmatmul.mubr.f32.gmra.mrb[0].mxu0 %v2857
    %v2925 = vpop.f32.mrb[0].mxu0
    %v2926 = vadd.f32 %v2854, %v2925
    %v2927 = vpop.f32.mrb[0].mxu0
    %2928 = vdwg.mxu0
    %v2929 = vmul.f32 %v2926, %v2926
    %v2930 = vmul.f32 %v2926, %v2929
    %v2931 = vmul.f32 %v2930, 0.044715
    %v2932 = vadd.f32 %v2926, %v2931
    %v2933 = vmul.f32 %v2932, 0.7978846
    %v2934 = vtanh.pop %v2933
    %v2935 = vadd.f32 %v2934, 1.0
    %v2936 = vmul.f32 %v2935, 0.5
    %v2937 = vmul.f32 %v2926, %v2936
    %v2938 = vld [vmem:[%s67] sm:$0xff]
    %v2939 = vld [vmem:[%s67 + $0x8] sm:$0xff]
    %v2940 = vld [vmem:[%s67 + $0x10] sm:$0xff]
    %v2941 = vld [vmem:[%s67 + $0x18] sm:$0xff]
    %v2942 = vld [vmem:[%s67 + $0x20] sm:$0xff]
    %v2943 = vld [vmem:[%s67 + $0x28] sm:$0xff]
    %v2944 = vld [vmem:[%s67 + $0x30] sm:$0xff]
    %v2945 = vld [vmem:[%s67 + $0x38] sm:$0xff]
    %v2946 = vld [vmem:[%s67 + $0x40] sm:$0xff]
    %v2947 = vld [vmem:[%s67 + $0x48] sm:$0xff]
    %v2948 = vld [vmem:[%s67 + $0x50] sm:$0xff]
    %v2949 = vld [vmem:[%s67 + $0x58] sm:$0xff]
    %v2950 = vld [vmem:[%s67 + $0x60] sm:$0xff]
    %v2951 = vld [vmem:[%s67 + $0x68] sm:$0xff]
    %v2952 = vld [vmem:[%s67 + $0x70] sm:$0xff]
    %v2953 = vld [vmem:[%s67 + $0x78] sm:$0xff]
    %v2954 = vld [vmem:[%s65] sm:$0x1]
    %v2956 = vlaneseq
    %v2957 = vshrl.u32 %v2956, 7
    %v2958 = vsub.s32 0, %v2957
    %v2959 = vrot.slane %v2954, %v2958
    %2961 = vmatprep.subr.mxu0 0.0
    %2962 = vmatpush1.msra.mxu0 %v2938
    %2963 = vmatprep.subr.mxu0 0.0
    %2964 = vmatpush1.msra.mxu0 %v2939
    %2965 = vmatprep.subr.mxu0 0.0
    %2966 = vmatpush1.msra.mxu0 %v2940
    %2967 = vmatprep.subr.mxu0 0.0
    %2968 = vmatpush1.msra.mxu0 %v2941
    %2969 = vmatprep.subr.mxu0 0.0
    %2970 = vmatpush1.msra.mxu0 %v2942
    %2971 = vmatprep.subr.mxu0 0.0
    %2972 = vmatpush1.msra.mxu0 %v2943
    %2973 = vmatprep.subr.mxu0 0.0
    %2974 = vmatpush1.msra.mxu0 %v2944
    %2975 = vmatprep.subr.mxu0 0.0
    %2976 = vmatpush1.msra.mxu0 %v2945
    %2977 = vmatprep.subr.mxu0 0.0
    %2978 = vmatpush1.msra.mxu0 %v2946
    %2979 = vmatprep.subr.mxu0 0.0
    %2980 = vmatpush1.msra.mxu0 %v2947
    %2981 = vmatprep.subr.mxu0 0.0
    %2982 = vmatpush1.msra.mxu0 %v2948
    %2983 = vmatprep.subr.mxu0 0.0
    %2984 = vmatpush1.msra.mxu0 %v2949
    %2985 = vmatprep.subr.mxu0 0.0
    %2986 = vmatpush1.msra.mxu0 %v2950
    %2987 = vmatprep.subr.mxu0 0.0
    %2988 = vmatpush1.msra.mxu0 %v2951
    %2989 = vmatprep.subr.mxu0 0.0
    %2990 = vmatpush1.msra.mxu0 %v2952
    %2991 = vmatprep.subr.mxu0 0.0
    %2992 = vmatpush1.msra.mxu0 %v2953
    %2993 = vmatprep.subr.mxu0 0.0
    %2994 = vmatpush1.msra.mxu0 0.0
    %2995 = vmatprep.subr.mxu0 0.0
    %2996 = vmatpush1.msra.mxu0 0.0
    %2997 = vmatprep.subr.mxu0 0.0
    %2998 = vmatpush1.msra.mxu0 0.0
    %2999 = vmatprep.subr.mxu0 0.0
    %3000 = vmatpush1.msra.mxu0 0.0
    %3001 = vmatprep.subr.mxu0 0.0
    %3002 = vmatpush1.msra.mxu0 0.0
    %3003 = vmatprep.subr.mxu0 0.0
    %3004 = vmatpush1.msra.mxu0 0.0
    %3005 = vmatprep.subr.mxu0 0.0
    %3006 = vmatpush1.msra.mxu0 0.0
    %3007 = vmatprep.subr.mxu0 0.0
    %3008 = vmatpush1.msra.mxu0 0.0
    %3009 = vmatprep.subr.mxu0 0.0
    %3010 = vmatpush1.msra.mxu0 0.0
    %3011 = vmatprep.subr.mxu0 0.0
    %3012 = vmatpush1.msra.mxu0 0.0
    %3013 = vmatprep.subr.mxu0 0.0
    %3014 = vmatpush1.msra.mxu0 0.0
    %3015 = vmatprep.subr.mxu0 0.0
    %3016 = vmatpush1.msra.mxu0 0.0
    %3017 = vmatprep.subr.mxu0 0.0
    %3018 = vmatpush1.msra.mxu0 0.0
    %3019 = vmatprep.subr.mxu0 0.0
    %3020 = vmatpush1.msra.mxu0 0.0
    %3021 = vmatprep.subr.mxu0 0.0
    %3022 = vmatpush1.msra.mxu0 0.0
    %3023 = vmatprep.subr.mxu0 0.0
    %3024 = vmatpush1.msra.mxu0 0.0
    %3025 = vmatprep.mubr.f32.mxu0 0.0
    %3026 = vmatmul.mubr.f32.gmra.mrb[0].mxu0 %v2937
    %v3027 = vpop.f32.mrb[0].mxu0
    %v3028 = vadd.f32 %v2959, %v3027
    %v3029 = vpop.f32.mrb[0].mxu0
    %3030 = vdwg.mxu0
    %v3031 = vadd.f32 %v2815, %v3028
    %v3032 = vsel %vm419, %v3031, 0.0
    %3033 = vadd.xlane.f32.xlu0 %v3032
    %v3034 = vpop.xlane.xlu0 %3033
    %v3035 = vmul.f32 %v3034, %v423
    %v3036 = vsub.f32 %v3031, %v3035
    %v3037 = vmul.f32 %v3036, %v3036
    %v3038 = vsel %vm419, %v3037, 0.0
    %3039 = vadd.xlane.f32.xlu0 %v3038
    %v3040 = vpop.xlane.xlu0 %3039
    %v3041 = vmul.f32 %v3040, %v423
    %v3042 = vadd.f32 %v3041, 1e-05
    %v3043 = vrsqrt.pop %v3042
    %v3044 = vmul.f32 %v3036, %v3043
    %v3045 = vld [vmem:[%s11] sm:$0x1]
    %v3047 = vlaneseq
    %v3048 = vshrl.u32 %v3047, 7
    %v3049 = vsub.s32 0, %v3048
    %v3050 = vrot.slane %v3045, %v3049
    %v3052 = vmul.f32 %v3044, %v3050
    %v3053 = vld [vmem:[%s9] sm:$0x1]
    %v3055 = vlaneseq
    %v3056 = vshrl.u32 %v3055, 7
    %v3057 = vsub.s32 0, %v3056
    %v3058 = vrot.slane %v3053, %v3057
    %v3060 = vadd.f32 %v3052, %v3058
    %v3061 = vsel %vm419, %v3060, 0.0
    %v3062 = vrot.slane %v3061, 4
    %v3063 = vadd.f32 %v3061, %v3062
    %v3064 = vrot.slane %v3063, 2
    %v3065 = vadd.f32 %v3063, %v3064
    %v3066 = vrot.slane %v3065, 1
    %v3067 = vadd.f32 %v3065, %v3066
    %v3068 = vrcp.pop 8.0
    %v3069 = vmul.f32 %v3067, %v3068
    %v3070 = vld [vmem:[%s19] sm:$0xff]
    %v3071 = vld [vmem:[%s19 + $0x8] sm:$0xff]
    %v3072 = vld [vmem:[%s19 + $0x10] sm:$0xff]
    %v3073 = vld [vmem:[%s19 + $0x18] sm:$0xff]
    %v3074 = vld [vmem:[%s17] sm:$0x1]
    %v3076 = vsel %vm419, %v3069, 0
    %3078 = vmatprep.subr.mxu0 0.0
    %3079 = vmatpush1.msra.mxu0 %v3070
    %3080 = vmatprep.subr.mxu0 0.0
    %3081 = vmatpush1.msra.mxu0 %v3071
    %3082 = vmatprep.subr.mxu0 0.0
    %3083 = vmatpush1.msra.mxu0 %v3072
    %3084 = vmatprep.subr.mxu0 0.0
    %3085 = vmatpush1.msra.mxu0 %v3073
    %3086 = vmatprep.subr.mxu0 0.0
    %3087 = vmatpush1.msra.mxu0 0.0
    %3088 = vmatprep.subr.mxu0 0.0
    %3089 = vmatpush1.msra.mxu0 0.0
    %3090 = vmatprep.subr.mxu0 0.0
    %3091 = vmatpush1.msra.mxu0 0.0
    %3092 = vmatprep.subr.mxu0 0.0
    %3093 = vmatpush1.msra.mxu0 0.0
    %3094 = vmatprep.subr.mxu0 0.0
    %3095 = vmatpush1.msra.mxu0 0.0
    %3096 = vmatprep.subr.mxu0 0.0
    %3097 = vmatpush1.msra.mxu0 0.0
    %3098 = vmatprep.subr.mxu0 0.0
    %3099 = vmatpush1.msra.mxu0 0.0
    %3100 = vmatprep.subr.mxu0 0.0
    %3101 = vmatpush1.msra.mxu0 0.0
    %3102 = vmatprep.subr.mxu0 0.0
    %3103 = vmatpush1.msra.mxu0 0.0
    %3104 = vmatprep.subr.mxu0 0.0
    %3105 = vmatpush1.msra.mxu0 0.0
    %3106 = vmatprep.subr.mxu0 0.0
    %3107 = vmatpush1.msra.mxu0 0.0
    %3108 = vmatprep.subr.mxu0 0.0
    %3109 = vmatpush1.msra.mxu0 0.0
    %3110 = vmatprep.subr.mxu0 0.0
    %3111 = vmatpush1.msra.mxu0 0.0
    %3112 = vmatprep.subr.mxu0 0.0
    %3113 = vmatpush1.msra.mxu0 0.0
    %3114 = vmatprep.subr.mxu0 0.0
    %3115 = vmatpush1.msra.mxu0 0.0
    %3116 = vmatprep.subr.mxu0 0.0
    %3117 = vmatpush1.msra.mxu0 0.0
    %3118 = vmatprep.subr.mxu0 0.0
    %3119 = vmatpush1.msra.mxu0 0.0
    %3120 = vmatprep.subr.mxu0 0.0
    %3121 = vmatpush1.msra.mxu0 0.0
    %3122 = vmatprep.subr.mxu0 0.0
    %3123 = vmatpush1.msra.mxu0 0.0
    %3124 = vmatprep.subr.mxu0 0.0
    %3125 = vmatpush1.msra.mxu0 0.0
    %3126 = vmatprep.subr.mxu0 0.0
    %3127 = vmatpush1.msra.mxu0 0.0
    %3128 = vmatprep.subr.mxu0 0.0
    %3129 = vmatpush1.msra.mxu0 0.0
    %3130 = vmatprep.subr.mxu0 0.0
    %3131 = vmatpush1.msra.mxu0 0.0
    %3132 = vmatprep.subr.mxu0 0.0
    %3133 = vmatpush1.msra.mxu0 0.0
    %3134 = vmatprep.subr.mxu0 0.0
    %3135 = vmatpush1.msra.mxu0 0.0
    %3136 = vmatprep.subr.mxu0 0.0
    %3137 = vmatpush1.msra.mxu0 0.0
    %3138 = vmatprep.subr.mxu0 0.0
    %3139 = vmatpush1.msra.mxu0 0.0
    %3140 = vmatprep.subr.mxu0 0.0
    %3141 = vmatpush1.msra.mxu0 0.0
    %3142 = vmatprep.mubr.f32.mxu0 0.0
    %3143 = vmatmul.mubr.f32.gmra.mrb[0].mxu0 %v3076
    %v3144 = vpop.f32.mrb[0].mxu0
    %v3145 = vadd.f32 %v3074, %v3144
    %v3146 = vpop.f32.mrb[0].mxu0
    %3147 = vdwg.mxu0
    %v3148 = vmul.f32 %v3145, %v3145
    %v3149 = vmul.f32 %v3145, %v3148
    %v3150 = vmul.f32 %v3149, 0.044715
    %v3151 = vadd.f32 %v3145, %v3150
    %v3152 = vmul.f32 %v3151, 0.7978846
    %v3153 = vtanh.pop %v3152
    %v3154 = vadd.f32 %v3153, 1.0
    %v3155 = vmul.f32 %v3154, 0.5
    %v3156 = vmul.f32 %v3145, %v3155
    %v3157 = vld [vmem:[%s23] sm:$0xff]
    %v3158 = vld [vmem:[%s23 + $0x8] sm:$0xff]
    %v3159 = vld [vmem:[%s23 + $0x10] sm:$0xff]
    %v3160 = vld [vmem:[%s23 + $0x18] sm:$0xff]
    %v3161 = vld [vmem:[%s21] sm:$0x1]
    %v3163 = vsel %vm419, %v3156, 0
    %3165 = vmatprep.subr.mxu0 0.0
    %3166 = vmatpush1.msra.mxu0 %v3157
    %3167 = vmatprep.subr.mxu0 0.0
    %3168 = vmatpush1.msra.mxu0 %v3158
    %3169 = vmatprep.subr.mxu0 0.0
    %3170 = vmatpush1.msra.mxu0 %v3159
    %3171 = vmatprep.subr.mxu0 0.0
    %3172 = vmatpush1.msra.mxu0 %v3160
    %3173 = vmatprep.subr.mxu0 0.0
    %3174 = vmatpush1.msra.mxu0 0.0
    %3175 = vmatprep.subr.mxu0 0.0
    %3176 = vmatpush1.msra.mxu0 0.0
    %3177 = vmatprep.subr.mxu0 0.0
    %3178 = vmatpush1.msra.mxu0 0.0
    %3179 = vmatprep.subr.mxu0 0.0
    %3180 = vmatpush1.msra.mxu0 0.0
    %3181 = vmatprep.subr.mxu0 0.0
    %3182 = vmatpush1.msra.mxu0 0.0
    %3183 = vmatprep.subr.mxu0 0.0
    %3184 = vmatpush1.msra.mxu0 0.0
    %3185 = vmatprep.subr.mxu0 0.0
    %3186 = vmatpush1.msra.mxu0 0.0
    %3187 = vmatprep.subr.mxu0 0.0
    %3188 = vmatpush1.msra.mxu0 0.0
    %3189 = vmatprep.subr.mxu0 0.0
    %3190 = vmatpush1.msra.mxu0 0.0
    %3191 = vmatprep.subr.mxu0 0.0
    %3192 = vmatpush1.msra.mxu0 0.0
    %3193 = vmatprep.subr.mxu0 0.0
    %3194 = vmatpush1.msra.mxu0 0.0
    %3195 = vmatprep.subr.mxu0 0.0
    %3196 = vmatpush1.msra.mxu0 0.0
    %3197 = vmatprep.subr.mxu0 0.0
    %3198 = vmatpush1.msra.mxu0 0.0
    %3199 = vmatprep.subr.mxu0 0.0
    %3200 = vmatpush1.msra.mxu0 0.0
    %3201 = vmatprep.subr.mxu0 0.0
    %3202 = vmatpush1.msra.mxu0 0.0
    %3203 = vmatprep.subr.mxu0 0.0
    %3204 = vmatpush1.msra.mxu0 0.0
    %3205 = vmatprep.subr.mxu0 0.0
    %3206 = vmatpush1.msra.mxu0 0.0
    %3207 = vmatprep.subr.mxu0 0.0
    %3208 = vmatpush1.msra.mxu0 0.0
    %3209 = vmatprep.subr.mxu0 0.0
    %3210 = vmatpush1.msra.mxu0 0.0
    %3211 = vmatprep.subr.mxu0 0.0
    %3212 = vmatpush1.msra.mxu0 0.0
    %3213 = vmatprep.subr.mxu0 0.0
    %3214 = vmatpush1.msra.mxu0 0.0
    %3215 = vmatprep.subr.mxu0 0.0
    %3216 = vmatpush1.msra.mxu0 0.0
    %3217 = vmatprep.subr.mxu0 0.0
    %3218 = vmatpush1.msra.mxu0 0.0
    %3219 = vmatprep.subr.mxu0 0.0
    %3220 = vmatpush1.msra.mxu0 0.0
    %3221 = vmatprep.subr.mxu0 0.0
    %3222 = vmatpush1.msra.mxu0 0.0
    %3223 = vmatprep.subr.mxu0 0.0
    %3224 = vmatpush1.msra.mxu0 0.0
    %3225 = vmatprep.subr.mxu0 0.0
    %3226 = vmatpush1.msra.mxu0 0.0
    %3227 = vmatprep.subr.mxu0 0.0
    %3228 = vmatpush1.msra.mxu0 0.0
    %3229 = vmatprep.mubr.f32.mxu0 0.0
    %3230 = vmatmul.mubr.f32.gmra.mrb[0].mxu0 %v3163
    %v3231 = vpop.f32.mrb[0].mxu0
    %v3232 = vadd.f32 %v3161, %v3231
    %v3233 = vpop.f32.mrb[0].mxu0
    %3234 = vdwg.mxu0
    %v3235 = vmul.f32 %v3232, %v3232
    %v3236 = vmul.f32 %v3232, %v3235
    %v3237 = vmul.f32 %v3236, 0.044715
    %v3238 = vadd.f32 %v3232, %v3237
    %v3239 = vmul.f32 %v3238, 0.7978846
    %v3240 = vtanh.pop %v3239
    %v3241 = vadd.f32 %v3240, 1.0
    %v3242 = vmul.f32 %v3241, 0.5
    %v3243 = vmul.f32 %v3232, %v3242
    %v3244 = vld [vmem:[%s27] sm:$0xff]
    %v3245 = vld [vmem:[%s27 + $0x8] sm:$0xff]
    %v3246 = vld [vmem:[%s27 + $0x10] sm:$0xff]
    %v3247 = vld [vmem:[%s27 + $0x18] sm:$0xff]
    %v3248 = vld [vmem:[%s25] sm:$0x1]
    %v3250 = vsel %vm419, %v3243, 0
    %3252 = vmatprep.subr.mxu0 0.0
    %3253 = vmatpush1.msra.mxu0 %v3244
    %3254 = vmatprep.subr.mxu0 0.0
    %3255 = vmatpush1.msra.mxu0 %v3245
    %3256 = vmatprep.subr.mxu0 0.0
    %3257 = vmatpush1.msra.mxu0 %v3246
    %3258 = vmatprep.subr.mxu0 0.0
    %3259 = vmatpush1.msra.mxu0 %v3247
    %3260 = vmatprep.subr.mxu0 0.0
    %3261 = vmatpush1.msra.mxu0 0.0
    %3262 = vmatprep.subr.mxu0 0.0
    %3263 = vmatpush1.msra.mxu0 0.0
    %3264 = vmatprep.subr.mxu0 0.0
    %3265 = vmatpush1.msra.mxu0 0.0
    %3266 = vmatprep.subr.mxu0 0.0
    %3267 = vmatpush1.msra.mxu0 0.0
    %3268 = vmatprep.subr.mxu0 0.0
    %3269 = vmatpush1.msra.mxu0 0.0
    %3270 = vmatprep.subr.mxu0 0.0
    %3271 = vmatpush1.msra.mxu0 0.0
    %3272 = vmatprep.subr.mxu0 0.0
    %3273 = vmatpush1.msra.mxu0 0.0
    %3274 = vmatprep.subr.mxu0 0.0
    %3275 = vmatpush1.msra.mxu0 0.0
    %3276 = vmatprep.subr.mxu0 0.0
    %3277 = vmatpush1.msra.mxu0 0.0
    %3278 = vmatprep.subr.mxu0 0.0
    %3279 = vmatpush1.msra.mxu0 0.0
    %3280 = vmatprep.subr.mxu0 0.0
    %3281 = vmatpush1.msra.mxu0 0.0
    %3282 = vmatprep.subr.mxu0 0.0
    %3283 = vmatpush1.msra.mxu0 0.0
    %3284 = vmatprep.subr.mxu0 0.0
    %3285 = vmatpush1.msra.mxu0 0.0
    %3286 = vmatprep.subr.mxu0 0.0
    %3287 = vmatpush1.msra.mxu0 0.0
    %3288 = vmatprep.subr.mxu0 0.0
    %3289 = vmatpush1.msra.mxu0 0.0
    %3290 = vmatprep.subr.mxu0 0.0
    %3291 = vmatpush1.msra.mxu0 0.0
    %3292 = vmatprep.subr.mxu0 0.0
    %3293 = vmatpush1.msra.mxu0 0.0
    %3294 = vmatprep.subr.mxu0 0.0
    %3295 = vmatpush1.msra.mxu0 0.0
    %3296 = vmatprep.subr.mxu0 0.0
    %3297 = vmatpush1.msra.mxu0 0.0
    %3298 = vmatprep.subr.mxu0 0.0
    %3299 = vmatpush1.msra.mxu0 0.0
    %3300 = vmatprep.subr.mxu0 0.0
    %3301 = vmatpush1.msra.mxu0 0.0
    %3302 = vmatprep.subr.mxu0 0.0
    %3303 = vmatpush1.msra.mxu0 0.0
    %3304 = vmatprep.subr.mxu0 0.0
    %3305 = vmatpush1.msra.mxu0 0.0
    %3306 = vmatprep.subr.mxu0 0.0
    %3307 = vmatpush1.msra.mxu0 0.0
    %3308 = vmatprep.subr.mxu0 0.0
    %3309 = vmatpush1.msra.mxu0 0.0
    %3310 = vmatprep.subr.mxu0 0.0
    %3311 = vmatpush1.msra.mxu0 0.0
    %3312 = vmatprep.subr.mxu0 0.0
    %3313 = vmatpush1.msra.mxu0 0.0
    %3314 = vmatprep.subr.mxu0 0.0
    %3315 = vmatpush1.msra.mxu0 0.0
    %3316 = vmatprep.mubr.f32.mxu0 0.0
    %3317 = vmatmul.mubr.f32.gmra.mrb[0].mxu0 %v3250
    %v3318 = vpop.f32.mrb[0].mxu0
    %v3319 = vadd.f32 %v3248, %v3318
    %v3320 = vpop.f32.mrb[0].mxu0
    %3321 = vdwg.mxu0
    %v3322 = vmul.f32 %v3319, %v3319
    %vm3323 = vcmask 122880
    %v3324 = vsel %vm3323, %v3322, 0.0
    %3325 = vadd.xlane.f32.xlu0 %v3324
    %v3326 = vpop.xlane.xlu0 %3325
    %v3327 = vrsqrt.pop %v3326
    %v3328 = vmul.f32 %v3326, %v3327
    %vm3329 = vcmp.eq.f32.partialorder %v3326, inf
    %v3330 = vsel %vm3329, %v3326, %v3328
    %vm3331 = vcmp.eq.f32.partialorder %v3326, 0.0
    %v3332 = vand.u32 %v3326, 2147483648
    %v3333 = vsel %vm3331, %v3332, %v3330
    %v3334 = vmax.f32 %v3333, 1e-12
    %v3335 = vrcp.pop %v3334
    %v3336 = vmul.f32 %v3319, %v3335
    %v3337 = vld [vmem:[%s15] sm:$0xff]
    %v3338 = vld [vmem:[%s15 + $0x8] sm:$0xff]
    %v3339 = vld [vmem:[%s13] sm:$0x1]
    %v3341 = vsel %vm177, %v3336, 0
    %3343 = vmatprep.subr.mxu0 0.0
    %3344 = vmatpush1.msra.mxu0 %v3337
    %3345 = vmatprep.subr.mxu0 0.0
    %3346 = vmatpush1.msra.mxu0 %v3338
    %3347 = vmatprep.subr.mxu0 0.0
    %3348 = vmatpush1.msra.mxu0 0.0
    %3349 = vmatprep.subr.mxu0 0.0
    %3350 = vmatpush1.msra.mxu0 0.0
    %3351 = vmatprep.subr.mxu0 0.0
    %3352 = vmatpush1.msra.mxu0 0.0
    %3353 = vmatprep.subr.mxu0 0.0
    %3354 = vmatpush1.msra.mxu0 0.0
    %3355 = vmatprep.subr.mxu0 0.0
    %3356 = vmatpush1.msra.mxu0 0.0
    %3357 = vmatprep.subr.mxu0 0.0
    %3358 = vmatpush1.msra.mxu0 0.0
    %3359 = vmatprep.subr.mxu0 0.0
    %3360 = vmatpush1.msra.mxu0 0.0
    %3361 = vmatprep.subr.mxu0 0.0
    %3362 = vmatpush1.msra.mxu0 0.0
    %3363 = vmatprep.subr.mxu0 0.0
    %3364 = vmatpush1.msra.mxu0 0.0
    %3365 = vmatprep.subr.mxu0 0.0
    %3366 = vmatpush1.msra.mxu0 0.0
    %3367 = vmatprep.subr.mxu0 0.0
    %3368 = vmatpush1.msra.mxu0 0.0
    %3369 = vmatprep.subr.mxu0 0.0
    %3370 = vmatpush1.msra.mxu0 0.0
    %3371 = vmatprep.subr.mxu0 0.0
    %3372 = vmatpush1.msra.mxu0 0.0
    %3373 = vmatprep.subr.mxu0 0.0
    %3374 = vmatpush1.msra.mxu0 0.0
    %3375 = vmatprep.subr.mxu0 0.0
    %3376 = vmatpush1.msra.mxu0 0.0
    %3377 = vmatprep.subr.mxu0 0.0
    %3378 = vmatpush1.msra.mxu0 0.0
    %3379 = vmatprep.subr.mxu0 0.0
    %3380 = vmatpush1.msra.mxu0 0.0
    %3381 = vmatprep.subr.mxu0 0.0
    %3382 = vmatpush1.msra.mxu0 0.0
    %3383 = vmatprep.subr.mxu0 0.0
    %3384 = vmatpush1.msra.mxu0 0.0
    %3385 = vmatprep.subr.mxu0 0.0
    %3386 = vmatpush1.msra.mxu0 0.0
    %3387 = vmatprep.subr.mxu0 0.0
    %3388 = vmatpush1.msra.mxu0 0.0
    %3389 = vmatprep.subr.mxu0 0.0
    %3390 = vmatpush1.msra.mxu0 0.0
    %3391 = vmatprep.subr.mxu0 0.0
    %3392 = vmatpush1.msra.mxu0 0.0
    %3393 = vmatprep.subr.mxu0 0.0
    %3394 = vmatpush1.msra.mxu0 0.0
    %3395 = vmatprep.subr.mxu0 0.0
    %3396 = vmatpush1.msra.mxu0 0.0
    %3397 = vmatprep.subr.mxu0 0.0
    %3398 = vmatpush1.msra.mxu0 0.0
    %3399 = vmatprep.subr.mxu0 0.0
    %3400 = vmatpush1.msra.mxu0 0.0
    %3401 = vmatprep.subr.mxu0 0.0
    %3402 = vmatpush1.msra.mxu0 0.0
    %3403 = vmatprep.subr.mxu0 0.0
    %3404 = vmatpush1.msra.mxu0 0.0
    %3405 = vmatprep.subr.mxu0 0.0
    %3406 = vmatpush1.msra.mxu0 0.0
    %3407 = vmatprep.mubr.f32.mxu0 0.0
    %3408 = vmatmul.mubr.f32.gmra.mrb[0].mxu0 %v3341
    %v3409 = vpop.f32.mrb[0].mxu0
    %v3410 = vadd.f32 %v3339, %v3409
    %v3411 = vpop.f32.mrb[0].mxu0
    %3412 = vdwg.mxu0
    %vm3413 = vcmask 253952
    %3414 = vst.msk [vmem:[#allocation2] sm:$0x1] %vm3413, %v3410
    // Predicated region
    $region154: #{tpu_custom_call.1} parent=1 // pred_check
      _
    $region155: #{tpu_custom_call.1} parent=1 // pred_check_branch
      %3416 = sbr.rel (0) target = $region157
    $region156: #{tpu_custom_call.1} parent=1 // pred_region
      %s3418 = ssub.s32 16, 16
      %3419 = vsyncadd [#allocation3], %s3418
      %s3421 = sshll.u32 [#allocation2], 4
      %s3422 = int_to_ptr.vmem [resolvable:$true] %s3421
      %3424 = dma.vmem_to_hbm [thread:$0]  %s3422, 16, %s77, [#allocation3]
    $region157: #{tpu_custom_call.1} parent=1 // pred_fallthru
      _
    // Predicated region
    $region158: #{tpu_custom_call.1} parent=1 // pred_check
      _
    $region159: #{tpu_custom_call.1} parent=1 // pred_check_branch
      %3426 = sbr.rel (0) target = $region161
    $region160: #{tpu_custom_call.1} parent=1 // pred_region
      %3427 = dma.done [#allocation3], 16
    $region161: #{tpu_custom_call.1} parent=1 // pred_fallthru
      _
    %3428 = vsyncpa [#allocation3], 1

</llo_original>
